<compile_context>
chip_gen: v7x
topology: tpu7x:2x2x1
jax: 0.10.0
libtpu: 0.0.40
codegen_flags: <defaults>
</compile_context>

<pallas_src>
import jax
import jax.numpy as jnp
import numpy as np
from jax.experimental import pallas as pl
from jax.experimental.pallas import tpu as pltpu

# ----------------------------- config (small) -------------------------------
VOCAB = 96
VPAD = 128            # vocab padded to a full 128-lane tile (lane-dense output)
HIDDEN = 128          # "gru_size"
NUM_LAYERS = 3
SEQ = 6
BATCH = 8


# --------------------------- fused forward kernel ----------------------------
def fused_gru_kernel(tok_ref, emb_ref, h0_ref, wih_ref, whh_ref, bi_ref,
                     bhn_ref, wlin_ref, blin_ref, logits_ref, hT_ref,
                     y_buf, gi_buf):
    """One grid step == one GRU layer.

    tok_ref:   SMEM (S, B) int32       scalar-prefetch operand (token ids)
    emb_ref:   (V, 1, H)               embedding table, rows on the leading axis
    h0_ref:    (1, B, H)               this layer's initial hidden
    wih_ref:   (1, H, 3H)              W_ih^T (gate order r, z, n)
    whh_ref:   (1, H, 3H)              W_hh^T
    bi_ref:    (1, 1, 3H)              [b_ih_r+b_hh_r, b_ih_z+b_hh_z, b_ih_n]
    bhn_ref:   (1, 1, H)               b_hh_n (stays inside r * (gh_n + b_hn))
    wlin_ref:  (H, VPAD)               W_lin^T zero-padded to 128 lanes
    blin_ref:  (1, VPAD)               b_lin zero-padded
    logits_ref:(S, B, VPAD)            written only on the last grid step
    hT_ref:    (1, B, H)               this layer's final hidden
    y_buf:     VMEM (S, B, H)          layer input/output sequence (carried)
    gi_buf:    VMEM (S, B, 3H)         hoisted input projection for the layer
    """
    S, B, H = y_buf.shape
    l = pl.program_id(0)
    is_last = l == pl.num_programs(0) - 1

    # ---- fused embedding gather (first grid step only): exact row copies ----
    @pl.when(l == 0)
    def _():
        for t in range(S):
            for b in range(B):
                y_buf[t, b:b + 1, :] = emb_ref[tok_ref[t, b]]   # (1, H) row

    wih = wih_ref[0]                                   # (H, 3H)
    whh = whh_ref[0]                                   # (H, 3H)
    bi = bi_ref[0]                                     # (1, 3H)
    bhn_b = jnp.broadcast_to(bhn_ref[0], (B, H))       # hoisted out of time loop

    # Hoisted input projection: one (S*B, H) x (H, 3H) matmul per layer.
    gi_buf[...] = (jnp.dot(y_buf[...].reshape(S * B, H), wih,
                           preferred_element_type=jnp.float32)
                   + bi).reshape(S, B, 3 * H)

    # Serial recurrence over time (S=6 static -> fully unrolled).
    # TODO(synk): optionally stage W_hh in the MXU across the unroll with
    # pltpu.matmul_push_rhs / matmul_acc_lhs to skip per-step RHS re-staging.
    h = h0_ref[0]                                      # (B, H)
    for t in range(S):
        gi = gi_buf[t]                                 # (B, 3H)
        gh = jnp.dot(h, whh, preferred_element_type=jnp.float32)   # (B, 3H)
        rz = jax.nn.sigmoid(gi[:, :2 * H] + gh[:, :2 * H])
        r = rz[:, :H]
        z = rz[:, H:]
        n = jnp.tanh(gi[:, 2 * H:] + r * (gh[:, 2 * H:] + bhn_b))
        h = (1.0 - z) * n + z * h
        y_buf[t] = h

        # Fused output projection: independent MXU work interleaved with the
        # dependent gh chain; only the last layer writes the lane-dense logits.
        @pl.when(is_last)
        def _(h=h, t=t):
            logits_ref[t] = (jnp.dot(h, wlin_ref[...],
                                     preferred_element_type=jnp.float32)
                             + blin_ref[...])

    hT_ref[0] = h


# ----------------------------- params & prep --------------------------------
def init_params(key, vocab, hidden, num_layers):
    """Raw params in PyTorch layout (same as nn.Embedding / nn.GRU / nn.Linear)."""
    params = {}
    keys = jax.random.split(key, 3 + num_layers)
    bound = 1.0 / np.sqrt(hidden)

    emb = jax.random.normal(keys[0], (vocab, hidden), jnp.float32)
    emb = emb.at[0].set(0.0)                        # padding_idx=0
    params["embedding"] = emb

    for l in range(num_layers):
        k0, k1, k2, k3 = jax.random.split(keys[1 + l], 4)
        params[f"w_ih_{l}"] = jax.random.uniform(
            k0, (3 * hidden, hidden), jnp.float32, -bound, bound)
        params[f"w_hh_{l}"] = jax.random.uniform(
            k1, (3 * hidden, hidden), jnp.float32, -bound, bound)
        params[f"b_ih_{l}"] = jax.random.uniform(
            k2, (3 * hidden,), jnp.float32, -bound, bound)
        params[f"b_hh_{l}"] = jax.random.uniform(
            k3, (3 * hidden,), jnp.float32, -bound, bound)

    params["w_lin"] = jax.random.uniform(
        keys[-2], (vocab, hidden), jnp.float32, -bound, bound)
    params["b_lin"] = jax.random.uniform(
        keys[-1], (vocab,), jnp.float32, -bound, bound)
    return params


def prepare_params(params):
    """One-time prep: transpose weights, fold biases, pad the vocab dim."""
    H = HIDDEN
    wih_t = jnp.stack([params[f"w_ih_{l}"].T for l in range(NUM_LAYERS)])  # (L,H,3H)
    whh_t = jnp.stack([params[f"w_hh_{l}"].T for l in range(NUM_LAYERS)])  # (L,H,3H)

    bi_list, bhn_list = [], []
    for l in range(NUM_LAYERS):
        b_ih = params[f"b_ih_{l}"]
        b_hh = params[f"b_hh_{l}"]
        # r/z gate biases fold to a single add; n-gate input bias also goes into gi.
        bi_l = jnp.concatenate([b_ih[:2 * H] + b_hh[:2 * H], b_ih[2 * H:]])
        bi_list.append(bi_l.reshape(1, 3 * H))
        bhn_list.append(b_hh[2 * H:].reshape(1, H))    # stays inside r*(gh_n+b_hn)
    bi = jnp.stack(bi_list)                            # (L, 1, 3H)
    bhn = jnp.stack(bhn_list)                          # (L, 1, H)

    # Embedding rows on a leading (untiled) axis -> cheap dynamic row indexing.
    emb3 = params["embedding"].reshape(VOCAB, 1, H)

    wlin_t = jnp.zeros((H, VPAD), jnp.float32).at[:, :VOCAB].set(params["w_lin"].T)
    blin = jnp.zeros((1, VPAD), jnp.float32).at[:, :VOCAB].set(params["b_lin"])

    return {"emb3": emb3, "wih_t": wih_t, "whh_t": whh_t,
            "bi": bi, "bhn": bhn, "wlin_t": wlin_t, "blin": blin}


# ------------------------------- forward -------------------------------------
@jax.jit
def model_forward(prepared, tokens, hidden_state):
    """tokens: (S, B) int32; hidden_state: (L, B, H). Returns (logits, h_n)."""
    S, B = tokens.shape
    H, L, VP = HIDDEN, NUM_LAYERS, VPAD

    grid_spec = pltpu.PrefetchScalarGridSpec(
        num_scalar_prefetch=1,                 # tokens -> SMEM
        grid=(L,),                             # one grid step per GRU layer
        in_specs=[
            pl.BlockSpec((VOCAB, 1, H), lambda l, tok: (0, 0, 0)),   # emb (once)
            pl.BlockSpec((1, B, H), lambda l, tok: (l, 0, 0)),       # h0[l]
            pl.BlockSpec((1, H, 3 * H), lambda l, tok: (l, 0, 0)),   # W_ih^T[l]
            pl.BlockSpec((1, H, 3 * H), lambda l, tok: (l, 0, 0)),   # W_hh^T[l]
            pl.BlockSpec((1, 1, 3 * H), lambda l, tok: (l, 0, 0)),   # bi[l]
            pl.BlockSpec((1, 1, H), lambda l, tok: (l, 0, 0)),       # bhn[l]
            pl.BlockSpec((H, VP), lambda l, tok: (0, 0)),            # W_lin^T
            pl.BlockSpec((1, VP), lambda l, tok: (0, 0)),            # b_lin
        ],
        out_specs=(
            pl.BlockSpec((S, B, VP), lambda l, tok: (0, 0, 0)),      # logits
            pl.BlockSpec((1, B, H), lambda l, tok: (l, 0, 0)),       # h_n[l]
        ),
        scratch_shapes=[pltpu.VMEM((S, B, H), jnp.float32),          # y_buf
                        pltpu.VMEM((S, B, 3 * H), jnp.float32)],     # gi_buf
    )

    logits_pad, h_n = pl.pallas_call(
        fused_gru_kernel,
        grid_spec=grid_spec,
        out_shape=(jax.ShapeDtypeStruct((S, B, VP), jnp.float32),
                   jax.ShapeDtypeStruct((L, B, H), jnp.float32)),
        compiler_params=pltpu.CompilerParams(
            dimension_semantics=("arbitrary",)),     # layers are sequential
        cost_estimate=pl.CostEstimate(flops=30_000_000,
                                      transcendentals=56_000,
                                      bytes_accessed=1_800_000),
    )(tokens, prepared["emb3"], hidden_state,
      prepared["wih_t"], prepared["whh_t"], prepared["bi"], prepared["bhn"],
      prepared["wlin_t"], prepared["blin"])

    return logits_pad[..., :VOCAB], h_n


# ----------------------------- pure-JAX reference ---------------------------
def gru_layer_ref(x, h0, w_ih, w_hh, b_ih, b_hh):
    H = h0.shape[-1]

    def step(h, x_t):
        gi = x_t @ w_ih.T + b_ih
        gh = h @ w_hh.T + b_hh
        r = jax.nn.sigmoid(gi[:, :H] + gh[:, :H])
        z = jax.nn.sigmoid(gi[:, H:2 * H] + gh[:, H:2 * H])
        n = jnp.tanh(gi[:, 2 * H:] + r * gh[:, 2 * H:])
        h_new = (1.0 - z) * n + z * h
        return h_new, h_new

    hT, ys = jax.lax.scan(step, h0, x)
    return ys, hT


def model_forward_ref(params, tokens, hidden_state):
    x = jnp.take(params["embedding"], tokens, axis=0)
    h_finals = []
    for l in range(NUM_LAYERS):
        x, hT = gru_layer_ref(
            x, hidden_state[l],
            params[f"w_ih_{l}"], params[f"w_hh_{l}"],
            params[f"b_ih_{l}"], params[f"b_hh_{l}"])
        h_finals.append(hT)
    logits = x @ params["w_lin"].T + params["b_lin"]
    return logits, jnp.stack(h_finals)


# --------------------------------- main --------------------------------------
if __name__ == "__main__":
    key = jax.random.PRNGKey(0)
    k_params, k_tok, k_h = jax.random.split(key, 3)

    params = init_params(k_params, VOCAB, HIDDEN, NUM_LAYERS)
    prepared = prepare_params(params)
    tokens = jax.random.randint(k_tok, (SEQ, BATCH), 0, VOCAB, dtype=jnp.int32)
    h0 = jax.random.normal(k_h, (NUM_LAYERS, BATCH, HIDDEN), jnp.float32)

    logits, h_n = model_forward(prepared, tokens, h0)
    jax.block_until_ready((logits, h_n))

    logits_ref, h_n_ref = model_forward_ref(params, tokens, h0)
    np.testing.assert_allclose(np.asarray(logits), np.asarray(logits_ref),
                               rtol=1e-4, atol=1e-4)
    np.testing.assert_allclose(np.asarray(h_n), np.asarray(h_n_ref),
                               rtol=1e-4, atol=1e-4)

    assert logits.shape == (SEQ, BATCH, VOCAB)
    assert h_n.shape == (NUM_LAYERS, BATCH, HIDDEN)
    print("KERNEL_OK")
</pallas_src>

<mosaic_0001>
module attributes {stable_mosaic.version = 11 : i64} {
  func.func @fused_gru_kernel(%arg0: i32, %arg1: memref<6x8xi32, #tpu.memory_space<smem>>, %arg2: memref<96x1x128xf32, #tpu.memory_space<vmem>>, %arg3: memref<1x8x128xf32, #tpu.memory_space<vmem>>, %arg4: memref<1x128x384xf32, #tpu.memory_space<vmem>>, %arg5: memref<1x128x384xf32, #tpu.memory_space<vmem>>, %arg6: memref<1x1x384xf32, #tpu.memory_space<vmem>>, %arg7: memref<1x1x128xf32, #tpu.memory_space<vmem>>, %arg8: memref<128x128xf32, #tpu.memory_space<vmem>>, %arg9: memref<1x128xf32, #tpu.memory_space<vmem>>, %arg10: memref<6x8x128xf32, #tpu.memory_space<vmem>>, %arg11: memref<1x8x128xf32, #tpu.memory_space<vmem>>, %arg12: memref<6x8x128xf32, #tpu.memory_space<vmem>>, %arg13: memref<6x8x384xf32, #tpu.memory_space<vmem>>) attributes {dimension_semantics = [#tpu.dimension_semantics<arbitrary>], iteration_bounds = array<i64: 3>, scalar_prefetch = 1 : i64, scratch_operands = 2 : i64, tpu.core_type = #tpu.core_type<tc>, window_params = [{pipeline_mode = #tpu.pipeline_mode<synchronous>, transform_indices = @transform_0, window_bounds = array<i64: 96, 1, 128>}, {transform_indices = @transform_1, window_bounds = array<i64: 1, 8, 128>}, {transform_indices = @transform_2, window_bounds = array<i64: 1, 128, 384>}, {transform_indices = @transform_3, window_bounds = array<i64: 1, 128, 384>}, {transform_indices = @transform_4, window_bounds = array<i64: 1, 1, 384>}, {transform_indices = @transform_5, window_bounds = array<i64: 1, 1, 128>}, {pipeline_mode = #tpu.pipeline_mode<synchronous>, transform_indices = @transform_6, window_bounds = array<i64: 128, 128>}, {pipeline_mode = #tpu.pipeline_mode<synchronous>, transform_indices = @transform_7, window_bounds = array<i64: 1, 128>}, {pipeline_mode = #tpu.pipeline_mode<synchronous>, transform_indices = @transform_8, window_bounds = array<i64: 6, 8, 128>}, {transform_indices = @transform_9, window_bounds = array<i64: 1, 8, 128>}]} {
    %c2_i32 = arith.constant 2 : i32
    %0 = arith.cmpi eq, %arg0, %c2_i32 : i32
    %c0_i32 = arith.constant 0 : i32
    %1 = arith.cmpi eq, %arg0, %c0_i32 : i32
    %2 = arith.extui %1 : i1 to i32
    %c0_i32_0 = arith.constant 0 : i32
    %3 = arith.cmpi ne, %2, %c0_i32_0 : i32
    scf.if %3 {
      %c0_79 = arith.constant 0 : index
      %c0_80 = arith.constant 0 : index
      %200 = memref.load %arg1[%c0_79, %c0_80] : memref<6x8xi32, #tpu.memory_space<smem>>
      %201 = arith.index_cast %200 : i32 to index
      %c0_81 = arith.constant 0 : index
      %c0_82 = arith.constant 0 : index
      %202 = vector.load %arg2[%201, %c0_81, %c0_82] : memref<96x1x128xf32, #tpu.memory_space<vmem>>, vector<1x1x128xf32>
      %203 = vector.shape_cast %202 : vector<1x1x128xf32> to vector<1x128xf32>
      %c0_83 = arith.constant 0 : index
      %c0_84 = arith.constant 0 : index
      %c0_85 = arith.constant 0 : index
      %204 = vector.load %arg12[%c0_83, %c0_84, %c0_85] : memref<6x8x128xf32, #tpu.memory_space<vmem>>, vector<1x1x128xf32>
      %205 = vector.shape_cast %204 : vector<1x1x128xf32> to vector<1x128xf32>
      %206 = vector.shape_cast %203 : vector<1x128xf32> to vector<1x1x128xf32>
      tpu.vector_store %arg12[%c0_83, %c0_84, %c0_85], %206 {strides = array<i32>} : memref<6x8x128xf32, #tpu.memory_space<vmem>>, vector<1x1x128xf32>,
      %c0_86 = arith.constant 0 : index
      %c1_87 = arith.constant 1 : index
      %207 = memref.load %arg1[%c0_86, %c1_87] : memref<6x8xi32, #tpu.memory_space<smem>>
      %208 = arith.index_cast %207 : i32 to index
      %c0_88 = arith.constant 0 : index
      %c0_89 = arith.constant 0 : index
      %209 = vector.load %arg2[%208, %c0_88, %c0_89] : memref<96x1x128xf32, #tpu.memory_space<vmem>>, vector<1x1x128xf32>
      %210 = vector.shape_cast %209 : vector<1x1x128xf32> to vector<1x128xf32>
      %c0_90 = arith.constant 0 : index
      %c1_91 = arith.constant 1 : index
      %c0_92 = arith.constant 0 : index
      %211 = vector.load %arg12[%c0_90, %c1_91, %c0_92] : memref<6x8x128xf32, #tpu.memory_space<vmem>>, vector<1x1x128xf32>
      %212 = vector.shape_cast %211 : vector<1x1x128xf32> to vector<1x128xf32>
      %213 = vector.shape_cast %210 : vector<1x128xf32> to vector<1x1x128xf32>
      tpu.vector_store %arg12[%c0_90, %c1_91, %c0_92], %213 {strides = array<i32>} : memref<6x8x128xf32, #tpu.memory_space<vmem>>, vector<1x1x128xf32>,
      %c0_93 = arith.constant 0 : index
      %c2_94 = arith.constant 2 : index
      %214 = memref.load %arg1[%c0_93, %c2_94] : memref<6x8xi32, #tpu.memory_space<smem>>
      %215 = arith.index_cast %214 : i32 to index
      %c0_95 = arith.constant 0 : index
      %c0_96 = arith.constant 0 : index
      %216 = vector.load %arg2[%215, %c0_95, %c0_96] : memref<96x1x128xf32, #tpu.memory_space<vmem>>, vector<1x1x128xf32>
      %217 = vector.shape_cast %216 : vector<1x1x128xf32> to vector<1x128xf32>
      %c0_97 = arith.constant 0 : index
      %c2_98 = arith.constant 2 : index
      %c0_99 = arith.constant 0 : index
      %218 = vector.load %arg12[%c0_97, %c2_98, %c0_99] : memref<6x8x128xf32, #tpu.memory_space<vmem>>, vector<1x1x128xf32>
      %219 = vector.shape_cast %218 : vector<1x1x128xf32> to vector<1x128xf32>
      %220 = vector.shape_cast %217 : vector<1x128xf32> to vector<1x1x128xf32>
      tpu.vector_store %arg12[%c0_97, %c2_98, %c0_99], %220 {strides = array<i32>} : memref<6x8x128xf32, #tpu.memory_space<vmem>>, vector<1x1x128xf32>,
      %c0_100 = arith.constant 0 : index
      %c3_101 = arith.constant 3 : index
      %221 = memref.load %arg1[%c0_100, %c3_101] : memref<6x8xi32, #tpu.memory_space<smem>>
      %222 = arith.index_cast %221 : i32 to index
      %c0_102 = arith.constant 0 : index
      %c0_103 = arith.constant 0 : index
      %223 = vector.load %arg2[%222, %c0_102, %c0_103] : memref<96x1x128xf32, #tpu.memory_space<vmem>>, vector<1x1x128xf32>
      %224 = vector.shape_cast %223 : vector<1x1x128xf32> to vector<1x128xf32>
      %c0_104 = arith.constant 0 : index
      %c3_105 = arith.constant 3 : index
      %c0_106 = arith.constant 0 : index
      %225 = vector.load %arg12[%c0_104, %c3_105, %c0_106] : memref<6x8x128xf32, #tpu.memory_space<vmem>>, vector<1x1x128xf32>
      %226 = vector.shape_cast %225 : vector<1x1x128xf32> to vector<1x128xf32>
      %227 = vector.shape_cast %224 : vector<1x128xf32> to vector<1x1x128xf32>
      tpu.vector_store %arg12[%c0_104, %c3_105, %c0_106], %227 {strides = array<i32>} : memref<6x8x128xf32, #tpu.memory_space<vmem>>, vector<1x1x128xf32>,
      %c0_107 = arith.constant 0 : index
      %c4_108 = arith.constant 4 : index
      %228 = memref.load %arg1[%c0_107, %c4_108] : memref<6x8xi32, #tpu.memory_space<smem>>
      %229 = arith.index_cast %228 : i32 to index
      %c0_109 = arith.constant 0 : index
      %c0_110 = arith.constant 0 : index
      %230 = vector.load %arg2[%229, %c0_109, %c0_110] : memref<96x1x128xf32, #tpu.memory_space<vmem>>, vector<1x1x128xf32>
      %231 = vector.shape_cast %230 : vector<1x1x128xf32> to vector<1x128xf32>
      %c0_111 = arith.constant 0 : index
      %c4_112 = arith.constant 4 : index
      %c0_113 = arith.constant 0 : index
      %232 = vector.load %arg12[%c0_111, %c4_112, %c0_113] : memref<6x8x128xf32, #tpu.memory_space<vmem>>, vector<1x1x128xf32>
      %233 = vector.shape_cast %232 : vector<1x1x128xf32> to vector<1x128xf32>
      %234 = vector.shape_cast %231 : vector<1x128xf32> to vector<1x1x128xf32>
      tpu.vector_store %arg12[%c0_111, %c4_112, %c0_113], %234 {strides = array<i32>} : memref<6x8x128xf32, #tpu.memory_space<vmem>>, vector<1x1x128xf32>,
      %c0_114 = arith.constant 0 : index
      %c5_115 = arith.constant 5 : index
      %235 = memref.load %arg1[%c0_114, %c5_115] : memref<6x8xi32, #tpu.memory_space<smem>>
      %236 = arith.index_cast %235 : i32 to index
      %c0_116 = arith.constant 0 : index
      %c0_117 = arith.constant 0 : index
      %237 = vector.load %arg2[%236, %c0_116, %c0_117] : memref<96x1x128xf32, #tpu.memory_space<vmem>>, vector<1x1x128xf32>
      %238 = vector.shape_cast %237 : vector<1x1x128xf32> to vector<1x128xf32>
      %c0_118 = arith.constant 0 : index
      %c5_119 = arith.constant 5 : index
      %c0_120 = arith.constant 0 : index
      %239 = vector.load %arg12[%c0_118, %c5_119, %c0_120] : memref<6x8x128xf32, #tpu.memory_space<vmem>>, vector<1x1x128xf32>
      %240 = vector.shape_cast %239 : vector<1x1x128xf32> to vector<1x128xf32>
      %241 = vector.shape_cast %238 : vector<1x128xf32> to vector<1x1x128xf32>
      tpu.vector_store %arg12[%c0_118, %c5_119, %c0_120], %241 {strides = array<i32>} : memref<6x8x128xf32, #tpu.memory_space<vmem>>, vector<1x1x128xf32>,
      %c0_121 = arith.constant 0 : index
      %c6 = arith.constant 6 : index
      %242 = memref.load %arg1[%c0_121, %c6] : memref<6x8xi32, #tpu.memory_space<smem>>
      %243 = arith.index_cast %242 : i32 to index
      %c0_122 = arith.constant 0 : index
      %c0_123 = arith.constant 0 : index
      %244 = vector.load %arg2[%243, %c0_122, %c0_123] : memref<96x1x128xf32, #tpu.memory_space<vmem>>, vector<1x1x128xf32>
      %245 = vector.shape_cast %244 : vector<1x1x128xf32> to vector<1x128xf32>
      %c0_124 = arith.constant 0 : index
      %c6_125 = arith.constant 6 : index
      %c0_126 = arith.constant 0 : index
      %246 = vector.load %arg12[%c0_124, %c6_125, %c0_126] : memref<6x8x128xf32, #tpu.memory_space<vmem>>, vector<1x1x128xf32>
      %247 = vector.shape_cast %246 : vector<1x1x128xf32> to vector<1x128xf32>
      %248 = vector.shape_cast %245 : vector<1x128xf32> to vector<1x1x128xf32>
      tpu.vector_store %arg12[%c0_124, %c6_125, %c0_126], %248 {strides = array<i32>} : memref<6x8x128xf32, #tpu.memory_space<vmem>>, vector<1x1x128xf32>,
      %c0_127 = arith.constant 0 : index
      %c7 = arith.constant 7 : index
      %249 = memref.load %arg1[%c0_127, %c7] : memref<6x8xi32, #tpu.memory_space<smem>>
      %250 = arith.index_cast %249 : i32 to index
      %c0_128 = arith.constant 0 : index
      %c0_129 = arith.constant 0 : index
      %251 = vector.load %arg2[%250, %c0_128, %c0_129] : memref<96x1x128xf32, #tpu.memory_space<vmem>>, vector<1x1x128xf32>
      %252 = vector.shape_cast %251 : vector<1x1x128xf32> to vector<1x128xf32>
      %c0_130 = arith.constant 0 : index
      %c7_131 = arith.constant 7 : index
      %c0_132 = arith.constant 0 : index
      %253 = vector.load %arg12[%c0_130, %c7_131, %c0_132] : memref<6x8x128xf32, #tpu.memory_space<vmem>>, vector<1x1x128xf32>
      %254 = vector.shape_cast %253 : vector<1x1x128xf32> to vector<1x128xf32>
      %255 = vector.shape_cast %252 : vector<1x128xf32> to vector<1x1x128xf32>
      tpu.vector_store %arg12[%c0_130, %c7_131, %c0_132], %255 {strides = array<i32>} : memref<6x8x128xf32, #tpu.memory_space<vmem>>, vector<1x1x128xf32>,
      %c1_133 = arith.constant 1 : index
      %c0_134 = arith.constant 0 : index
      %256 = memref.load %arg1[%c1_133, %c0_134] : memref<6x8xi32, #tpu.memory_space<smem>>
      %257 = arith.index_cast %256 : i32 to index
      %c0_135 = arith.constant 0 : index
      %c0_136 = arith.constant 0 : index
      %258 = vector.load %arg2[%257, %c0_135, %c0_136] : memref<96x1x128xf32, #tpu.memory_space<vmem>>, vector<1x1x128xf32>
      %259 = vector.shape_cast %258 : vector<1x1x128xf32> to vector<1x128xf32>
      %c1_137 = arith.constant 1 : index
      %c0_138 = arith.constant 0 : index
      %c0_139 = arith.constant 0 : index
      %260 = vector.load %arg12[%c1_137, %c0_138, %c0_139] : memref<6x8x128xf32, #tpu.memory_space<vmem>>, vector<1x1x128xf32>
      %261 = vector.shape_cast %260 : vector<1x1x128xf32> to vector<1x128xf32>
      %262 = vector.shape_cast %259 : vector<1x128xf32> to vector<1x1x128xf32>
      tpu.vector_store %arg12[%c1_137, %c0_138, %c0_139], %262 {strides = array<i32>} : memref<6x8x128xf32, #tpu.memory_space<vmem>>, vector<1x1x128xf32>,
      %c1_140 = arith.constant 1 : index
      %c1_141 = arith.constant 1 : index
      %263 = memref.load %arg1[%c1_140, %c1_141] : memref<6x8xi32, #tpu.memory_space<smem>>
      %264 = arith.index_cast %263 : i32 to index
      %c0_142 = arith.constant 0 : index
      %c0_143 = arith.constant 0 : index
      %265 = vector.load %arg2[%264, %c0_142, %c0_143] : memref<96x1x128xf32, #tpu.memory_space<vmem>>, vector<1x1x128xf32>
      %266 = vector.shape_cast %265 : vector<1x1x128xf32> to vector<1x128xf32>
      %c1_144 = arith.constant 1 : index
      %c1_145 = arith.constant 1 : index
      %c0_146 = arith.constant 0 : index
      %267 = vector.load %arg12[%c1_144, %c1_145, %c0_146] : memref<6x8x128xf32, #tpu.memory_space<vmem>>, vector<1x1x128xf32>
      %268 = vector.shape_cast %267 : vector<1x1x128xf32> to vector<1x128xf32>
      %269 = vector.shape_cast %266 : vector<1x128xf32> to vector<1x1x128xf32>
      tpu.vector_store %arg12[%c1_144, %c1_145, %c0_146], %269 {strides = array<i32>} : memref<6x8x128xf32, #tpu.memory_space<vmem>>, vector<1x1x128xf32>,
      %c1_147 = arith.constant 1 : index
      %c2_148 = arith.constant 2 : index
      %270 = memref.load %arg1[%c1_147, %c2_148] : memref<6x8xi32, #tpu.memory_space<smem>>
      %271 = arith.index_cast %270 : i32 to index
      %c0_149 = arith.constant 0 : index
      %c0_150 = arith.constant 0 : index
      %272 = vector.load %arg2[%271, %c0_149, %c0_150] : memref<96x1x128xf32, #tpu.memory_space<vmem>>, vector<1x1x128xf32>
      %273 = vector.shape_cast %272 : vector<1x1x128xf32> to vector<1x128xf32>
      %c1_151 = arith.constant 1 : index
      %c2_152 = arith.constant 2 : index
      %c0_153 = arith.constant 0 : index
      %274 = vector.load %arg12[%c1_151, %c2_152, %c0_153] : memref<6x8x128xf32, #tpu.memory_space<vmem>>, vector<1x1x128xf32>
      %275 = vector.shape_cast %274 : vector<1x1x128xf32> to vector<1x128xf32>
      %276 = vector.shape_cast %273 : vector<1x128xf32> to vector<1x1x128xf32>
      tpu.vector_store %arg12[%c1_151, %c2_152, %c0_153], %276 {strides = array<i32>} : memref<6x8x128xf32, #tpu.memory_space<vmem>>, vector<1x1x128xf32>,
      %c1_154 = arith.constant 1 : index
      %c3_155 = arith.constant 3 : index
      %277 = memref.load %arg1[%c1_154, %c3_155] : memref<6x8xi32, #tpu.memory_space<smem>>
      %278 = arith.index_cast %277 : i32 to index
      %c0_156 = arith.constant 0 : index
      %c0_157 = arith.constant 0 : index
      %279 = vector.load %arg2[%278, %c0_156, %c0_157] : memref<96x1x128xf32, #tpu.memory_space<vmem>>, vector<1x1x128xf32>
      %280 = vector.shape_cast %279 : vector<1x1x128xf32> to vector<1x128xf32>
      %c1_158 = arith.constant 1 : index
      %c3_159 = arith.constant 3 : index
      %c0_160 = arith.constant 0 : index
      %281 = vector.load %arg12[%c1_158, %c3_159, %c0_160] : memref<6x8x128xf32, #tpu.memory_space<vmem>>, vector<1x1x128xf32>
      %282 = vector.shape_cast %281 : vector<1x1x128xf32> to vector<1x128xf32>
      %283 = vector.shape_cast %280 : vector<1x128xf32> to vector<1x1x128xf32>
      tpu.vector_store %arg12[%c1_158, %c3_159, %c0_160], %283 {strides = array<i32>} : memref<6x8x128xf32, #tpu.memory_space<vmem>>, vector<1x1x128xf32>,
      %c1_161 = arith.constant 1 : index
      %c4_162 = arith.constant 4 : index
      %284 = memref.load %arg1[%c1_161, %c4_162] : memref<6x8xi32, #tpu.memory_space<smem>>
      %285 = arith.index_cast %284 : i32 to index
      %c0_163 = arith.constant 0 : index
      %c0_164 = arith.constant 0 : index
      %286 = vector.load %arg2[%285, %c0_163, %c0_164] : memref<96x1x128xf32, #tpu.memory_space<vmem>>, vector<1x1x128xf32>
      %287 = vector.shape_cast %286 : vector<1x1x128xf32> to vector<1x128xf32>
      %c1_165 = arith.constant 1 : index
      %c4_166 = arith.constant 4 : index
      %c0_167 = arith.constant 0 : index
      %288 = vector.load %arg12[%c1_165, %c4_166, %c0_167] : memref<6x8x128xf32, #tpu.memory_space<vmem>>, vector<1x1x128xf32>
      %289 = vector.shape_cast %288 : vector<1x1x128xf32> to vector<1x128xf32>
      %290 = vector.shape_cast %287 : vector<1x128xf32> to vector<1x1x128xf32>
      tpu.vector_store %arg12[%c1_165, %c4_166, %c0_167], %290 {strides = array<i32>} : memref<6x8x128xf32, #tpu.memory_space<vmem>>, vector<1x1x128xf32>,
      %c1_168 = arith.constant 1 : index
      %c5_169 = arith.constant 5 : index
      %291 = memref.load %arg1[%c1_168, %c5_169] : memref<6x8xi32, #tpu.memory_space<smem>>
      %292 = arith.index_cast %291 : i32 to index
      %c0_170 = arith.constant 0 : index
      %c0_171 = arith.constant 0 : index
      %293 = vector.load %arg2[%292, %c0_170, %c0_171] : memref<96x1x128xf32, #tpu.memory_space<vmem>>, vector<1x1x128xf32>
      %294 = vector.shape_cast %293 : vector<1x1x128xf32> to vector<1x128xf32>
      %c1_172 = arith.constant 1 : index
      %c5_173 = arith.constant 5 : index
      %c0_174 = arith.constant 0 : index
      %295 = vector.load %arg12[%c1_172, %c5_173, %c0_174] : memref<6x8x128xf32, #tpu.memory_space<vmem>>, vector<1x1x128xf32>
      %296 = vector.shape_cast %295 : vector<1x1x128xf32> to vector<1x128xf32>
      %297 = vector.shape_cast %294 : vector<1x128xf32> to vector<1x1x128xf32>
      tpu.vector_store %arg12[%c1_172, %c5_173, %c0_174], %297 {strides = array<i32>} : memref<6x8x128xf32, #tpu.memory_space<vmem>>, vector<1x1x128xf32>,
      %c1_175 = arith.constant 1 : index
      %c6_176 = arith.constant 6 : index
      %298 = memref.load %arg1[%c1_175, %c6_176] : memref<6x8xi32, #tpu.memory_space<smem>>
      %299 = arith.index_cast %298 : i32 to index
      %c0_177 = arith.constant 0 : index
      %c0_178 = arith.constant 0 : index
      %300 = vector.load %arg2[%299, %c0_177, %c0_178] : memref<96x1x128xf32, #tpu.memory_space<vmem>>, vector<1x1x128xf32>
      %301 = vector.shape_cast %300 : vector<1x1x128xf32> to vector<1x128xf32>
      %c1_179 = arith.constant 1 : index
      %c6_180 = arith.constant 6 : index
      %c0_181 = arith.constant 0 : index
      %302 = vector.load %arg12[%c1_179, %c6_180, %c0_181] : memref<6x8x128xf32, #tpu.memory_space<vmem>>, vector<1x1x128xf32>
      %303 = vector.shape_cast %302 : vector<1x1x128xf32> to vector<1x128xf32>
      %304 = vector.shape_cast %301 : vector<1x128xf32> to vector<1x1x128xf32>
      tpu.vector_store %arg12[%c1_179, %c6_180, %c0_181], %304 {strides = array<i32>} : memref<6x8x128xf32, #tpu.memory_space<vmem>>, vector<1x1x128xf32>,
      %c1_182 = arith.constant 1 : index
      %c7_183 = arith.constant 7 : index
      %305 = memref.load %arg1[%c1_182, %c7_183] : memref<6x8xi32, #tpu.memory_space<smem>>
      %306 = arith.index_cast %305 : i32 to index
      %c0_184 = arith.constant 0 : index
      %c0_185 = arith.constant 0 : index
      %307 = vector.load %arg2[%306, %c0_184, %c0_185] : memref<96x1x128xf32, #tpu.memory_space<vmem>>, vector<1x1x128xf32>
      %308 = vector.shape_cast %307 : vector<1x1x128xf32> to vector<1x128xf32>
      %c1_186 = arith.constant 1 : index
      %c7_187 = arith.constant 7 : index
      %c0_188 = arith.constant 0 : index
      %309 = vector.load %arg12[%c1_186, %c7_187, %c0_188] : memref<6x8x128xf32, #tpu.memory_space<vmem>>, vector<1x1x128xf32>
      %310 = vector.shape_cast %309 : vector<1x1x128xf32> to vector<1x128xf32>
      %311 = vector.shape_cast %308 : vector<1x128xf32> to vector<1x1x128xf32>
      tpu.vector_store %arg12[%c1_186, %c7_187, %c0_188], %311 {strides = array<i32>} : memref<6x8x128xf32, #tpu.memory_space<vmem>>, vector<1x1x128xf32>,
      %c2_189 = arith.constant 2 : index
      %c0_190 = arith.constant 0 : index
      %312 = memref.load %arg1[%c2_189, %c0_190] : memref<6x8xi32, #tpu.memory_space<smem>>
      %313 = arith.index_cast %312 : i32 to index
      %c0_191 = arith.constant 0 : index
      %c0_192 = arith.constant 0 : index
      %314 = vector.load %arg2[%313, %c0_191, %c0_192] : memref<96x1x128xf32, #tpu.memory_space<vmem>>, vector<1x1x128xf32>
      %315 = vector.shape_cast %314 : vector<1x1x128xf32> to vector<1x128xf32>
      %c2_193 = arith.constant 2 : index
      %c0_194 = arith.constant 0 : index
      %c0_195 = arith.constant 0 : index
      %316 = vector.load %arg12[%c2_193, %c0_194, %c0_195] : memref<6x8x128xf32, #tpu.memory_space<vmem>>, vector<1x1x128xf32>
      %317 = vector.shape_cast %316 : vector<1x1x128xf32> to vector<1x128xf32>
      %318 = vector.shape_cast %315 : vector<1x128xf32> to vector<1x1x128xf32>
      tpu.vector_store %arg12[%c2_193, %c0_194, %c0_195], %318 {strides = array<i32>} : memref<6x8x128xf32, #tpu.memory_space<vmem>>, vector<1x1x128xf32>,
      %c2_196 = arith.constant 2 : index
      %c1_197 = arith.constant 1 : index
      %319 = memref.load %arg1[%c2_196, %c1_197] : memref<6x8xi32, #tpu.memory_space<smem>>
      %320 = arith.index_cast %319 : i32 to index
      %c0_198 = arith.constant 0 : index
      %c0_199 = arith.constant 0 : index
      %321 = vector.load %arg2[%320, %c0_198, %c0_199] : memref<96x1x128xf32, #tpu.memory_space<vmem>>, vector<1x1x128xf32>
      %322 = vector.shape_cast %321 : vector<1x1x128xf32> to vector<1x128xf32>
      %c2_200 = arith.constant 2 : index
      %c1_201 = arith.constant 1 : index
      %c0_202 = arith.constant 0 : index
      %323 = vector.load %arg12[%c2_200, %c1_201, %c0_202] : memref<6x8x128xf32, #tpu.memory_space<vmem>>, vector<1x1x128xf32>
      %324 = vector.shape_cast %323 : vector<1x1x128xf32> to vector<1x128xf32>
      %325 = vector.shape_cast %322 : vector<1x128xf32> to vector<1x1x128xf32>
      tpu.vector_store %arg12[%c2_200, %c1_201, %c0_202], %325 {strides = array<i32>} : memref<6x8x128xf32, #tpu.memory_space<vmem>>, vector<1x1x128xf32>,
      %c2_203 = arith.constant 2 : index
      %c2_204 = arith.constant 2 : index
      %326 = memref.load %arg1[%c2_203, %c2_204] : memref<6x8xi32, #tpu.memory_space<smem>>
      %327 = arith.index_cast %326 : i32 to index
      %c0_205 = arith.constant 0 : index
      %c0_206 = arith.constant 0 : index
      %328 = vector.load %arg2[%327, %c0_205, %c0_206] : memref<96x1x128xf32, #tpu.memory_space<vmem>>, vector<1x1x128xf32>
      %329 = vector.shape_cast %328 : vector<1x1x128xf32> to vector<1x128xf32>
      %c2_207 = arith.constant 2 : index
      %c2_208 = arith.constant 2 : index
      %c0_209 = arith.constant 0 : index
      %330 = vector.load %arg12[%c2_207, %c2_208, %c0_209] : memref<6x8x128xf32, #tpu.memory_space<vmem>>, vector<1x1x128xf32>
      %331 = vector.shape_cast %330 : vector<1x1x128xf32> to vector<1x128xf32>
      %332 = vector.shape_cast %329 : vector<1x128xf32> to vector<1x1x128xf32>
      tpu.vector_store %arg12[%c2_207, %c2_208, %c0_209], %332 {strides = array<i32>} : memref<6x8x128xf32, #tpu.memory_space<vmem>>, vector<1x1x128xf32>,
      %c2_210 = arith.constant 2 : index
      %c3_211 = arith.constant 3 : index
      %333 = memref.load %arg1[%c2_210, %c3_211] : memref<6x8xi32, #tpu.memory_space<smem>>
      %334 = arith.index_cast %333 : i32 to index
      %c0_212 = arith.constant 0 : index
      %c0_213 = arith.constant 0 : index
      %335 = vector.load %arg2[%334, %c0_212, %c0_213] : memref<96x1x128xf32, #tpu.memory_space<vmem>>, vector<1x1x128xf32>
      %336 = vector.shape_cast %335 : vector<1x1x128xf32> to vector<1x128xf32>
      %c2_214 = arith.constant 2 : index
      %c3_215 = arith.constant 3 : index
      %c0_216 = arith.constant 0 : index
      %337 = vector.load %arg12[%c2_214, %c3_215, %c0_216] : memref<6x8x128xf32, #tpu.memory_space<vmem>>, vector<1x1x128xf32>
      %338 = vector.shape_cast %337 : vector<1x1x128xf32> to vector<1x128xf32>
      %339 = vector.shape_cast %336 : vector<1x128xf32> to vector<1x1x128xf32>
      tpu.vector_store %arg12[%c2_214, %c3_215, %c0_216], %339 {strides = array<i32>} : memref<6x8x128xf32, #tpu.memory_space<vmem>>, vector<1x1x128xf32>,
      %c2_217 = arith.constant 2 : index
      %c4_218 = arith.constant 4 : index
      %340 = memref.load %arg1[%c2_217, %c4_218] : memref<6x8xi32, #tpu.memory_space<smem>>
      %341 = arith.index_cast %340 : i32 to index
      %c0_219 = arith.constant 0 : index
      %c0_220 = arith.constant 0 : index
      %342 = vector.load %arg2[%341, %c0_219, %c0_220] : memref<96x1x128xf32, #tpu.memory_space<vmem>>, vector<1x1x128xf32>
      %343 = vector.shape_cast %342 : vector<1x1x128xf32> to vector<1x128xf32>
      %c2_221 = arith.constant 2 : index
      %c4_222 = arith.constant 4 : index
      %c0_223 = arith.constant 0 : index
      %344 = vector.load %arg12[%c2_221, %c4_222, %c0_223] : memref<6x8x128xf32, #tpu.memory_space<vmem>>, vector<1x1x128xf32>
      %345 = vector.shape_cast %344 : vector<1x1x128xf32> to vector<1x128xf32>
      %346 = vector.shape_cast %343 : vector<1x128xf32> to vector<1x1x128xf32>
      tpu.vector_store %arg12[%c2_221, %c4_222, %c0_223], %346 {strides = array<i32>} : memref<6x8x128xf32, #tpu.memory_space<vmem>>, vector<1x1x128xf32>,
      %c2_224 = arith.constant 2 : index
      %c5_225 = arith.constant 5 : index
      %347 = memref.load %arg1[%c2_224, %c5_225] : memref<6x8xi32, #tpu.memory_space<smem>>
      %348 = arith.index_cast %347 : i32 to index
      %c0_226 = arith.constant 0 : index
      %c0_227 = arith.constant 0 : index
      %349 = vector.load %arg2[%348, %c0_226, %c0_227] : memref<96x1x128xf32, #tpu.memory_space<vmem>>, vector<1x1x128xf32>
      %350 = vector.shape_cast %349 : vector<1x1x128xf32> to vector<1x128xf32>
      %c2_228 = arith.constant 2 : index
      %c5_229 = arith.constant 5 : index
      %c0_230 = arith.constant 0 : index
      %351 = vector.load %arg12[%c2_228, %c5_229, %c0_230] : memref<6x8x128xf32, #tpu.memory_space<vmem>>, vector<1x1x128xf32>
      %352 = vector.shape_cast %351 : vector<1x1x128xf32> to vector<1x128xf32>
      %353 = vector.shape_cast %350 : vector<1x128xf32> to vector<1x1x128xf32>
      tpu.vector_store %arg12[%c2_228, %c5_229, %c0_230], %353 {strides = array<i32>} : memref<6x8x128xf32, #tpu.memory_space<vmem>>, vector<1x1x128xf32>,
      %c2_231 = arith.constant 2 : index
      %c6_232 = arith.constant 6 : index
      %354 = memref.load %arg1[%c2_231, %c6_232] : memref<6x8xi32, #tpu.memory_space<smem>>
      %355 = arith.index_cast %354 : i32 to index
      %c0_233 = arith.constant 0 : index
      %c0_234 = arith.constant 0 : index
      %356 = vector.load %arg2[%355, %c0_233, %c0_234] : memref<96x1x128xf32, #tpu.memory_space<vmem>>, vector<1x1x128xf32>
      %357 = vector.shape_cast %356 : vector<1x1x128xf32> to vector<1x128xf32>
      %c2_235 = arith.constant 2 : index
      %c6_236 = arith.constant 6 : index
      %c0_237 = arith.constant 0 : index
      %358 = vector.load %arg12[%c2_235, %c6_236, %c0_237] : memref<6x8x128xf32, #tpu.memory_space<vmem>>, vector<1x1x128xf32>
      %359 = vector.shape_cast %358 : vector<1x1x128xf32> to vector<1x128xf32>
      %360 = vector.shape_cast %357 : vector<1x128xf32> to vector<1x1x128xf32>
      tpu.vector_store %arg12[%c2_235, %c6_236, %c0_237], %360 {strides = array<i32>} : memref<6x8x128xf32, #tpu.memory_space<vmem>>, vector<1x1x128xf32>,
      %c2_238 = arith.constant 2 : index
      %c7_239 = arith.constant 7 : index
      %361 = memref.load %arg1[%c2_238, %c7_239] : memref<6x8xi32, #tpu.memory_space<smem>>
      %362 = arith.index_cast %361 : i32 to index
      %c0_240 = arith.constant 0 : index
      %c0_241 = arith.constant 0 : index
      %363 = vector.load %arg2[%362, %c0_240, %c0_241] : memref<96x1x128xf32, #tpu.memory_space<vmem>>, vector<1x1x128xf32>
      %364 = vector.shape_cast %363 : vector<1x1x128xf32> to vector<1x128xf32>
      %c2_242 = arith.constant 2 : index
      %c7_243 = arith.constant 7 : index
      %c0_244 = arith.constant 0 : index
      %365 = vector.load %arg12[%c2_242, %c7_243, %c0_244] : memref<6x8x128xf32, #tpu.memory_space<vmem>>, vector<1x1x128xf32>
      %366 = vector.shape_cast %365 : vector<1x1x128xf32> to vector<1x128xf32>
      %367 = vector.shape_cast %364 : vector<1x128xf32> to vector<1x1x128xf32>
      tpu.vector_store %arg12[%c2_242, %c7_243, %c0_244], %367 {strides = array<i32>} : memref<6x8x128xf32, #tpu.memory_space<vmem>>, vector<1x1x128xf32>,
      %c3_245 = arith.constant 3 : index
      %c0_246 = arith.constant 0 : index
      %368 = memref.load %arg1[%c3_245, %c0_246] : memref<6x8xi32, #tpu.memory_space<smem>>
      %369 = arith.index_cast %368 : i32 to index
      %c0_247 = arith.constant 0 : index
      %c0_248 = arith.constant 0 : index
      %370 = vector.load %arg2[%369, %c0_247, %c0_248] : memref<96x1x128xf32, #tpu.memory_space<vmem>>, vector<1x1x128xf32>
      %371 = vector.shape_cast %370 : vector<1x1x128xf32> to vector<1x128xf32>
      %c3_249 = arith.constant 3 : index
      %c0_250 = arith.constant 0 : index
      %c0_251 = arith.constant 0 : index
      %372 = vector.load %arg12[%c3_249, %c0_250, %c0_251] : memref<6x8x128xf32, #tpu.memory_space<vmem>>, vector<1x1x128xf32>
      %373 = vector.shape_cast %372 : vector<1x1x128xf32> to vector<1x128xf32>
      %374 = vector.shape_cast %371 : vector<1x128xf32> to vector<1x1x128xf32>
      tpu.vector_store %arg12[%c3_249, %c0_250, %c0_251], %374 {strides = array<i32>} : memref<6x8x128xf32, #tpu.memory_space<vmem>>, vector<1x1x128xf32>,
      %c3_252 = arith.constant 3 : index
      %c1_253 = arith.constant 1 : index
      %375 = memref.load %arg1[%c3_252, %c1_253] : memref<6x8xi32, #tpu.memory_space<smem>>
      %376 = arith.index_cast %375 : i32 to index
      %c0_254 = arith.constant 0 : index
      %c0_255 = arith.constant 0 : index
      %377 = vector.load %arg2[%376, %c0_254, %c0_255] : memref<96x1x128xf32, #tpu.memory_space<vmem>>, vector<1x1x128xf32>
      %378 = vector.shape_cast %377 : vector<1x1x128xf32> to vector<1x128xf32>
      %c3_256 = arith.constant 3 : index
      %c1_257 = arith.constant 1 : index
      %c0_258 = arith.constant 0 : index
      %379 = vector.load %arg12[%c3_256, %c1_257, %c0_258] : memref<6x8x128xf32, #tpu.memory_space<vmem>>, vector<1x1x128xf32>
      %380 = vector.shape_cast %379 : vector<1x1x128xf32> to vector<1x128xf32>
      %381 = vector.shape_cast %378 : vector<1x128xf32> to vector<1x1x128xf32>
      tpu.vector_store %arg12[%c3_256, %c1_257, %c0_258], %381 {strides = array<i32>} : memref<6x8x128xf32, #tpu.memory_space<vmem>>, vector<1x1x128xf32>,
      %c3_259 = arith.constant 3 : index
      %c2_260 = arith.constant 2 : index
      %382 = memref.load %arg1[%c3_259, %c2_260] : memref<6x8xi32, #tpu.memory_space<smem>>
      %383 = arith.index_cast %382 : i32 to index
      %c0_261 = arith.constant 0 : index
      %c0_262 = arith.constant 0 : index
      %384 = vector.load %arg2[%383, %c0_261, %c0_262] : memref<96x1x128xf32, #tpu.memory_space<vmem>>, vector<1x1x128xf32>
      %385 = vector.shape_cast %384 : vector<1x1x128xf32> to vector<1x128xf32>
      %c3_263 = arith.constant 3 : index
      %c2_264 = arith.constant 2 : index
      %c0_265 = arith.constant 0 : index
      %386 = vector.load %arg12[%c3_263, %c2_264, %c0_265] : memref<6x8x128xf32, #tpu.memory_space<vmem>>, vector<1x1x128xf32>
      %387 = vector.shape_cast %386 : vector<1x1x128xf32> to vector<1x128xf32>
      %388 = vector.shape_cast %385 : vector<1x128xf32> to vector<1x1x128xf32>
      tpu.vector_store %arg12[%c3_263, %c2_264, %c0_265], %388 {strides = array<i32>} : memref<6x8x128xf32, #tpu.memory_space<vmem>>, vector<1x1x128xf32>,
      %c3_266 = arith.constant 3 : index
      %c3_267 = arith.constant 3 : index
      %389 = memref.load %arg1[%c3_266, %c3_267] : memref<6x8xi32, #tpu.memory_space<smem>>
      %390 = arith.index_cast %389 : i32 to index
      %c0_268 = arith.constant 0 : index
      %c0_269 = arith.constant 0 : index
      %391 = vector.load %arg2[%390, %c0_268, %c0_269] : memref<96x1x128xf32, #tpu.memory_space<vmem>>, vector<1x1x128xf32>
      %392 = vector.shape_cast %391 : vector<1x1x128xf32> to vector<1x128xf32>
      %c3_270 = arith.constant 3 : index
      %c3_271 = arith.constant 3 : index
      %c0_272 = arith.constant 0 : index
      %393 = vector.load %arg12[%c3_270, %c3_271, %c0_272] : memref<6x8x128xf32, #tpu.memory_space<vmem>>, vector<1x1x128xf32>
      %394 = vector.shape_cast %393 : vector<1x1x128xf32> to vector<1x128xf32>
      %395 = vector.shape_cast %392 : vector<1x128xf32> to vector<1x1x128xf32>
      tpu.vector_store %arg12[%c3_270, %c3_271, %c0_272], %395 {strides = array<i32>} : memref<6x8x128xf32, #tpu.memory_space<vmem>>, vector<1x1x128xf32>,
      %c3_273 = arith.constant 3 : index
      %c4_274 = arith.constant 4 : index
      %396 = memref.load %arg1[%c3_273, %c4_274] : memref<6x8xi32, #tpu.memory_space<smem>>
      %397 = arith.index_cast %396 : i32 to index
      %c0_275 = arith.constant 0 : index
      %c0_276 = arith.constant 0 : index
      %398 = vector.load %arg2[%397, %c0_275, %c0_276] : memref<96x1x128xf32, #tpu.memory_space<vmem>>, vector<1x1x128xf32>
      %399 = vector.shape_cast %398 : vector<1x1x128xf32> to vector<1x128xf32>
      %c3_277 = arith.constant 3 : index
      %c4_278 = arith.constant 4 : index
      %c0_279 = arith.constant 0 : index
      %400 = vector.load %arg12[%c3_277, %c4_278, %c0_279] : memref<6x8x128xf32, #tpu.memory_space<vmem>>, vector<1x1x128xf32>
      %401 = vector.shape_cast %400 : vector<1x1x128xf32> to vector<1x128xf32>
      %402 = vector.shape_cast %399 : vector<1x128xf32> to vector<1x1x128xf32>
      tpu.vector_store %arg12[%c3_277, %c4_278, %c0_279], %402 {strides = array<i32>} : memref<6x8x128xf32, #tpu.memory_space<vmem>>, vector<1x1x128xf32>,
      %c3_280 = arith.constant 3 : index
      %c5_281 = arith.constant 5 : index
      %403 = memref.load %arg1[%c3_280, %c5_281] : memref<6x8xi32, #tpu.memory_space<smem>>
      %404 = arith.index_cast %403 : i32 to index
      %c0_282 = arith.constant 0 : index
      %c0_283 = arith.constant 0 : index
      %405 = vector.load %arg2[%404, %c0_282, %c0_283] : memref<96x1x128xf32, #tpu.memory_space<vmem>>, vector<1x1x128xf32>
      %406 = vector.shape_cast %405 : vector<1x1x128xf32> to vector<1x128xf32>
      %c3_284 = arith.constant 3 : index
      %c5_285 = arith.constant 5 : index
      %c0_286 = arith.constant 0 : index
      %407 = vector.load %arg12[%c3_284, %c5_285, %c0_286] : memref<6x8x128xf32, #tpu.memory_space<vmem>>, vector<1x1x128xf32>
      %408 = vector.shape_cast %407 : vector<1x1x128xf32> to vector<1x128xf32>
      %409 = vector.shape_cast %406 : vector<1x128xf32> to vector<1x1x128xf32>
      tpu.vector_store %arg12[%c3_284, %c5_285, %c0_286], %409 {strides = array<i32>} : memref<6x8x128xf32, #tpu.memory_space<vmem>>, vector<1x1x128xf32>,
      %c3_287 = arith.constant 3 : index
      %c6_288 = arith.constant 6 : index
      %410 = memref.load %arg1[%c3_287, %c6_288] : memref<6x8xi32, #tpu.memory_space<smem>>
      %411 = arith.index_cast %410 : i32 to index
      %c0_289 = arith.constant 0 : index
      %c0_290 = arith.constant 0 : index
      %412 = vector.load %arg2[%411, %c0_289, %c0_290] : memref<96x1x128xf32, #tpu.memory_space<vmem>>, vector<1x1x128xf32>
      %413 = vector.shape_cast %412 : vector<1x1x128xf32> to vector<1x128xf32>
      %c3_291 = arith.constant 3 : index
      %c6_292 = arith.constant 6 : index
      %c0_293 = arith.constant 0 : index
      %414 = vector.load %arg12[%c3_291, %c6_292, %c0_293] : memref<6x8x128xf32, #tpu.memory_space<vmem>>, vector<1x1x128xf32>
      %415 = vector.shape_cast %414 : vector<1x1x128xf32> to vector<1x128xf32>
      %416 = vector.shape_cast %413 : vector<1x128xf32> to vector<1x1x128xf32>
      tpu.vector_store %arg12[%c3_291, %c6_292, %c0_293], %416 {strides = array<i32>} : memref<6x8x128xf32, #tpu.memory_space<vmem>>, vector<1x1x128xf32>,
      %c3_294 = arith.constant 3 : index
      %c7_295 = arith.constant 7 : index
      %417 = memref.load %arg1[%c3_294, %c7_295] : memref<6x8xi32, #tpu.memory_space<smem>>
      %418 = arith.index_cast %417 : i32 to index
      %c0_296 = arith.constant 0 : index
      %c0_297 = arith.constant 0 : index
      %419 = vector.load %arg2[%418, %c0_296, %c0_297] : memref<96x1x128xf32, #tpu.memory_space<vmem>>, vector<1x1x128xf32>
      %420 = vector.shape_cast %419 : vector<1x1x128xf32> to vector<1x128xf32>
      %c3_298 = arith.constant 3 : index
      %c7_299 = arith.constant 7 : index
      %c0_300 = arith.constant 0 : index
      %421 = vector.load %arg12[%c3_298, %c7_299, %c0_300] : memref<6x8x128xf32, #tpu.memory_space<vmem>>, vector<1x1x128xf32>
      %422 = vector.shape_cast %421 : vector<1x1x128xf32> to vector<1x128xf32>
      %423 = vector.shape_cast %420 : vector<1x128xf32> to vector<1x1x128xf32>
      tpu.vector_store %arg12[%c3_298, %c7_299, %c0_300], %423 {strides = array<i32>} : memref<6x8x128xf32, #tpu.memory_space<vmem>>, vector<1x1x128xf32>,
      %c4_301 = arith.constant 4 : index
      %c0_302 = arith.constant 0 : index
      %424 = memref.load %arg1[%c4_301, %c0_302] : memref<6x8xi32, #tpu.memory_space<smem>>
      %425 = arith.index_cast %424 : i32 to index
      %c0_303 = arith.constant 0 : index
      %c0_304 = arith.constant 0 : index
      %426 = vector.load %arg2[%425, %c0_303, %c0_304] : memref<96x1x128xf32, #tpu.memory_space<vmem>>, vector<1x1x128xf32>
      %427 = vector.shape_cast %426 : vector<1x1x128xf32> to vector<1x128xf32>
      %c4_305 = arith.constant 4 : index
      %c0_306 = arith.constant 0 : index
      %c0_307 = arith.constant 0 : index
      %428 = vector.load %arg12[%c4_305, %c0_306, %c0_307] : memref<6x8x128xf32, #tpu.memory_space<vmem>>, vector<1x1x128xf32>
      %429 = vector.shape_cast %428 : vector<1x1x128xf32> to vector<1x128xf32>
      %430 = vector.shape_cast %427 : vector<1x128xf32> to vector<1x1x128xf32>
      tpu.vector_store %arg12[%c4_305, %c0_306, %c0_307], %430 {strides = array<i32>} : memref<6x8x128xf32, #tpu.memory_space<vmem>>, vector<1x1x128xf32>,
      %c4_308 = arith.constant 4 : index
      %c1_309 = arith.constant 1 : index
      %431 = memref.load %arg1[%c4_308, %c1_309] : memref<6x8xi32, #tpu.memory_space<smem>>
      %432 = arith.index_cast %431 : i32 to index
      %c0_310 = arith.constant 0 : index
      %c0_311 = arith.constant 0 : index
      %433 = vector.load %arg2[%432, %c0_310, %c0_311] : memref<96x1x128xf32, #tpu.memory_space<vmem>>, vector<1x1x128xf32>
      %434 = vector.shape_cast %433 : vector<1x1x128xf32> to vector<1x128xf32>
      %c4_312 = arith.constant 4 : index
      %c1_313 = arith.constant 1 : index
      %c0_314 = arith.constant 0 : index
      %435 = vector.load %arg12[%c4_312, %c1_313, %c0_314] : memref<6x8x128xf32, #tpu.memory_space<vmem>>, vector<1x1x128xf32>
      %436 = vector.shape_cast %435 : vector<1x1x128xf32> to vector<1x128xf32>
      %437 = vector.shape_cast %434 : vector<1x128xf32> to vector<1x1x128xf32>
      tpu.vector_store %arg12[%c4_312, %c1_313, %c0_314], %437 {strides = array<i32>} : memref<6x8x128xf32, #tpu.memory_space<vmem>>, vector<1x1x128xf32>,
      %c4_315 = arith.constant 4 : index
      %c2_316 = arith.constant 2 : index
      %438 = memref.load %arg1[%c4_315, %c2_316] : memref<6x8xi32, #tpu.memory_space<smem>>
      %439 = arith.index_cast %438 : i32 to index
      %c0_317 = arith.constant 0 : index
      %c0_318 = arith.constant 0 : index
      %440 = vector.load %arg2[%439, %c0_317, %c0_318] : memref<96x1x128xf32, #tpu.memory_space<vmem>>, vector<1x1x128xf32>
      %441 = vector.shape_cast %440 : vector<1x1x128xf32> to vector<1x128xf32>
      %c4_319 = arith.constant 4 : index
      %c2_320 = arith.constant 2 : index
      %c0_321 = arith.constant 0 : index
      %442 = vector.load %arg12[%c4_319, %c2_320, %c0_321] : memref<6x8x128xf32, #tpu.memory_space<vmem>>, vector<1x1x128xf32>
      %443 = vector.shape_cast %442 : vector<1x1x128xf32> to vector<1x128xf32>
      %444 = vector.shape_cast %441 : vector<1x128xf32> to vector<1x1x128xf32>
      tpu.vector_store %arg12[%c4_319, %c2_320, %c0_321], %444 {strides = array<i32>} : memref<6x8x128xf32, #tpu.memory_space<vmem>>, vector<1x1x128xf32>,
      %c4_322 = arith.constant 4 : index
      %c3_323 = arith.constant 3 : index
      %445 = memref.load %arg1[%c4_322, %c3_323] : memref<6x8xi32, #tpu.memory_space<smem>>
      %446 = arith.index_cast %445 : i32 to index
      %c0_324 = arith.constant 0 : index
      %c0_325 = arith.constant 0 : index
      %447 = vector.load %arg2[%446, %c0_324, %c0_325] : memref<96x1x128xf32, #tpu.memory_space<vmem>>, vector<1x1x128xf32>
      %448 = vector.shape_cast %447 : vector<1x1x128xf32> to vector<1x128xf32>
      %c4_326 = arith.constant 4 : index
      %c3_327 = arith.constant 3 : index
      %c0_328 = arith.constant 0 : index
      %449 = vector.load %arg12[%c4_326, %c3_327, %c0_328] : memref<6x8x128xf32, #tpu.memory_space<vmem>>, vector<1x1x128xf32>
      %450 = vector.shape_cast %449 : vector<1x1x128xf32> to vector<1x128xf32>
      %451 = vector.shape_cast %448 : vector<1x128xf32> to vector<1x1x128xf32>
      tpu.vector_store %arg12[%c4_326, %c3_327, %c0_328], %451 {strides = array<i32>} : memref<6x8x128xf32, #tpu.memory_space<vmem>>, vector<1x1x128xf32>,
      %c4_329 = arith.constant 4 : index
      %c4_330 = arith.constant 4 : index
      %452 = memref.load %arg1[%c4_329, %c4_330] : memref<6x8xi32, #tpu.memory_space<smem>>
      %453 = arith.index_cast %452 : i32 to index
      %c0_331 = arith.constant 0 : index
      %c0_332 = arith.constant 0 : index
      %454 = vector.load %arg2[%453, %c0_331, %c0_332] : memref<96x1x128xf32, #tpu.memory_space<vmem>>, vector<1x1x128xf32>
      %455 = vector.shape_cast %454 : vector<1x1x128xf32> to vector<1x128xf32>
      %c4_333 = arith.constant 4 : index
      %c4_334 = arith.constant 4 : index
      %c0_335 = arith.constant 0 : index
      %456 = vector.load %arg12[%c4_333, %c4_334, %c0_335] : memref<6x8x128xf32, #tpu.memory_space<vmem>>, vector<1x1x128xf32>
      %457 = vector.shape_cast %456 : vector<1x1x128xf32> to vector<1x128xf32>
      %458 = vector.shape_cast %455 : vector<1x128xf32> to vector<1x1x128xf32>
      tpu.vector_store %arg12[%c4_333, %c4_334, %c0_335], %458 {strides = array<i32>} : memref<6x8x128xf32, #tpu.memory_space<vmem>>, vector<1x1x128xf32>,
      %c4_336 = arith.constant 4 : index
      %c5_337 = arith.constant 5 : index
      %459 = memref.load %arg1[%c4_336, %c5_337] : memref<6x8xi32, #tpu.memory_space<smem>>
      %460 = arith.index_cast %459 : i32 to index
      %c0_338 = arith.constant 0 : index
      %c0_339 = arith.constant 0 : index
      %461 = vector.load %arg2[%460, %c0_338, %c0_339] : memref<96x1x128xf32, #tpu.memory_space<vmem>>, vector<1x1x128xf32>
      %462 = vector.shape_cast %461 : vector<1x1x128xf32> to vector<1x128xf32>
      %c4_340 = arith.constant 4 : index
      %c5_341 = arith.constant 5 : index
      %c0_342 = arith.constant 0 : index
      %463 = vector.load %arg12[%c4_340, %c5_341, %c0_342] : memref<6x8x128xf32, #tpu.memory_space<vmem>>, vector<1x1x128xf32>
      %464 = vector.shape_cast %463 : vector<1x1x128xf32> to vector<1x128xf32>
      %465 = vector.shape_cast %462 : vector<1x128xf32> to vector<1x1x128xf32>
      tpu.vector_store %arg12[%c4_340, %c5_341, %c0_342], %465 {strides = array<i32>} : memref<6x8x128xf32, #tpu.memory_space<vmem>>, vector<1x1x128xf32>,
      %c4_343 = arith.constant 4 : index
      %c6_344 = arith.constant 6 : index
      %466 = memref.load %arg1[%c4_343, %c6_344] : memref<6x8xi32, #tpu.memory_space<smem>>
      %467 = arith.index_cast %466 : i32 to index
      %c0_345 = arith.constant 0 : index
      %c0_346 = arith.constant 0 : index
      %468 = vector.load %arg2[%467, %c0_345, %c0_346] : memref<96x1x128xf32, #tpu.memory_space<vmem>>, vector<1x1x128xf32>
      %469 = vector.shape_cast %468 : vector<1x1x128xf32> to vector<1x128xf32>
      %c4_347 = arith.constant 4 : index
      %c6_348 = arith.constant 6 : index
      %c0_349 = arith.constant 0 : index
      %470 = vector.load %arg12[%c4_347, %c6_348, %c0_349] : memref<6x8x128xf32, #tpu.memory_space<vmem>>, vector<1x1x128xf32>
      %471 = vector.shape_cast %470 : vector<1x1x128xf32> to vector<1x128xf32>
      %472 = vector.shape_cast %469 : vector<1x128xf32> to vector<1x1x128xf32>
      tpu.vector_store %arg12[%c4_347, %c6_348, %c0_349], %472 {strides = array<i32>} : memref<6x8x128xf32, #tpu.memory_space<vmem>>, vector<1x1x128xf32>,
      %c4_350 = arith.constant 4 : index
      %c7_351 = arith.constant 7 : index
      %473 = memref.load %arg1[%c4_350, %c7_351] : memref<6x8xi32, #tpu.memory_space<smem>>
      %474 = arith.index_cast %473 : i32 to index
      %c0_352 = arith.constant 0 : index
      %c0_353 = arith.constant 0 : index
      %475 = vector.load %arg2[%474, %c0_352, %c0_353] : memref<96x1x128xf32, #tpu.memory_space<vmem>>, vector<1x1x128xf32>
      %476 = vector.shape_cast %475 : vector<1x1x128xf32> to vector<1x128xf32>
      %c4_354 = arith.constant 4 : index
      %c7_355 = arith.constant 7 : index
      %c0_356 = arith.constant 0 : index
      %477 = vector.load %arg12[%c4_354, %c7_355, %c0_356] : memref<6x8x128xf32, #tpu.memory_space<vmem>>, vector<1x1x128xf32>
      %478 = vector.shape_cast %477 : vector<1x1x128xf32> to vector<1x128xf32>
      %479 = vector.shape_cast %476 : vector<1x128xf32> to vector<1x1x128xf32>
      tpu.vector_store %arg12[%c4_354, %c7_355, %c0_356], %479 {strides = array<i32>} : memref<6x8x128xf32, #tpu.memory_space<vmem>>, vector<1x1x128xf32>,
      %c5_357 = arith.constant 5 : index
      %c0_358 = arith.constant 0 : index
      %480 = memref.load %arg1[%c5_357, %c0_358] : memref<6x8xi32, #tpu.memory_space<smem>>
      %481 = arith.index_cast %480 : i32 to index
      %c0_359 = arith.constant 0 : index
      %c0_360 = arith.constant 0 : index
      %482 = vector.load %arg2[%481, %c0_359, %c0_360] : memref<96x1x128xf32, #tpu.memory_space<vmem>>, vector<1x1x128xf32>
      %483 = vector.shape_cast %482 : vector<1x1x128xf32> to vector<1x128xf32>
      %c5_361 = arith.constant 5 : index
      %c0_362 = arith.constant 0 : index
      %c0_363 = arith.constant 0 : index
      %484 = vector.load %arg12[%c5_361, %c0_362, %c0_363] : memref<6x8x128xf32, #tpu.memory_space<vmem>>, vector<1x1x128xf32>
      %485 = vector.shape_cast %484 : vector<1x1x128xf32> to vector<1x128xf32>
      %486 = vector.shape_cast %483 : vector<1x128xf32> to vector<1x1x128xf32>
      tpu.vector_store %arg12[%c5_361, %c0_362, %c0_363], %486 {strides = array<i32>} : memref<6x8x128xf32, #tpu.memory_space<vmem>>, vector<1x1x128xf32>,
      %c5_364 = arith.constant 5 : index
      %c1_365 = arith.constant 1 : index
      %487 = memref.load %arg1[%c5_364, %c1_365] : memref<6x8xi32, #tpu.memory_space<smem>>
      %488 = arith.index_cast %487 : i32 to index
      %c0_366 = arith.constant 0 : index
      %c0_367 = arith.constant 0 : index
      %489 = vector.load %arg2[%488, %c0_366, %c0_367] : memref<96x1x128xf32, #tpu.memory_space<vmem>>, vector<1x1x128xf32>
      %490 = vector.shape_cast %489 : vector<1x1x128xf32> to vector<1x128xf32>
      %c5_368 = arith.constant 5 : index
      %c1_369 = arith.constant 1 : index
      %c0_370 = arith.constant 0 : index
      %491 = vector.load %arg12[%c5_368, %c1_369, %c0_370] : memref<6x8x128xf32, #tpu.memory_space<vmem>>, vector<1x1x128xf32>
      %492 = vector.shape_cast %491 : vector<1x1x128xf32> to vector<1x128xf32>
      %493 = vector.shape_cast %490 : vector<1x128xf32> to vector<1x1x128xf32>
      tpu.vector_store %arg12[%c5_368, %c1_369, %c0_370], %493 {strides = array<i32>} : memref<6x8x128xf32, #tpu.memory_space<vmem>>, vector<1x1x128xf32>,
      %c5_371 = arith.constant 5 : index
      %c2_372 = arith.constant 2 : index
      %494 = memref.load %arg1[%c5_371, %c2_372] : memref<6x8xi32, #tpu.memory_space<smem>>
      %495 = arith.index_cast %494 : i32 to index
      %c0_373 = arith.constant 0 : index
      %c0_374 = arith.constant 0 : index
      %496 = vector.load %arg2[%495, %c0_373, %c0_374] : memref<96x1x128xf32, #tpu.memory_space<vmem>>, vector<1x1x128xf32>
      %497 = vector.shape_cast %496 : vector<1x1x128xf32> to vector<1x128xf32>
      %c5_375 = arith.constant 5 : index
      %c2_376 = arith.constant 2 : index
      %c0_377 = arith.constant 0 : index
      %498 = vector.load %arg12[%c5_375, %c2_376, %c0_377] : memref<6x8x128xf32, #tpu.memory_space<vmem>>, vector<1x1x128xf32>
      %499 = vector.shape_cast %498 : vector<1x1x128xf32> to vector<1x128xf32>
      %500 = vector.shape_cast %497 : vector<1x128xf32> to vector<1x1x128xf32>
      tpu.vector_store %arg12[%c5_375, %c2_376, %c0_377], %500 {strides = array<i32>} : memref<6x8x128xf32, #tpu.memory_space<vmem>>, vector<1x1x128xf32>,
      %c5_378 = arith.constant 5 : index
      %c3_379 = arith.constant 3 : index
      %501 = memref.load %arg1[%c5_378, %c3_379] : memref<6x8xi32, #tpu.memory_space<smem>>
      %502 = arith.index_cast %501 : i32 to index
      %c0_380 = arith.constant 0 : index
      %c0_381 = arith.constant 0 : index
      %503 = vector.load %arg2[%502, %c0_380, %c0_381] : memref<96x1x128xf32, #tpu.memory_space<vmem>>, vector<1x1x128xf32>
      %504 = vector.shape_cast %503 : vector<1x1x128xf32> to vector<1x128xf32>
      %c5_382 = arith.constant 5 : index
      %c3_383 = arith.constant 3 : index
      %c0_384 = arith.constant 0 : index
      %505 = vector.load %arg12[%c5_382, %c3_383, %c0_384] : memref<6x8x128xf32, #tpu.memory_space<vmem>>, vector<1x1x128xf32>
      %506 = vector.shape_cast %505 : vector<1x1x128xf32> to vector<1x128xf32>
      %507 = vector.shape_cast %504 : vector<1x128xf32> to vector<1x1x128xf32>
      tpu.vector_store %arg12[%c5_382, %c3_383, %c0_384], %507 {strides = array<i32>} : memref<6x8x128xf32, #tpu.memory_space<vmem>>, vector<1x1x128xf32>,
      %c5_385 = arith.constant 5 : index
      %c4_386 = arith.constant 4 : index
      %508 = memref.load %arg1[%c5_385, %c4_386] : memref<6x8xi32, #tpu.memory_space<smem>>
      %509 = arith.index_cast %508 : i32 to index
      %c0_387 = arith.constant 0 : index
      %c0_388 = arith.constant 0 : index
      %510 = vector.load %arg2[%509, %c0_387, %c0_388] : memref<96x1x128xf32, #tpu.memory_space<vmem>>, vector<1x1x128xf32>
      %511 = vector.shape_cast %510 : vector<1x1x128xf32> to vector<1x128xf32>
      %c5_389 = arith.constant 5 : index
      %c4_390 = arith.constant 4 : index
      %c0_391 = arith.constant 0 : index
      %512 = vector.load %arg12[%c5_389, %c4_390, %c0_391] : memref<6x8x128xf32, #tpu.memory_space<vmem>>, vector<1x1x128xf32>
      %513 = vector.shape_cast %512 : vector<1x1x128xf32> to vector<1x128xf32>
      %514 = vector.shape_cast %511 : vector<1x128xf32> to vector<1x1x128xf32>
      tpu.vector_store %arg12[%c5_389, %c4_390, %c0_391], %514 {strides = array<i32>} : memref<6x8x128xf32, #tpu.memory_space<vmem>>, vector<1x1x128xf32>,
      %c5_392 = arith.constant 5 : index
      %c5_393 = arith.constant 5 : index
      %515 = memref.load %arg1[%c5_392, %c5_393] : memref<6x8xi32, #tpu.memory_space<smem>>
      %516 = arith.index_cast %515 : i32 to index
      %c0_394 = arith.constant 0 : index
      %c0_395 = arith.constant 0 : index
      %517 = vector.load %arg2[%516, %c0_394, %c0_395] : memref<96x1x128xf32, #tpu.memory_space<vmem>>, vector<1x1x128xf32>
      %518 = vector.shape_cast %517 : vector<1x1x128xf32> to vector<1x128xf32>
      %c5_396 = arith.constant 5 : index
      %c5_397 = arith.constant 5 : index
      %c0_398 = arith.constant 0 : index
      %519 = vector.load %arg12[%c5_396, %c5_397, %c0_398] : memref<6x8x128xf32, #tpu.memory_space<vmem>>, vector<1x1x128xf32>
      %520 = vector.shape_cast %519 : vector<1x1x128xf32> to vector<1x128xf32>
      %521 = vector.shape_cast %518 : vector<1x128xf32> to vector<1x1x128xf32>
      tpu.vector_store %arg12[%c5_396, %c5_397, %c0_398], %521 {strides = array<i32>} : memref<6x8x128xf32, #tpu.memory_space<vmem>>, vector<1x1x128xf32>,
      %c5_399 = arith.constant 5 : index
      %c6_400 = arith.constant 6 : index
      %522 = memref.load %arg1[%c5_399, %c6_400] : memref<6x8xi32, #tpu.memory_space<smem>>
      %523 = arith.index_cast %522 : i32 to index
      %c0_401 = arith.constant 0 : index
      %c0_402 = arith.constant 0 : index
      %524 = vector.load %arg2[%523, %c0_401, %c0_402] : memref<96x1x128xf32, #tpu.memory_space<vmem>>, vector<1x1x128xf32>
      %525 = vector.shape_cast %524 : vector<1x1x128xf32> to vector<1x128xf32>
      %c5_403 = arith.constant 5 : index
      %c6_404 = arith.constant 6 : index
      %c0_405 = arith.constant 0 : index
      %526 = vector.load %arg12[%c5_403, %c6_404, %c0_405] : memref<6x8x128xf32, #tpu.memory_space<vmem>>, vector<1x1x128xf32>
      %527 = vector.shape_cast %526 : vector<1x1x128xf32> to vector<1x128xf32>
      %528 = vector.shape_cast %525 : vector<1x128xf32> to vector<1x1x128xf32>
      tpu.vector_store %arg12[%c5_403, %c6_404, %c0_405], %528 {strides = array<i32>} : memref<6x8x128xf32, #tpu.memory_space<vmem>>, vector<1x1x128xf32>,
      %c5_406 = arith.constant 5 : index
      %c7_407 = arith.constant 7 : index
      %529 = memref.load %arg1[%c5_406, %c7_407] : memref<6x8xi32, #tpu.memory_space<smem>>
      %530 = arith.index_cast %529 : i32 to index
      %c0_408 = arith.constant 0 : index
      %c0_409 = arith.constant 0 : index
      %531 = vector.load %arg2[%530, %c0_408, %c0_409] : memref<96x1x128xf32, #tpu.memory_space<vmem>>, vector<1x1x128xf32>
      %532 = vector.shape_cast %531 : vector<1x1x128xf32> to vector<1x128xf32>
      %c5_410 = arith.constant 5 : index
      %c7_411 = arith.constant 7 : index
      %c0_412 = arith.constant 0 : index
      %533 = vector.load %arg12[%c5_410, %c7_411, %c0_412] : memref<6x8x128xf32, #tpu.memory_space<vmem>>, vector<1x1x128xf32>
      %534 = vector.shape_cast %533 : vector<1x1x128xf32> to vector<1x128xf32>
      %535 = vector.shape_cast %532 : vector<1x128xf32> to vector<1x1x128xf32>
      tpu.vector_store %arg12[%c5_410, %c7_411, %c0_412], %535 {strides = array<i32>} : memref<6x8x128xf32, #tpu.memory_space<vmem>>, vector<1x1x128xf32>,
    } else {
    }
    %c0 = arith.constant 0 : index
    %c0_1 = arith.constant 0 : index
    %c0_2 = arith.constant 0 : index
    %4 = vector.load %arg4[%c0, %c0_1, %c0_2] : memref<1x128x384xf32, #tpu.memory_space<vmem>>, vector<1x128x384xf32>
    %5 = vector.shape_cast %4 : vector<1x128x384xf32> to vector<128x384xf32>
    %c0_3 = arith.constant 0 : index
    %c0_4 = arith.constant 0 : index
    %c0_5 = arith.constant 0 : index
    %6 = vector.load %arg5[%c0_3, %c0_4, %c0_5] : memref<1x128x384xf32, #tpu.memory_space<vmem>>, vector<1x128x384xf32>
    %7 = vector.shape_cast %6 : vector<1x128x384xf32> to vector<128x384xf32>
    %c0_6 = arith.constant 0 : index
    %c0_7 = arith.constant 0 : index
    %c0_8 = arith.constant 0 : index
    %8 = vector.load %arg6[%c0_6, %c0_7, %c0_8] : memref<1x1x384xf32, #tpu.memory_space<vmem>>, vector<1x1x384xf32>
    %9 = vector.shape_cast %8 : vector<1x1x384xf32> to vector<1x384xf32>
    %c0_9 = arith.constant 0 : index
    %c0_10 = arith.constant 0 : index
    %c0_11 = arith.constant 0 : index
    %10 = vector.load %arg7[%c0_9, %c0_10, %c0_11] : memref<1x1x128xf32, #tpu.memory_space<vmem>>, vector<1x1x128xf32>
    %11 = vector.shape_cast %10 : vector<1x1x128xf32> to vector<1x128xf32>
    %12 = vector.shape_cast %11 : vector<1x128xf32> to vector<1x128xf32>
    %13 = vector.broadcast %12 : vector<1x128xf32> to vector<8x128xf32>
    %c0_12 = arith.constant 0 : index
    %c0_13 = arith.constant 0 : index
    %c0_14 = arith.constant 0 : index
    %14 = vector.load %arg12[%c0_12, %c0_13, %c0_14] : memref<6x8x128xf32, #tpu.memory_space<vmem>>, vector<6x8x128xf32>
    %15 = vector.shape_cast %14 : vector<6x8x128xf32> to vector<48x128xf32>
    %cst = arith.constant dense<0.000000e+00> : vector<48x384xf32>
    %16 = tpu.matmul %15, %5, %cst {dimension_numbers = #tpu.dot_dimension_numbers<[1], [0], [0], [1], [0, 0, 1, 1], [], []>} : vector<48x128xf32>, vector<128x384xf32>, vector<48x384xf32> -> vector<48x384xf32>
    %17 = vector.broadcast %9 : vector<1x384xf32> to vector<48x384xf32>
    %18 = arith.addf %16, %17 : vector<48x384xf32>
    %19 = vector.shape_cast %18 : vector<48x384xf32> to vector<6x8x384xf32>
    %c0_15 = arith.constant 0 : index
    %c0_16 = arith.constant 0 : index
    %c0_17 = arith.constant 0 : index
    %20 = vector.load %arg13[%c0_15, %c0_16, %c0_17] : memref<6x8x384xf32, #tpu.memory_space<vmem>>, vector<6x8x384xf32>
    tpu.vector_store %arg13[%c0_15, %c0_16, %c0_17], %19 {strides = array<i32>} : memref<6x8x384xf32, #tpu.memory_space<vmem>>, vector<6x8x384xf32>,
    %c0_18 = arith.constant 0 : index
    %c0_19 = arith.constant 0 : index
    %c0_20 = arith.constant 0 : index
    %21 = vector.load %arg3[%c0_18, %c0_19, %c0_20] : memref<1x8x128xf32, #tpu.memory_space<vmem>>, vector<1x8x128xf32>
    %22 = vector.shape_cast %21 : vector<1x8x128xf32> to vector<8x128xf32>
    %c0_21 = arith.constant 0 : index
    %c0_22 = arith.constant 0 : index
    %c0_23 = arith.constant 0 : index
    %23 = vector.load %arg13[%c0_21, %c0_22, %c0_23] : memref<6x8x384xf32, #tpu.memory_space<vmem>>, vector<1x8x384xf32>
    %24 = vector.shape_cast %23 : vector<1x8x384xf32> to vector<8x384xf32>
    %cst_24 = arith.constant dense<0.000000e+00> : vector<8x384xf32>
    %25 = tpu.matmul %22, %7, %cst_24 {dimension_numbers = #tpu.dot_dimension_numbers<[1], [0], [0], [1], [0, 0, 1, 1], [], []>} : vector<8x128xf32>, vector<128x384xf32>, vector<8x384xf32> -> vector<8x384xf32>
    %26 = vector.extract_strided_slice %24 {offsets = [0, 0], sizes = [8, 256], strides = [1, 1]} : vector<8x384xf32> to vector<8x256xf32>
    %27 = vector.extract_strided_slice %25 {offsets = [0, 0], sizes = [8, 256], strides = [1, 1]} : vector<8x384xf32> to vector<8x256xf32>
    %28 = arith.addf %26, %27 : vector<8x256xf32>
    %29 = arith.negf %28 : vector<8x256xf32>
    %30 = math.exp %29 : vector<8x256xf32>
    %cst_25 = arith.constant 1.000000e+00 : f32
    %31 = vector.broadcast %cst_25 : f32 to vector<8x256xf32>
    %32 = arith.addf %31, %30 : vector<8x256xf32>
    %33 = arith.divf %31, %32 : vector<8x256xf32>
    %34 = vector.extract_strided_slice %33 {offsets = [0, 0], sizes = [8, 128], strides = [1, 1]} : vector<8x256xf32> to vector<8x128xf32>
    %35 = vector.extract_strided_slice %33 {offsets = [0, 128], sizes = [8, 128], strides = [1, 1]} : vector<8x256xf32> to vector<8x128xf32>
    %36 = vector.extract_strided_slice %24 {offsets = [0, 256], sizes = [8, 128], strides = [1, 1]} : vector<8x384xf32> to vector<8x128xf32>
    %37 = vector.extract_strided_slice %25 {offsets = [0, 256], sizes = [8, 128], strides = [1, 1]} : vector<8x384xf32> to vector<8x128xf32>
    %38 = arith.addf %37, %13 : vector<8x128xf32>
    %39 = arith.mulf %34, %38 : vector<8x128xf32>
    %40 = arith.addf %36, %39 : vector<8x128xf32>
    %41 = math.tanh %40 : vector<8x128xf32>
    %cst_26 = arith.constant 1.000000e+00 : f32
    %42 = vector.broadcast %cst_26 : f32 to vector<8x128xf32>
    %43 = arith.subf %42, %35 : vector<8x128xf32>
    %44 = arith.mulf %43, %41 : vector<8x128xf32>
    %45 = arith.mulf %35, %22 : vector<8x128xf32>
    %46 = arith.addf %44, %45 : vector<8x128xf32>
    %c0_27 = arith.constant 0 : index
    %c0_28 = arith.constant 0 : index
    %c0_29 = arith.constant 0 : index
    %47 = vector.load %arg12[%c0_27, %c0_28, %c0_29] : memref<6x8x128xf32, #tpu.memory_space<vmem>>, vector<1x8x128xf32>
    %48 = vector.shape_cast %47 : vector<1x8x128xf32> to vector<8x128xf32>
    %49 = vector.shape_cast %46 : vector<8x128xf32> to vector<1x8x128xf32>
    tpu.vector_store %arg12[%c0_27, %c0_28, %c0_29], %49 {strides = array<i32>} : memref<6x8x128xf32, #tpu.memory_space<vmem>>, vector<1x8x128xf32>,
    %50 = arith.extui %0 : i1 to i32
    %c0_i32_30 = arith.constant 0 : i32
    %51 = arith.cmpi ne, %50, %c0_i32_30 : i32
    scf.if %51 {
      %c0_79 = arith.constant 0 : index
      %c0_80 = arith.constant 0 : index
      %200 = vector.load %arg8[%c0_79, %c0_80] : memref<128x128xf32, #tpu.memory_space<vmem>>, vector<128x128xf32>
      %cst_81 = arith.constant dense<0.000000e+00> : vector<8x128xf32>
      %201 = tpu.matmul %46, %200, %cst_81 {dimension_numbers = #tpu.dot_dimension_numbers<[1], [0], [0], [1], [0, 0, 1, 1], [], []>} : vector<8x128xf32>, vector<128x128xf32>, vector<8x128xf32> -> vector<8x128xf32>
      %c0_82 = arith.constant 0 : index
      %c0_83 = arith.constant 0 : index
      %202 = vector.load %arg9[%c0_82, %c0_83] : memref<1x128xf32, #tpu.memory_space<vmem>>, vector<1x128xf32>
      %203 = vector.broadcast %202 : vector<1x128xf32> to vector<8x128xf32>
      %204 = arith.addf %201, %203 : vector<8x128xf32>
      %c0_84 = arith.constant 0 : index
      %c0_85 = arith.constant 0 : index
      %c0_86 = arith.constant 0 : index
      %205 = vector.load %arg10[%c0_84, %c0_85, %c0_86] : memref<6x8x128xf32, #tpu.memory_space<vmem>>, vector<1x8x128xf32>
      %206 = vector.shape_cast %205 : vector<1x8x128xf32> to vector<8x128xf32>
      %207 = vector.shape_cast %204 : vector<8x128xf32> to vector<1x8x128xf32>
      tpu.vector_store %arg10[%c0_84, %c0_85, %c0_86], %207 {strides = array<i32>} : memref<6x8x128xf32, #tpu.memory_space<vmem>>, vector<1x8x128xf32>,
    } else {
    }
    %c1 = arith.constant 1 : index
    %c0_31 = arith.constant 0 : index
    %c0_32 = arith.constant 0 : index
    %52 = vector.load %arg13[%c1, %c0_31, %c0_32] : memref<6x8x384xf32, #tpu.memory_space<vmem>>, vector<1x8x384xf32>
    %53 = vector.shape_cast %52 : vector<1x8x384xf32> to vector<8x384xf32>
    %cst_33 = arith.constant dense<0.000000e+00> : vector<8x384xf32>
    %54 = tpu.matmul %46, %7, %cst_33 {dimension_numbers = #tpu.dot_dimension_numbers<[1], [0], [0], [1], [0, 0, 1, 1], [], []>} : vector<8x128xf32>, vector<128x384xf32>, vector<8x384xf32> -> vector<8x384xf32>
    %55 = vector.extract_strided_slice %53 {offsets = [0, 0], sizes = [8, 256], strides = [1, 1]} : vector<8x384xf32> to vector<8x256xf32>
    %56 = vector.extract_strided_slice %54 {offsets = [0, 0], sizes = [8, 256], strides = [1, 1]} : vector<8x384xf32> to vector<8x256xf32>
    %57 = arith.addf %55, %56 : vector<8x256xf32>
    %58 = arith.negf %57 : vector<8x256xf32>
    %59 = math.exp %58 : vector<8x256xf32>
    %cst_34 = arith.constant 1.000000e+00 : f32
    %60 = vector.broadcast %cst_34 : f32 to vector<8x256xf32>
    %61 = arith.addf %60, %59 : vector<8x256xf32>
    %62 = arith.divf %60, %61 : vector<8x256xf32>
    %63 = vector.extract_strided_slice %62 {offsets = [0, 0], sizes = [8, 128], strides = [1, 1]} : vector<8x256xf32> to vector<8x128xf32>
    %64 = vector.extract_strided_slice %62 {offsets = [0, 128], sizes = [8, 128], strides = [1, 1]} : vector<8x256xf32> to vector<8x128xf32>
    %65 = vector.extract_strided_slice %53 {offsets = [0, 256], sizes = [8, 128], strides = [1, 1]} : vector<8x384xf32> to vector<8x128xf32>
    %66 = vector.extract_strided_slice %54 {offsets = [0, 256], sizes = [8, 128], strides = [1, 1]} : vector<8x384xf32> to vector<8x128xf32>
    %67 = arith.addf %66, %13 : vector<8x128xf32>
    %68 = arith.mulf %63, %67 : vector<8x128xf32>
    %69 = arith.addf %65, %68 : vector<8x128xf32>
    %70 = math.tanh %69 : vector<8x128xf32>
    %cst_35 = arith.constant 1.000000e+00 : f32
    %71 = vector.broadcast %cst_35 : f32 to vector<8x128xf32>
    %72 = arith.subf %71, %64 : vector<8x128xf32>
    %73 = arith.mulf %72, %70 : vector<8x128xf32>
    %74 = arith.mulf %64, %46 : vector<8x128xf32>
    %75 = arith.addf %73, %74 : vector<8x128xf32>
    %c1_36 = arith.constant 1 : index
    %c0_37 = arith.constant 0 : index
    %c0_38 = arith.constant 0 : index
    %76 = vector.load %arg12[%c1_36, %c0_37, %c0_38] : memref<6x8x128xf32, #tpu.memory_space<vmem>>, vector<1x8x128xf32>
    %77 = vector.shape_cast %76 : vector<1x8x128xf32> to vector<8x128xf32>
    %78 = vector.shape_cast %75 : vector<8x128xf32> to vector<1x8x128xf32>
    tpu.vector_store %arg12[%c1_36, %c0_37, %c0_38], %78 {strides = array<i32>} : memref<6x8x128xf32, #tpu.memory_space<vmem>>, vector<1x8x128xf32>,
    %79 = arith.extui %0 : i1 to i32
    %c0_i32_39 = arith.constant 0 : i32
    %80 = arith.cmpi ne, %79, %c0_i32_39 : i32
    scf.if %80 {
      %c0_79 = arith.constant 0 : index
      %c0_80 = arith.constant 0 : index
      %200 = vector.load %arg8[%c0_79, %c0_80] : memref<128x128xf32, #tpu.memory_space<vmem>>, vector<128x128xf32>
      %cst_81 = arith.constant dense<0.000000e+00> : vector<8x128xf32>
      %201 = tpu.matmul %75, %200, %cst_81 {dimension_numbers = #tpu.dot_dimension_numbers<[1], [0], [0], [1], [0, 0, 1, 1], [], []>} : vector<8x128xf32>, vector<128x128xf32>, vector<8x128xf32> -> vector<8x128xf32>
      %c0_82 = arith.constant 0 : index
      %c0_83 = arith.constant 0 : index
      %202 = vector.load %arg9[%c0_82, %c0_83] : memref<1x128xf32, #tpu.memory_space<vmem>>, vector<1x128xf32>
      %203 = vector.broadcast %202 : vector<1x128xf32> to vector<8x128xf32>
      %204 = arith.addf %201, %203 : vector<8x128xf32>
      %c1_84 = arith.constant 1 : index
      %c0_85 = arith.constant 0 : index
      %c0_86 = arith.constant 0 : index
      %205 = vector.load %arg10[%c1_84, %c0_85, %c0_86] : memref<6x8x128xf32, #tpu.memory_space<vmem>>, vector<1x8x128xf32>
      %206 = vector.shape_cast %205 : vector<1x8x128xf32> to vector<8x128xf32>
      %207 = vector.shape_cast %204 : vector<8x128xf32> to vector<1x8x128xf32>
      tpu.vector_store %arg10[%c1_84, %c0_85, %c0_86], %207 {strides = array<i32>} : memref<6x8x128xf32, #tpu.memory_space<vmem>>, vector<1x8x128xf32>,
    } else {
    }
    %c2 = arith.constant 2 : index
    %c0_40 = arith.constant 0 : index
    %c0_41 = arith.constant 0 : index
    %81 = vector.load %arg13[%c2, %c0_40, %c0_41] : memref<6x8x384xf32, #tpu.memory_space<vmem>>, vector<1x8x384xf32>
    %82 = vector.shape_cast %81 : vector<1x8x384xf32> to vector<8x384xf32>
    %cst_42 = arith.constant dense<0.000000e+00> : vector<8x384xf32>
    %83 = tpu.matmul %75, %7, %cst_42 {dimension_numbers = #tpu.dot_dimension_numbers<[1], [0], [0], [1], [0, 0, 1, 1], [], []>} : vector<8x128xf32>, vector<128x384xf32>, vector<8x384xf32> -> vector<8x384xf32>
    %84 = vector.extract_strided_slice %82 {offsets = [0, 0], sizes = [8, 256], strides = [1, 1]} : vector<8x384xf32> to vector<8x256xf32>
    %85 = vector.extract_strided_slice %83 {offsets = [0, 0], sizes = [8, 256], strides = [1, 1]} : vector<8x384xf32> to vector<8x256xf32>
    %86 = arith.addf %84, %85 : vector<8x256xf32>
    %87 = arith.negf %86 : vector<8x256xf32>
    %88 = math.exp %87 : vector<8x256xf32>
    %cst_43 = arith.constant 1.000000e+00 : f32
    %89 = vector.broadcast %cst_43 : f32 to vector<8x256xf32>
    %90 = arith.addf %89, %88 : vector<8x256xf32>
    %91 = arith.divf %89, %90 : vector<8x256xf32>
    %92 = vector.extract_strided_slice %91 {offsets = [0, 0], sizes = [8, 128], strides = [1, 1]} : vector<8x256xf32> to vector<8x128xf32>
    %93 = vector.extract_strided_slice %91 {offsets = [0, 128], sizes = [8, 128], strides = [1, 1]} : vector<8x256xf32> to vector<8x128xf32>
    %94 = vector.extract_strided_slice %82 {offsets = [0, 256], sizes = [8, 128], strides = [1, 1]} : vector<8x384xf32> to vector<8x128xf32>
    %95 = vector.extract_strided_slice %83 {offsets = [0, 256], sizes = [8, 128], strides = [1, 1]} : vector<8x384xf32> to vector<8x128xf32>
    %96 = arith.addf %95, %13 : vector<8x128xf32>
    %97 = arith.mulf %92, %96 : vector<8x128xf32>
    %98 = arith.addf %94, %97 : vector<8x128xf32>
    %99 = math.tanh %98 : vector<8x128xf32>
    %cst_44 = arith.constant 1.000000e+00 : f32
    %100 = vector.broadcast %cst_44 : f32 to vector<8x128xf32>
    %101 = arith.subf %100, %93 : vector<8x128xf32>
    %102 = arith.mulf %101, %99 : vector<8x128xf32>
    %103 = arith.mulf %93, %75 : vector<8x128xf32>
    %104 = arith.addf %102, %103 : vector<8x128xf32>
    %c2_45 = arith.constant 2 : index
    %c0_46 = arith.constant 0 : index
    %c0_47 = arith.constant 0 : index
    %105 = vector.load %arg12[%c2_45, %c0_46, %c0_47] : memref<6x8x128xf32, #tpu.memory_space<vmem>>, vector<1x8x128xf32>
    %106 = vector.shape_cast %105 : vector<1x8x128xf32> to vector<8x128xf32>
    %107 = vector.shape_cast %104 : vector<8x128xf32> to vector<1x8x128xf32>
    tpu.vector_store %arg12[%c2_45, %c0_46, %c0_47], %107 {strides = array<i32>} : memref<6x8x128xf32, #tpu.memory_space<vmem>>, vector<1x8x128xf32>,
    %108 = arith.extui %0 : i1 to i32
    %c0_i32_48 = arith.constant 0 : i32
    %109 = arith.cmpi ne, %108, %c0_i32_48 : i32
    scf.if %109 {
      %c0_79 = arith.constant 0 : index
      %c0_80 = arith.constant 0 : index
      %200 = vector.load %arg8[%c0_79, %c0_80] : memref<128x128xf32, #tpu.memory_space<vmem>>, vector<128x128xf32>
      %cst_81 = arith.constant dense<0.000000e+00> : vector<8x128xf32>
      %201 = tpu.matmul %104, %200, %cst_81 {dimension_numbers = #tpu.dot_dimension_numbers<[1], [0], [0], [1], [0, 0, 1, 1], [], []>} : vector<8x128xf32>, vector<128x128xf32>, vector<8x128xf32> -> vector<8x128xf32>
      %c0_82 = arith.constant 0 : index
      %c0_83 = arith.constant 0 : index
      %202 = vector.load %arg9[%c0_82, %c0_83] : memref<1x128xf32, #tpu.memory_space<vmem>>, vector<1x128xf32>
      %203 = vector.broadcast %202 : vector<1x128xf32> to vector<8x128xf32>
      %204 = arith.addf %201, %203 : vector<8x128xf32>
      %c2_84 = arith.constant 2 : index
      %c0_85 = arith.constant 0 : index
      %c0_86 = arith.constant 0 : index
      %205 = vector.load %arg10[%c2_84, %c0_85, %c0_86] : memref<6x8x128xf32, #tpu.memory_space<vmem>>, vector<1x8x128xf32>
      %206 = vector.shape_cast %205 : vector<1x8x128xf32> to vector<8x128xf32>
      %207 = vector.shape_cast %204 : vector<8x128xf32> to vector<1x8x128xf32>
      tpu.vector_store %arg10[%c2_84, %c0_85, %c0_86], %207 {strides = array<i32>} : memref<6x8x128xf32, #tpu.memory_space<vmem>>, vector<1x8x128xf32>,
    } else {
    }
    %c3 = arith.constant 3 : index
    %c0_49 = arith.constant 0 : index
    %c0_50 = arith.constant 0 : index
    %110 = vector.load %arg13[%c3, %c0_49, %c0_50] : memref<6x8x384xf32, #tpu.memory_space<vmem>>, vector<1x8x384xf32>
    %111 = vector.shape_cast %110 : vector<1x8x384xf32> to vector<8x384xf32>
    %cst_51 = arith.constant dense<0.000000e+00> : vector<8x384xf32>
    %112 = tpu.matmul %104, %7, %cst_51 {dimension_numbers = #tpu.dot_dimension_numbers<[1], [0], [0], [1], [0, 0, 1, 1], [], []>} : vector<8x128xf32>, vector<128x384xf32>, vector<8x384xf32> -> vector<8x384xf32>
    %113 = vector.extract_strided_slice %111 {offsets = [0, 0], sizes = [8, 256], strides = [1, 1]} : vector<8x384xf32> to vector<8x256xf32>
    %114 = vector.extract_strided_slice %112 {offsets = [0, 0], sizes = [8, 256], strides = [1, 1]} : vector<8x384xf32> to vector<8x256xf32>
    %115 = arith.addf %113, %114 : vector<8x256xf32>
    %116 = arith.negf %115 : vector<8x256xf32>
    %117 = math.exp %116 : vector<8x256xf32>
    %cst_52 = arith.constant 1.000000e+00 : f32
    %118 = vector.broadcast %cst_52 : f32 to vector<8x256xf32>
    %119 = arith.addf %118, %117 : vector<8x256xf32>
    %120 = arith.divf %118, %119 : vector<8x256xf32>
    %121 = vector.extract_strided_slice %120 {offsets = [0, 0], sizes = [8, 128], strides = [1, 1]} : vector<8x256xf32> to vector<8x128xf32>
    %122 = vector.extract_strided_slice %120 {offsets = [0, 128], sizes = [8, 128], strides = [1, 1]} : vector<8x256xf32> to vector<8x128xf32>
    %123 = vector.extract_strided_slice %111 {offsets = [0, 256], sizes = [8, 128], strides = [1, 1]} : vector<8x384xf32> to vector<8x128xf32>
    %124 = vector.extract_strided_slice %112 {offsets = [0, 256], sizes = [8, 128], strides = [1, 1]} : vector<8x384xf32> to vector<8x128xf32>
    %125 = arith.addf %124, %13 : vector<8x128xf32>
    %126 = arith.mulf %121, %125 : vector<8x128xf32>
    %127 = arith.addf %123, %126 : vector<8x128xf32>
    %128 = math.tanh %127 : vector<8x128xf32>
    %cst_53 = arith.constant 1.000000e+00 : f32
    %129 = vector.broadcast %cst_53 : f32 to vector<8x128xf32>
    %130 = arith.subf %129, %122 : vector<8x128xf32>
    %131 = arith.mulf %130, %128 : vector<8x128xf32>
    %132 = arith.mulf %122, %104 : vector<8x128xf32>
    %133 = arith.addf %131, %132 : vector<8x128xf32>
    %c3_54 = arith.constant 3 : index
    %c0_55 = arith.constant 0 : index
    %c0_56 = arith.constant 0 : index
    %134 = vector.load %arg12[%c3_54, %c0_55, %c0_56] : memref<6x8x128xf32, #tpu.memory_space<vmem>>, vector<1x8x128xf32>
    %135 = vector.shape_cast %134 : vector<1x8x128xf32> to vector<8x128xf32>
    %136 = vector.shape_cast %133 : vector<8x128xf32> to vector<1x8x128xf32>
    tpu.vector_store %arg12[%c3_54, %c0_55, %c0_56], %136 {strides = array<i32>} : memref<6x8x128xf32, #tpu.memory_space<vmem>>, vector<1x8x128xf32>,
    %137 = arith.extui %0 : i1 to i32
    %c0_i32_57 = arith.constant 0 : i32
    %138 = arith.cmpi ne, %137, %c0_i32_57 : i32
    scf.if %138 {
      %c0_79 = arith.constant 0 : index
      %c0_80 = arith.constant 0 : index
      %200 = vector.load %arg8[%c0_79, %c0_80] : memref<128x128xf32, #tpu.memory_space<vmem>>, vector<128x128xf32>
      %cst_81 = arith.constant dense<0.000000e+00> : vector<8x128xf32>
      %201 = tpu.matmul %133, %200, %cst_81 {dimension_numbers = #tpu.dot_dimension_numbers<[1], [0], [0], [1], [0, 0, 1, 1], [], []>} : vector<8x128xf32>, vector<128x128xf32>, vector<8x128xf32> -> vector<8x128xf32>
      %c0_82 = arith.constant 0 : index
      %c0_83 = arith.constant 0 : index
      %202 = vector.load %arg9[%c0_82, %c0_83] : memref<1x128xf32, #tpu.memory_space<vmem>>, vector<1x128xf32>
      %203 = vector.broadcast %202 : vector<1x128xf32> to vector<8x128xf32>
      %204 = arith.addf %201, %203 : vector<8x128xf32>
      %c3_84 = arith.constant 3 : index
      %c0_85 = arith.constant 0 : index
      %c0_86 = arith.constant 0 : index
      %205 = vector.load %arg10[%c3_84, %c0_85, %c0_86] : memref<6x8x128xf32, #tpu.memory_space<vmem>>, vector<1x8x128xf32>
      %206 = vector.shape_cast %205 : vector<1x8x128xf32> to vector<8x128xf32>
      %207 = vector.shape_cast %204 : vector<8x128xf32> to vector<1x8x128xf32>
      tpu.vector_store %arg10[%c3_84, %c0_85, %c0_86], %207 {strides = array<i32>} : memref<6x8x128xf32, #tpu.memory_space<vmem>>, vector<1x8x128xf32>,
    } else {
    }
    %c4 = arith.constant 4 : index
    %c0_58 = arith.constant 0 : index
    %c0_59 = arith.constant 0 : index
    %139 = vector.load %arg13[%c4, %c0_58, %c0_59] : memref<6x8x384xf32, #tpu.memory_space<vmem>>, vector<1x8x384xf32>
    %140 = vector.shape_cast %139 : vector<1x8x384xf32> to vector<8x384xf32>
    %cst_60 = arith.constant dense<0.000000e+00> : vector<8x384xf32>
    %141 = tpu.matmul %133, %7, %cst_60 {dimension_numbers = #tpu.dot_dimension_numbers<[1], [0], [0], [1], [0, 0, 1, 1], [], []>} : vector<8x128xf32>, vector<128x384xf32>, vector<8x384xf32> -> vector<8x384xf32>
    %142 = vector.extract_strided_slice %140 {offsets = [0, 0], sizes = [8, 256], strides = [1, 1]} : vector<8x384xf32> to vector<8x256xf32>
    %143 = vector.extract_strided_slice %141 {offsets = [0, 0], sizes = [8, 256], strides = [1, 1]} : vector<8x384xf32> to vector<8x256xf32>
    %144 = arith.addf %142, %143 : vector<8x256xf32>
    %145 = arith.negf %144 : vector<8x256xf32>
    %146 = math.exp %145 : vector<8x256xf32>
    %cst_61 = arith.constant 1.000000e+00 : f32
    %147 = vector.broadcast %cst_61 : f32 to vector<8x256xf32>
    %148 = arith.addf %147, %146 : vector<8x256xf32>
    %149 = arith.divf %147, %148 : vector<8x256xf32>
    %150 = vector.extract_strided_slice %149 {offsets = [0, 0], sizes = [8, 128], strides = [1, 1]} : vector<8x256xf32> to vector<8x128xf32>
    %151 = vector.extract_strided_slice %149 {offsets = [0, 128], sizes = [8, 128], strides = [1, 1]} : vector<8x256xf32> to vector<8x128xf32>
    %152 = vector.extract_strided_slice %140 {offsets = [0, 256], sizes = [8, 128], strides = [1, 1]} : vector<8x384xf32> to vector<8x128xf32>
    %153 = vector.extract_strided_slice %141 {offsets = [0, 256], sizes = [8, 128], strides = [1, 1]} : vector<8x384xf32> to vector<8x128xf32>
    %154 = arith.addf %153, %13 : vector<8x128xf32>
    %155 = arith.mulf %150, %154 : vector<8x128xf32>
    %156 = arith.addf %152, %155 : vector<8x128xf32>
    %157 = math.tanh %156 : vector<8x128xf32>
    %cst_62 = arith.constant 1.000000e+00 : f32
    %158 = vector.broadcast %cst_62 : f32 to vector<8x128xf32>
    %159 = arith.subf %158, %151 : vector<8x128xf32>
    %160 = arith.mulf %159, %157 : vector<8x128xf32>
    %161 = arith.mulf %151, %133 : vector<8x128xf32>
    %162 = arith.addf %160, %161 : vector<8x128xf32>
    %c4_63 = arith.constant 4 : index
    %c0_64 = arith.constant 0 : index
    %c0_65 = arith.constant 0 : index
    %163 = vector.load %arg12[%c4_63, %c0_64, %c0_65] : memref<6x8x128xf32, #tpu.memory_space<vmem>>, vector<1x8x128xf32>
    %164 = vector.shape_cast %163 : vector<1x8x128xf32> to vector<8x128xf32>
    %165 = vector.shape_cast %162 : vector<8x128xf32> to vector<1x8x128xf32>
    tpu.vector_store %arg12[%c4_63, %c0_64, %c0_65], %165 {strides = array<i32>} : memref<6x8x128xf32, #tpu.memory_space<vmem>>, vector<1x8x128xf32>,
    %166 = arith.extui %0 : i1 to i32
    %c0_i32_66 = arith.constant 0 : i32
    %167 = arith.cmpi ne, %166, %c0_i32_66 : i32
    scf.if %167 {
      %c0_79 = arith.constant 0 : index
      %c0_80 = arith.constant 0 : index
      %200 = vector.load %arg8[%c0_79, %c0_80] : memref<128x128xf32, #tpu.memory_space<vmem>>, vector<128x128xf32>
      %cst_81 = arith.constant dense<0.000000e+00> : vector<8x128xf32>
      %201 = tpu.matmul %162, %200, %cst_81 {dimension_numbers = #tpu.dot_dimension_numbers<[1], [0], [0], [1], [0, 0, 1, 1], [], []>} : vector<8x128xf32>, vector<128x128xf32>, vector<8x128xf32> -> vector<8x128xf32>
      %c0_82 = arith.constant 0 : index
      %c0_83 = arith.constant 0 : index
      %202 = vector.load %arg9[%c0_82, %c0_83] : memref<1x128xf32, #tpu.memory_space<vmem>>, vector<1x128xf32>
      %203 = vector.broadcast %202 : vector<1x128xf32> to vector<8x128xf32>
      %204 = arith.addf %201, %203 : vector<8x128xf32>
      %c4_84 = arith.constant 4 : index
      %c0_85 = arith.constant 0 : index
      %c0_86 = arith.constant 0 : index
      %205 = vector.load %arg10[%c4_84, %c0_85, %c0_86] : memref<6x8x128xf32, #tpu.memory_space<vmem>>, vector<1x8x128xf32>
      %206 = vector.shape_cast %205 : vector<1x8x128xf32> to vector<8x128xf32>
      %207 = vector.shape_cast %204 : vector<8x128xf32> to vector<1x8x128xf32>
      tpu.vector_store %arg10[%c4_84, %c0_85, %c0_86], %207 {strides = array<i32>} : memref<6x8x128xf32, #tpu.memory_space<vmem>>, vector<1x8x128xf32>,
    } else {
    }
    %c5 = arith.constant 5 : index
    %c0_67 = arith.constant 0 : index
    %c0_68 = arith.constant 0 : index
    %168 = vector.load %arg13[%c5, %c0_67, %c0_68] : memref<6x8x384xf32, #tpu.memory_space<vmem>>, vector<1x8x384xf32>
    %169 = vector.shape_cast %168 : vector<1x8x384xf32> to vector<8x384xf32>
    %cst_69 = arith.constant dense<0.000000e+00> : vector<8x384xf32>
    %170 = tpu.matmul %162, %7, %cst_69 {dimension_numbers = #tpu.dot_dimension_numbers<[1], [0], [0], [1], [0, 0, 1, 1], [], []>} : vector<8x128xf32>, vector<128x384xf32>, vector<8x384xf32> -> vector<8x384xf32>
    %171 = vector.extract_strided_slice %169 {offsets = [0, 0], sizes = [8, 256], strides = [1, 1]} : vector<8x384xf32> to vector<8x256xf32>
    %172 = vector.extract_strided_slice %170 {offsets = [0, 0], sizes = [8, 256], strides = [1, 1]} : vector<8x384xf32> to vector<8x256xf32>
    %173 = arith.addf %171, %172 : vector<8x256xf32>
    %174 = arith.negf %173 : vector<8x256xf32>
    %175 = math.exp %174 : vector<8x256xf32>
    %cst_70 = arith.constant 1.000000e+00 : f32
    %176 = vector.broadcast %cst_70 : f32 to vector<8x256xf32>
    %177 = arith.addf %176, %175 : vector<8x256xf32>
    %178 = arith.divf %176, %177 : vector<8x256xf32>
    %179 = vector.extract_strided_slice %178 {offsets = [0, 0], sizes = [8, 128], strides = [1, 1]} : vector<8x256xf32> to vector<8x128xf32>
    %180 = vector.extract_strided_slice %178 {offsets = [0, 128], sizes = [8, 128], strides = [1, 1]} : vector<8x256xf32> to vector<8x128xf32>
    %181 = vector.extract_strided_slice %169 {offsets = [0, 256], sizes = [8, 128], strides = [1, 1]} : vector<8x384xf32> to vector<8x128xf32>
    %182 = vector.extract_strided_slice %170 {offsets = [0, 256], sizes = [8, 128], strides = [1, 1]} : vector<8x384xf32> to vector<8x128xf32>
    %183 = arith.addf %182, %13 : vector<8x128xf32>
    %184 = arith.mulf %179, %183 : vector<8x128xf32>
    %185 = arith.addf %181, %184 : vector<8x128xf32>
    %186 = math.tanh %185 : vector<8x128xf32>
    %cst_71 = arith.constant 1.000000e+00 : f32
    %187 = vector.broadcast %cst_71 : f32 to vector<8x128xf32>
    %188 = arith.subf %187, %180 : vector<8x128xf32>
    %189 = arith.mulf %188, %186 : vector<8x128xf32>
    %190 = arith.mulf %180, %162 : vector<8x128xf32>
    %191 = arith.addf %189, %190 : vector<8x128xf32>
    %c5_72 = arith.constant 5 : index
    %c0_73 = arith.constant 0 : index
    %c0_74 = arith.constant 0 : index
    %192 = vector.load %arg12[%c5_72, %c0_73, %c0_74] : memref<6x8x128xf32, #tpu.memory_space<vmem>>, vector<1x8x128xf32>
    %193 = vector.shape_cast %192 : vector<1x8x128xf32> to vector<8x128xf32>
    %194 = vector.shape_cast %191 : vector<8x128xf32> to vector<1x8x128xf32>
    tpu.vector_store %arg12[%c5_72, %c0_73, %c0_74], %194 {strides = array<i32>} : memref<6x8x128xf32, #tpu.memory_space<vmem>>, vector<1x8x128xf32>,
    %195 = arith.extui %0 : i1 to i32
    %c0_i32_75 = arith.constant 0 : i32
    %196 = arith.cmpi ne, %195, %c0_i32_75 : i32
    scf.if %196 {
      %c0_79 = arith.constant 0 : index
      %c0_80 = arith.constant 0 : index
      %200 = vector.load %arg8[%c0_79, %c0_80] : memref<128x128xf32, #tpu.memory_space<vmem>>, vector<128x128xf32>
      %cst_81 = arith.constant dense<0.000000e+00> : vector<8x128xf32>
      %201 = tpu.matmul %191, %200, %cst_81 {dimension_numbers = #tpu.dot_dimension_numbers<[1], [0], [0], [1], [0, 0, 1, 1], [], []>} : vector<8x128xf32>, vector<128x128xf32>, vector<8x128xf32> -> vector<8x128xf32>
      %c0_82 = arith.constant 0 : index
      %c0_83 = arith.constant 0 : index
      %202 = vector.load %arg9[%c0_82, %c0_83] : memref<1x128xf32, #tpu.memory_space<vmem>>, vector<1x128xf32>
      %203 = vector.broadcast %202 : vector<1x128xf32> to vector<8x128xf32>
      %204 = arith.addf %201, %203 : vector<8x128xf32>
      %c5_84 = arith.constant 5 : index
      %c0_85 = arith.constant 0 : index
      %c0_86 = arith.constant 0 : index
      %205 = vector.load %arg10[%c5_84, %c0_85, %c0_86] : memref<6x8x128xf32, #tpu.memory_space<vmem>>, vector<1x8x128xf32>
      %206 = vector.shape_cast %205 : vector<1x8x128xf32> to vector<8x128xf32>
      %207 = vector.shape_cast %204 : vector<8x128xf32> to vector<1x8x128xf32>
      tpu.vector_store %arg10[%c5_84, %c0_85, %c0_86], %207 {strides = array<i32>} : memref<6x8x128xf32, #tpu.memory_space<vmem>>, vector<1x8x128xf32>,
    } else {
    }
    %c0_76 = arith.constant 0 : index
    %c0_77 = arith.constant 0 : index
    %c0_78 = arith.constant 0 : index
    %197 = vector.load %arg11[%c0_76, %c0_77, %c0_78] : memref<1x8x128xf32, #tpu.memory_space<vmem>>, vector<1x8x128xf32>
    %198 = vector.shape_cast %197 : vector<1x8x128xf32> to vector<8x128xf32>
    %199 = vector.shape_cast %191 : vector<8x128xf32> to vector<1x8x128xf32>
    tpu.vector_store %arg11[%c0_76, %c0_77, %c0_78], %199 {strides = array<i32>} : memref<1x8x128xf32, #tpu.memory_space<vmem>>, vector<1x8x128xf32>,
    return
  }
  func.func @transform_0(%arg0: i32, %arg1: memref<6x8xi32, #tpu.memory_space<smem>>) -> (i32, i32, i32) {
    %c0_i32 = arith.constant 0 : i32
    %c0_i32_0 = arith.constant 0 : i32
    %c0_i32_1 = arith.constant 0 : i32
    %c0_i32_2 = arith.constant 0 : i32
    return %c0_i32, %c0_i32_0, %c0_i32_1 : i32, i32, i32
  }
  func.func @transform_1(%arg0: i32, %arg1: memref<6x8xi32, #tpu.memory_space<smem>>) -> (i32, i32, i32) {
    %c0_i32 = arith.constant 0 : i32
    %c0_i32_0 = arith.constant 0 : i32
    %c0_i32_1 = arith.constant 0 : i32
    return %arg0, %c0_i32, %c0_i32_0 : i32, i32, i32
  }
  func.func @transform_2(%arg0: i32, %arg1: memref<6x8xi32, #tpu.memory_space<smem>>) -> (i32, i32, i32) {
    %c0_i32 = arith.constant 0 : i32
    %c0_i32_0 = arith.constant 0 : i32
    %c0_i32_1 = arith.constant 0 : i32
    return %arg0, %c0_i32, %c0_i32_0 : i32, i32, i32
  }
  func.func @transform_3(%arg0: i32, %arg1: memref<6x8xi32, #tpu.memory_space<smem>>) -> (i32, i32, i32) {
    %c0_i32 = arith.constant 0 : i32
    %c0_i32_0 = arith.constant 0 : i32
    %c0_i32_1 = arith.constant 0 : i32
    return %arg0, %c0_i32, %c0_i32_0 : i32, i32, i32
  }
  func.func @transform_4(%arg0: i32, %arg1: memref<6x8xi32, #tpu.memory_space<smem>>) -> (i32, i32, i32) {
    %c0_i32 = arith.constant 0 : i32
    %c0_i32_0 = arith.constant 0 : i32
    %c0_i32_1 = arith.constant 0 : i32
    return %arg0, %c0_i32, %c0_i32_0 : i32, i32, i32
  }
  func.func @transform_5(%arg0: i32, %arg1: memref<6x8xi32, #tpu.memory_space<smem>>) -> (i32, i32, i32) {
    %c0_i32 = arith.constant 0 : i32
    %c0_i32_0 = arith.constant 0 : i32
    %c0_i32_1 = arith.constant 0 : i32
    return %arg0, %c0_i32, %c0_i32_0 : i32, i32, i32
  }
  func.func @transform_6(%arg0: i32, %arg1: memref<6x8xi32, #tpu.memory_space<smem>>) -> (i32, i32) {
    %c0_i32 = arith.constant 0 : i32
    %c0_i32_0 = arith.constant 0 : i32
    %c0_i32_1 = arith.constant 0 : i32
    return %c0_i32, %c0_i32_0 : i32, i32
  }
  func.func @transform_7(%arg0: i32, %arg1: memref<6x8xi32, #tpu.memory_space<smem>>) -> (i32, i32) {
    %c0_i32 = arith.constant 0 : i32
    %c0_i32_0 = arith.constant 0 : i32
    %c0_i32_1 = arith.constant 0 : i32
    return %c0_i32, %c0_i32_0 : i32, i32
  }
  func.func @transform_8(%arg0: i32, %arg1: memref<6x8xi32, #tpu.memory_space<smem>>) -> (i32, i32, i32) {
    %c0_i32 = arith.constant 0 : i32
    %c0_i32_0 = arith.constant 0 : i32
    %c0_i32_1 = arith.constant 0 : i32
    %c0_i32_2 = arith.constant 0 : i32
    return %c0_i32, %c0_i32_0, %c0_i32_1 : i32, i32, i32
  }
  func.func @transform_9(%arg0: i32, %arg1: memref<6x8xi32, #tpu.memory_space<smem>>) -> (i32, i32, i32) {
    %c0_i32 = arith.constant 0 : i32
    %c0_i32_0 = arith.constant 0 : i32
    %c0_i32_1 = arith.constant 0 : i32
    return %arg0, %c0_i32, %c0_i32_0 : i32, i32, i32
  }
}

</mosaic_0001>

<llo_original>
// kernel: model_forward.1
$region0: #{model_forward.1}
  #allocation0 [shape = 'u32[]', space=smem, size = 0x4, offset = 0x4, fixed_abs, tag = 'smem constant byte address 0x4 - core index']
  #allocation1 [shape = 'u32[144,128]{1,0:T(1,128)}', space=vmem, size = 0x12000, scoped, tag = 'internal scratch']
  #allocation2 [shape = 'f32[6,8,128]{2,1,0:T(8,128)}', space=vmem, size = 0x6000, scoped, tag = 'scratch operand']
  #allocation3 [shape = 'f32[6,8,384]{2,1,0:T(8,128)}', space=vmem, size = 0x12000, scoped, tag = 'scratch operand']
  #allocation4 [shape = 's32[1]{0}', space=sflag, size = 0x4, scoped, tag = 'scoped memory for model_forward.1']
  #allocation5 [shape = 'u8[4096]{0}', space=smem, size = 0x1000, scoped, tag = 'prefetched SMEM operand 0']
  %s0 = inlined_call_operand.hbm [shape: s32[6,8], index: 0, kind: input, shape index: {}]
  %s1 = inlined_call_operand.hbm [shape: f32[96,1,128], index: 1, kind: input, shape index: {}]
  %s2 = inlined_call_operand.vmem [shape: f32[3,8,128], index: 2, kind: input, shape index: {}]
  %s3 = inlined_call_operand.hbm [shape: f32[3,128,384], index: 3, kind: input, shape index: {}]
  %s4 = inlined_call_operand.hbm [shape: f32[3,128,384], index: 4, kind: input, shape index: {}]
  %s5 = inlined_call_operand.hbm [shape: f32[3,1,384], index: 5, kind: input, shape index: {}]
  %s6 = inlined_call_operand.hbm [shape: f32[3,1,128], index: 6, kind: input, shape index: {}]
  %s7 = inlined_call_operand.hbm [shape: f32[128,128], index: 7, kind: input, shape index: {}]
  %s8 = inlined_call_operand.vmem [shape: f32[1,128], index: 8, kind: input, shape index: {}]
  %s9 = inlined_call_operand.hbm [shape: f32[6,8,128], index: 9, kind: output, shape index: {0}]
  %s10 = inlined_call_operand.hbm [shape: f32[3,8,128], index: 10, kind: output, shape index: {1}]
  %11 = xla_tuple %s9, %s10
  %s12 = sld [smem:[#allocation0]]
  $region125: #{model_forward.1} parent=0
    _
  %s14 = ssub.s32 1, %s12
  %s15 = scalar_select 0, %s14, %s12
  %17 = dma.hbm_to_smem %s0, 128, [#allocation5], [#allocation4]
  %18 = dma.done [#allocation4], 128
  %19 = sfence
  $region1: #{model_forward.1} parent=0
    #allocation6 [shape = 'u8[49152]{0}', space=vmem, size = 0xc000, scoped, tag = 'input window, operand 1, single buffered']
    #allocation7 [shape = 's32[2]{0}', space=sflag, size = 0x8, scoped, tag = 'scoped memory for model_forward.1']
    #allocation8 [shape = 's32[2]{0}', space=sflag, size = 0x8, scoped, tag = 'scoped memory for model_forward.1']
    #allocation9 [shape = 'u8[393216]{0}', space=vmem, size = 0x60000, scoped, tag = 'input window, operand 3']
    #allocation10 [shape = 's32[2]{0}', space=sflag, size = 0x8, scoped, tag = 'scoped memory for model_forward.1']
    #allocation11 [shape = 'u8[393216]{0}', space=vmem, size = 0x60000, scoped, tag = 'input window, operand 4']
    #allocation12 [shape = 'u8[3072]{0}', space=vmem, size = 0xc00, scoped, tag = 'input window, operand 5']
    #allocation13 [shape = 's32[2]{0}', space=sflag, size = 0x8, scoped, tag = 'scoped memory for model_forward.1']
    #allocation14 [shape = 'u8[1024]{0}', space=vmem, size = 0x400, scoped, tag = 'input window, operand 6']
    #allocation15 [shape = 'u8[65536]{0}', space=vmem, size = 0x10000, scoped, tag = 'input window, operand 7, single buffered']
    #allocation16 [shape = 's32[1]{0}', space=sflag, size = 0x4, scoped, tag = 'scoped memory for model_forward.1']
    #allocation17 [shape = 'u8[24576]{0}', space=vmem, size = 0x6000, scoped, tag = 'output window, operand 0, single buffered']
    #allocation18 [shape = 'u8[8192]{0}', space=vmem, size = 0x2000, scoped, tag = 'output window, operand 1']
    #allocation19 [shape = 's32[2]{0}', space=sflag, size = 0x8, scoped, tag = 'scoped memory for model_forward.1']
    %20 = vsyncpa [#allocation7], 0
    %21 = vsyncpa [#allocation10], 0
    %s22 = scalar_lea.sflag [#allocation10], 1
    %23 = vsyncpa %s22, 0
    %24 = vsyncpa [#allocation13], 0
    %s25 = scalar_lea.sflag [#allocation13], 1
    %26 = vsyncpa %s25, 0
    %27 = vsyncpa [#allocation16], 0
    %28 = vsyncpa [#allocation8], 0
    %29 = vsyncpa [#allocation19], 0
    %s30 = scalar_lea.sflag [#allocation19], 1
    %31 = vsyncpa %s30, 0
    loop: start=0, step=1, limit=5
    $region2: #{model_forward.1} parent=1 // loop_pre_header
      _
    $region3: #{model_forward.1} parent=1 // loop_header
      %s33 = sphi 0, %s37
      %p34 = scmp.ge.s32.totalorder %s33, 5
      %s41 = sphi 0, %s41
      %s43 = sphi 0, %s41
      %s44 = sphi 0, %s43
      %s58 = sphi 0, %s44
      %s64 = sphi 0, %s66
      %s67 = sphi 0, %s64
      %s68 = sphi 0, %s67
      %s84 = sphi 0, %s68
      %s90 = sphi 0, %s92
      %s93 = sphi 0, %s90
      %s94 = sphi 0, %s93
      %s110 = sphi 0, %s94
      %s116 = sphi 0, %s118
      %s119 = sphi 0, %s116
      %s120 = sphi 0, %s119
      %s136 = sphi 0, %s120
      %s142 = sphi 0, %s144
      %s145 = sphi 0, %s142
      %s146 = sphi 0, %s145
      %s162 = sphi 0, %s146
      %s168 = sphi 0, %s170
      %s171 = sphi 0, %s168
      %s172 = sphi 0, %s171
      %s188 = sphi 0, %s172
      %s192 = sphi 0, %s192
      %s194 = sphi 0, %s192
      %s195 = sphi 0, %s194
      %s209 = sphi 0, %s195
      %s213 = sphi 0, %s213
      %s215 = sphi 0, %s213
      %s216 = sphi 0, %s215
      %s230 = sphi 0, %s216
      %s234 = sphi 0, %s234
      %s236 = sphi 0, %s234
      %s237 = sphi 0, %s236
      %s251 = sphi 0, %s237
      %s257 = sphi 0, %s259
      %s260 = sphi 0, %s257
      %s261 = sphi 0, %s260
      %s277 = sphi 0, %s261
    $region4: #{model_forward.1} parent=1 // loop_header_branch
      %36 = sbr.rel (%p34) target = $region8
    $region5: #{model_forward.1} parent=1 // loop_body
      %s38 = ssub.s32 %s33, 1
      %s39 = ssub.s32 %s33, 2
      %s40 = sadd.s32 %s33, 1
      %s42 = sadd.s32 %s41, 1
      %p45 = scmp.eq.s32.totalorder %s33, 2
      %p46 = scmp.ne.s32.totalorder %s41, %s43
      %p47 = scmp.eq.s32.totalorder %s33, 0
      %p48 = por %p46, %p47
      %p49 = scmp.ne.s32.totalorder %s41, %s43
      %p50 = scmp.eq.s32.totalorder %s38, 2
      %p51 = por %p49, %p50
      %p52 = scmp.ne.s32.totalorder %s43, %s44
      %p53 = scmp.eq.s32.totalorder %s38, 0
      %p54 = por %p52, %p53
      %p55 = scmp.ne.s32.totalorder %s43, %s44
      %p56 = scmp.eq.s32.totalorder %s39, 2
      %p57 = por %p55, %p56
      %p59 = scmp.ne.s32.totalorder %s44, %s58
      %p60 = scmp.eq.s32.totalorder %s39, 0
      %p61 = por %p59, %p60
      %s62 = ssub.s32 %s33, %s40
      %p63 = scmp.eq.s32.totalorder %s62, 0
      %s65 = sadd.s32 %s64, 1
      %s66 = scalar_select %p63, %s64, %s65
      %p69 = pneg %p63
      %p70 = scmp.eq.s32.totalorder %s33, 2
      %p71 = por %p69, %p70
      %p72 = scmp.ne.s32.totalorder %s64, %s67
      %p73 = scmp.eq.s32.totalorder %s33, 0
      %p74 = por %p72, %p73
      %p75 = scmp.ne.s32.totalorder %s64, %s67
      %p76 = scmp.eq.s32.totalorder %s38, 2
      %p77 = por %p75, %p76
      %p78 = scmp.ne.s32.totalorder %s67, %s68
      %p79 = scmp.eq.s32.totalorder %s38, 0
      %p80 = por %p78, %p79
      %p81 = scmp.ne.s32.totalorder %s67, %s68
      %p82 = scmp.eq.s32.totalorder %s39, 2
      %p83 = por %p81, %p82
      %p85 = scmp.ne.s32.totalorder %s68, %s84
      %p86 = scmp.eq.s32.totalorder %s39, 0
      %p87 = por %p85, %p86
      %s88 = ssub.s32 %s33, %s40
      %p89 = scmp.eq.s32.totalorder %s88, 0
      %s91 = sadd.s32 %s90, 1
      %s92 = scalar_select %p89, %s90, %s91
      %p95 = pneg %p89
      %p96 = scmp.eq.s32.totalorder %s33, 2
      %p97 = por %p95, %p96
      %p98 = scmp.ne.s32.totalorder %s90, %s93
      %p99 = scmp.eq.s32.totalorder %s33, 0
      %p100 = por %p98, %p99
      %p101 = scmp.ne.s32.totalorder %s90, %s93
      %p102 = scmp.eq.s32.totalorder %s38, 2
      %p103 = por %p101, %p102
      %p104 = scmp.ne.s32.totalorder %s93, %s94
      %p105 = scmp.eq.s32.totalorder %s38, 0
      %p106 = por %p104, %p105
      %p107 = scmp.ne.s32.totalorder %s93, %s94
      %p108 = scmp.eq.s32.totalorder %s39, 2
      %p109 = por %p107, %p108
      %p111 = scmp.ne.s32.totalorder %s94, %s110
      %p112 = scmp.eq.s32.totalorder %s39, 0
      %p113 = por %p111, %p112
      %s114 = ssub.s32 %s33, %s40
      %p115 = scmp.eq.s32.totalorder %s114, 0
      %s117 = sadd.s32 %s116, 1
      %s118 = scalar_select %p115, %s116, %s117
      %p121 = pneg %p115
      %p122 = scmp.eq.s32.totalorder %s33, 2
      %p123 = por %p121, %p122
      %p124 = scmp.ne.s32.totalorder %s116, %s119
      %p125 = scmp.eq.s32.totalorder %s33, 0
      %p126 = por %p124, %p125
      %p127 = scmp.ne.s32.totalorder %s116, %s119
      %p128 = scmp.eq.s32.totalorder %s38, 2
      %p129 = por %p127, %p128
      %p130 = scmp.ne.s32.totalorder %s119, %s120
      %p131 = scmp.eq.s32.totalorder %s38, 0
      %p132 = por %p130, %p131
      %p133 = scmp.ne.s32.totalorder %s119, %s120
      %p134 = scmp.eq.s32.totalorder %s39, 2
      %p135 = por %p133, %p134
      %p137 = scmp.ne.s32.totalorder %s120, %s136
      %p138 = scmp.eq.s32.totalorder %s39, 0
      %p139 = por %p137, %p138
      %s140 = ssub.s32 %s33, %s40
      %p141 = scmp.eq.s32.totalorder %s140, 0
      %s143 = sadd.s32 %s142, 1
      %s144 = scalar_select %p141, %s142, %s143
      %p147 = pneg %p141
      %p148 = scmp.eq.s32.totalorder %s33, 2
      %p149 = por %p147, %p148
      %p150 = scmp.ne.s32.totalorder %s142, %s145
      %p151 = scmp.eq.s32.totalorder %s33, 0
      %p152 = por %p150, %p151
      %p153 = scmp.ne.s32.totalorder %s142, %s145
      %p154 = scmp.eq.s32.totalorder %s38, 2
      %p155 = por %p153, %p154
      %p156 = scmp.ne.s32.totalorder %s145, %s146
      %p157 = scmp.eq.s32.totalorder %s38, 0
      %p158 = por %p156, %p157
      %p159 = scmp.ne.s32.totalorder %s145, %s146
      %p160 = scmp.eq.s32.totalorder %s39, 2
      %p161 = por %p159, %p160
      %p163 = scmp.ne.s32.totalorder %s146, %s162
      %p164 = scmp.eq.s32.totalorder %s39, 0
      %p165 = por %p163, %p164
      %s166 = ssub.s32 %s33, %s40
      %p167 = scmp.eq.s32.totalorder %s166, 0
      %s169 = sadd.s32 %s168, 1
      %s170 = scalar_select %p167, %s168, %s169
      %p173 = pneg %p167
      %p174 = scmp.eq.s32.totalorder %s33, 2
      %p175 = por %p173, %p174
      %p176 = scmp.ne.s32.totalorder %s168, %s171
      %p177 = scmp.eq.s32.totalorder %s33, 0
      %p178 = por %p176, %p177
      %p179 = scmp.ne.s32.totalorder %s168, %s171
      %p180 = scmp.eq.s32.totalorder %s38, 2
      %p181 = por %p179, %p180
      %p182 = scmp.ne.s32.totalorder %s171, %s172
      %p183 = scmp.eq.s32.totalorder %s38, 0
      %p184 = por %p182, %p183
      %p185 = scmp.ne.s32.totalorder %s171, %s172
      %p186 = scmp.eq.s32.totalorder %s39, 2
      %p187 = por %p185, %p186
      %p189 = scmp.ne.s32.totalorder %s172, %s188
      %p190 = scmp.eq.s32.totalorder %s39, 0
      %p191 = por %p189, %p190
      %s193 = sadd.s32 %s192, 1
      %p196 = scmp.eq.s32.totalorder %s33, 2
      %p197 = scmp.ne.s32.totalorder %s192, %s194
      %p198 = scmp.eq.s32.totalorder %s33, 0
      %p199 = por %p197, %p198
      %p200 = scmp.ne.s32.totalorder %s192, %s194
      %p201 = scmp.eq.s32.totalorder %s38, 2
      %p202 = por %p200, %p201
      %p203 = scmp.ne.s32.totalorder %s194, %s195
      %p204 = scmp.eq.s32.totalorder %s38, 0
      %p205 = por %p203, %p204
      %p206 = scmp.ne.s32.totalorder %s194, %s195
      %p207 = scmp.eq.s32.totalorder %s39, 2
      %p208 = por %p206, %p207
      %p210 = scmp.ne.s32.totalorder %s195, %s209
      %p211 = scmp.eq.s32.totalorder %s39, 0
      %p212 = por %p210, %p211
      %s214 = sadd.s32 %s213, 1
      %p217 = scmp.eq.s32.totalorder %s33, 2
      %p218 = scmp.ne.s32.totalorder %s213, %s215
      %p219 = scmp.eq.s32.totalorder %s33, 0
      %p220 = por %p218, %p219
      %p221 = scmp.ne.s32.totalorder %s213, %s215
      %p222 = scmp.eq.s32.totalorder %s38, 2
      %p223 = por %p221, %p222
      %p224 = scmp.ne.s32.totalorder %s215, %s216
      %p225 = scmp.eq.s32.totalorder %s38, 0
      %p226 = por %p224, %p225
      %p227 = scmp.ne.s32.totalorder %s215, %s216
      %p228 = scmp.eq.s32.totalorder %s39, 2
      %p229 = por %p227, %p228
      %p231 = scmp.ne.s32.totalorder %s216, %s230
      %p232 = scmp.eq.s32.totalorder %s39, 0
      %p233 = por %p231, %p232
      %s235 = sadd.s32 %s234, 1
      %p238 = scmp.eq.s32.totalorder %s33, 2
      %p239 = scmp.ne.s32.totalorder %s234, %s236
      %p240 = scmp.eq.s32.totalorder %s33, 0
      %p241 = por %p239, %p240
      %p242 = scmp.ne.s32.totalorder %s234, %s236
      %p243 = scmp.eq.s32.totalorder %s38, 2
      %p244 = por %p242, %p243
      %p245 = scmp.ne.s32.totalorder %s236, %s237
      %p246 = scmp.eq.s32.totalorder %s38, 0
      %p247 = por %p245, %p246
      %p248 = scmp.ne.s32.totalorder %s236, %s237
      %p249 = scmp.eq.s32.totalorder %s39, 2
      %p250 = por %p248, %p249
      %p252 = scmp.ne.s32.totalorder %s237, %s251
      %p253 = scmp.eq.s32.totalorder %s39, 0
      %p254 = por %p252, %p253
      %s255 = ssub.s32 %s33, %s40
      %p256 = scmp.eq.s32.totalorder %s255, 0
      %s258 = sadd.s32 %s257, 1
      %s259 = scalar_select %p256, %s257, %s258
      %p262 = pneg %p256
      %p263 = scmp.eq.s32.totalorder %s33, 2
      %p264 = por %p262, %p263
      %p265 = scmp.ne.s32.totalorder %s257, %s260
      %p266 = scmp.eq.s32.totalorder %s33, 0
      %p267 = por %p265, %p266
      %p268 = scmp.ne.s32.totalorder %s257, %s260
      %p269 = scmp.eq.s32.totalorder %s38, 2
      %p270 = por %p268, %p269
      %p271 = scmp.ne.s32.totalorder %s260, %s261
      %p272 = scmp.eq.s32.totalorder %s38, 0
      %p273 = por %p271, %p272
      %p274 = scmp.ne.s32.totalorder %s260, %s261
      %p275 = scmp.eq.s32.totalorder %s39, 2
      %p276 = por %p274, %p275
      %p278 = scmp.ne.s32.totalorder %s261, %s277
      %p279 = scmp.eq.s32.totalorder %s39, 0
      %p280 = por %p278, %p279
      %p281 = scmp.le.s32.totalorder 1, %s33
      %p282 = scmp.lt.s32.totalorder %s33, 4
      %p283 = pnand %p281, %p282
      %p284 = pneg %p283
      // Predicated region
      $region9: #{model_forward.1} parent=5 // pred_check
        _
      $region10: #{model_forward.1} parent=5 // pred_check_branch
        %286 = sbr.rel (%p283) target = $region12
      $region11: #{model_forward.1} parent=5 // pred_region
        %s287 = ssub.s32 %s33, 1
        // Predicated region
        $region13: #{model_forward.1} parent=11 // pred_check
          %p288 = pneg %p54
        $region14: #{model_forward.1} parent=11 // pred_check_branch
          %290 = sbr.rel (%p288) target = $region16
        $region15: #{model_forward.1} parent=11 // pred_region
          %s292 = ssub.s32 1536, 1536
          %293 = vsyncadd [#allocation7], %s292
          %s294 = sshll.u32 [#allocation6], 4
          %s295 = int_to_ptr.vmem [resolvable:$true] %s294
          %300 = dma.hbm_to_vmem [thread:$0]  %s1, 1536, %s295, [#allocation7], 16, 16, 1
        $region16: #{model_forward.1} parent=11 // pred_fallthru
          _
        // Predicated region
        $region17: #{model_forward.1} parent=11 // pred_check
          %p301 = pneg %p205
        $region18: #{model_forward.1} parent=11 // pred_check_branch
          %303 = sbr.rel (%p301) target = $region20
        $region19: #{model_forward.1} parent=11 // pred_region
          %s305 = ssub.s32 2048, 2048
          %306 = vsyncadd [#allocation16], %s305
          %s307 = sshll.u32 [#allocation15], 4
          %s308 = int_to_ptr.vmem [resolvable:$true] %s307
          %313 = dma.hbm_to_vmem [thread:$0]  %s7, 2048, %s308, [#allocation16], 128, 128, 8
        $region20: #{model_forward.1} parent=11 // pred_fallthru
          _
        // Predicated region
        $region21: #{model_forward.1} parent=11 // pred_check
          %p314 = pneg %p226
        $region22: #{model_forward.1} parent=11 // pred_check_branch
          %316 = sbr.rel (%p314) target = $region24
        $region23: #{model_forward.1} parent=11 // pred_region
          _
        $region24: #{model_forward.1} parent=11 // pred_fallthru
          _
      $region12: #{model_forward.1} parent=5 // pred_fallthru
        _
      %p317 = scmp.lt.s32.totalorder %s33, 3
      // Predicated region
      $region25: #{model_forward.1} parent=5 // pred_check
        %p318 = pneg %p317
      $region26: #{model_forward.1} parent=5 // pred_check_branch
        %320 = sbr.rel (%p318) target = $region28
      $region27: #{model_forward.1} parent=5 // pred_region
        // Predicated region
        $region29: #{model_forward.1} parent=27 // pred_check
          %p321 = pneg %p74
        $region30: #{model_forward.1} parent=27 // pred_check_branch
          %323 = sbr.rel (%p321) target = $region32
        $region31: #{model_forward.1} parent=27 // pred_region
          %p324 = scmp.lt.s32.totalorder %s33, 2
          %s325 = scalar_select %p324, %s33, 2
          %s326 = smul.addr %s325, 8
          %s327 = scalar_lea.vmem %s2, %s326
        $region32: #{model_forward.1} parent=27 // pred_fallthru
          _
        // Predicated region
        $region33: #{model_forward.1} parent=27 // pred_check
          %p328 = pneg %p100
        $region34: #{model_forward.1} parent=27 // pred_check_branch
          %330 = sbr.rel (%p328) target = $region36
        $region35: #{model_forward.1} parent=27 // pred_region
          %s331 = sand.u32 %s33, 1
          %s332 = scalar_lea.sflag [#allocation10], %s331
          %s333 = sand.u32 %s90, 1
          %s334 = smul.addr %s333, 384
          %s335 = scalar_lea.vmem [#allocation9], %s334
          %s337 = ssub.s32 6144, 6144
          %338 = vsyncadd %s332, %s337
          %s339 = smul.addr %s33, 48
          %s340 = smul.addr %s339, 128
          %s341 = scalar_lea.hbm %s3, %s340
          %s342 = sshll.u32 %s335, 4
          %s343 = int_to_ptr.vmem [resolvable:$true] %s342
          %348 = dma.hbm_to_vmem [thread:$0]  %s341, 6144, %s343, %s332, 384, 384, 24
        $region36: #{model_forward.1} parent=27 // pred_fallthru
          _
        // Predicated region
        $region37: #{model_forward.1} parent=27 // pred_check
          %p349 = pneg %p126
        $region38: #{model_forward.1} parent=27 // pred_check_branch
          %351 = sbr.rel (%p349) target = $region40
        $region39: #{model_forward.1} parent=27 // pred_region
          %s352 = sand.u32 %s33, 1
          %s353 = scalar_lea.sflag [#allocation10], %s352
          %s354 = sand.u32 %s116, 1
          %s355 = smul.addr %s354, 384
          %s356 = scalar_lea.vmem [#allocation11], %s355
          %s358 = ssub.s32 6144, 6144
          %359 = vsyncadd %s353, %s358
          %s360 = smul.addr %s33, 48
          %s361 = smul.addr %s360, 128
          %s362 = scalar_lea.hbm %s4, %s361
          %s363 = sshll.u32 %s356, 4
          %s364 = int_to_ptr.vmem [resolvable:$true] %s363
          %369 = dma.hbm_to_vmem [thread:$0]  %s362, 6144, %s364, %s353, 384, 384, 24
        $region40: #{model_forward.1} parent=27 // pred_fallthru
          _
        // Predicated region
        $region41: #{model_forward.1} parent=27 // pred_check
          %p370 = pneg %p152
        $region42: #{model_forward.1} parent=27 // pred_check_branch
          %372 = sbr.rel (%p370) target = $region44
        $region43: #{model_forward.1} parent=27 // pred_region
          %s373 = sand.u32 %s33, 1
          %s374 = scalar_lea.sflag [#allocation13], %s373
          %s375 = sand.u32 %s142, 1
          %s376 = smul.addr %s375, 3
          %s377 = scalar_lea.vmem [#allocation12], %s376
          %s379 = ssub.s32 48, 48
          %380 = vsyncadd %s374, %s379
          %s381 = smul.addr %s33, 3
          %s382 = smul.addr %s381, 16
          %s383 = scalar_lea.hbm %s5, %s382
          %s385 = sshll.u32 %s377, 4
          %s386 = int_to_ptr.vmem [resolvable:$true] %s385
          %388 = dma.hbm_to_vmem [thread:$0]  %s383, 48, %s386, %s374
        $region44: #{model_forward.1} parent=27 // pred_fallthru
          _
        // Predicated region
        $region45: #{model_forward.1} parent=27 // pred_check
          %p389 = pneg %p178
        $region46: #{model_forward.1} parent=27 // pred_check_branch
          %391 = sbr.rel (%p389) target = $region48
        $region47: #{model_forward.1} parent=27 // pred_region
          %s392 = sand.u32 %s33, 1
          %s393 = scalar_lea.sflag [#allocation13], %s392
          %s394 = sand.u32 %s168, 1
          %s395 = scalar_lea.vmem [#allocation14], %s394
          %s397 = ssub.s32 16, 16
          %398 = vsyncadd %s393, %s397
          %s399 = smul.addr %s33, 16
          %s400 = scalar_lea.hbm %s6, %s399
          %s402 = sshll.u32 %s395, 4
          %s403 = int_to_ptr.vmem [resolvable:$true] %s402
          %405 = dma.hbm_to_vmem [thread:$0]  %s400, 16, %s403, %s393
        $region48: #{model_forward.1} parent=27 // pred_fallthru
          _
      $region28: #{model_forward.1} parent=5 // pred_fallthru
        _
      %p406 = scmp.le.s32.totalorder 1, %s33
      %p407 = scmp.lt.s32.totalorder %s33, 4
      %p408 = pnand %p406, %p407
      %p409 = pneg %p408
      // Predicated region
      $region49: #{model_forward.1} parent=5 // pred_check
        _
      $region50: #{model_forward.1} parent=5 // pred_check_branch
        %411 = sbr.rel (%p408) target = $region52
      $region51: #{model_forward.1} parent=5 // pred_region
        %s412 = ssub.s32 %s33, 1
        // Predicated region
        $region53: #{model_forward.1} parent=51 // pred_check
          %p413 = pneg %p54
        $region54: #{model_forward.1} parent=51 // pred_check_branch
          %415 = sbr.rel (%p413) target = $region56
        $region55: #{model_forward.1} parent=51 // pred_region
          %416 = dma.done [#allocation7], 1536
        $region56: #{model_forward.1} parent=51 // pred_fallthru
          _
        %s417 = sand.u32 %s38, 1
        %s418 = scalar_lea.sflag [#allocation10], %s417
        %s419 = sand.u32 %s93, 1
        %s420 = smul.addr %s419, 384
        %s421 = scalar_lea.vmem [#allocation9], %s420
        // Predicated region
        $region57: #{model_forward.1} parent=51 // pred_check
          %p422 = pneg %p106
        $region58: #{model_forward.1} parent=51 // pred_check_branch
          %424 = sbr.rel (%p422) target = $region60
        $region59: #{model_forward.1} parent=51 // pred_region
          %425 = dma.done %s418, 6144
        $region60: #{model_forward.1} parent=51 // pred_fallthru
          _
        %s426 = sand.u32 %s38, 1
        %s427 = scalar_lea.sflag [#allocation10], %s426
        %s428 = sand.u32 %s119, 1
        %s429 = smul.addr %s428, 384
        %s430 = scalar_lea.vmem [#allocation11], %s429
        // Predicated region
        $region61: #{model_forward.1} parent=51 // pred_check
          %p431 = pneg %p132
        $region62: #{model_forward.1} parent=51 // pred_check_branch
          %433 = sbr.rel (%p431) target = $region64
        $region63: #{model_forward.1} parent=51 // pred_region
          %434 = dma.done %s427, 6144
        $region64: #{model_forward.1} parent=51 // pred_fallthru
          _
        %s435 = sand.u32 %s38, 1
        %s436 = scalar_lea.sflag [#allocation13], %s435
        %s437 = sand.u32 %s145, 1
        %s438 = smul.addr %s437, 3
        %s439 = scalar_lea.vmem [#allocation12], %s438
        // Predicated region
        $region65: #{model_forward.1} parent=51 // pred_check
          %p440 = pneg %p158
        $region66: #{model_forward.1} parent=51 // pred_check_branch
          %442 = sbr.rel (%p440) target = $region68
        $region67: #{model_forward.1} parent=51 // pred_region
          %443 = dma.done %s436, 48
        $region68: #{model_forward.1} parent=51 // pred_fallthru
          _
        %s444 = sand.u32 %s38, 1
        %s445 = scalar_lea.sflag [#allocation13], %s444
        %s446 = sand.u32 %s171, 1
        %s447 = scalar_lea.vmem [#allocation14], %s446
        // Predicated region
        $region69: #{model_forward.1} parent=51 // pred_check
          %p448 = pneg %p184
        $region70: #{model_forward.1} parent=51 // pred_check_branch
          %450 = sbr.rel (%p448) target = $region72
        $region71: #{model_forward.1} parent=51 // pred_region
          %451 = dma.done %s445, 16
        $region72: #{model_forward.1} parent=51 // pred_fallthru
          _
        // Predicated region
        $region73: #{model_forward.1} parent=51 // pred_check
          %p452 = pneg %p205
        $region74: #{model_forward.1} parent=51 // pred_check_branch
          %454 = sbr.rel (%p452) target = $region76
        $region75: #{model_forward.1} parent=51 // pred_region
          %455 = dma.done [#allocation16], 2048
        $region76: #{model_forward.1} parent=51 // pred_fallthru
          _
        %p456 = pneg %p54
        %p457 = pneg %p51
        %p458 = scmp.lt.s32.totalorder %s38, 2
        %s459 = scalar_select %p458, %s38, 2
        %s460 = smul.addr %s459, 8
        %s461 = scalar_lea.vmem %s2, %s460
        %p462 = pneg %p80
        %p463 = pneg %p77
        %s464 = sand.u32 %s38, 1
        %s465 = scalar_lea.sflag [#allocation10], %s464
        %s466 = sand.u32 %s93, 1
        %s467 = smul.addr %s466, 384
        %s468 = scalar_lea.vmem [#allocation9], %s467
        %p469 = pneg %p106
        %p470 = pneg %p103
        %s471 = sand.u32 %s38, 1
        %s472 = scalar_lea.sflag [#allocation10], %s471
        %s473 = sand.u32 %s119, 1
        %s474 = smul.addr %s473, 384
        %s475 = scalar_lea.vmem [#allocation11], %s474
        %p476 = pneg %p132
        %p477 = pneg %p129
        %s478 = sand.u32 %s38, 1
        %s479 = scalar_lea.sflag [#allocation13], %s478
        %s480 = sand.u32 %s145, 1
        %s481 = smul.addr %s480, 3
        %s482 = scalar_lea.vmem [#allocation12], %s481
        %p483 = pneg %p158
        %p484 = pneg %p155
        %s485 = sand.u32 %s38, 1
        %s486 = scalar_lea.sflag [#allocation13], %s485
        %s487 = sand.u32 %s171, 1
        %s488 = scalar_lea.vmem [#allocation14], %s487
        %p489 = pneg %p184
        %p490 = pneg %p181
        %p491 = pneg %p205
        %p492 = pneg %p202
        %p493 = pneg %p226
        %p494 = pneg %p223
        %p495 = pneg %p247
        %p496 = pneg %p244
        %p497 = pneg %p273
        %p498 = pneg %p270
        %s499 = sand.u32 %s260, 1
        %s500 = scalar_lea.sflag [#allocation19], %s499
        %s501 = sand.u32 %s260, 1
        %s502 = smul.addr %s501, 8
        %s503 = scalar_lea.vmem [#allocation18], %s502
        %p504 = scmp.lt.s32.totalorder %s38, 2
        %s505 = scalar_select %p504, %s38, 2
        %s506 = smul.addr %s505, 8
        %s507 = scalar_lea.vmem %s2, %s506
        %p508 = scmp.eq.s32.totalorder %s38, 2
        %p509 = scmp.eq.s32.totalorder %s38, 0
        // Predicated region
        $region77: #{model_forward.1} parent=51 // pred_check
          %p510 = pneg %p509
        $region78: #{model_forward.1} parent=51 // pred_check_branch
          %512 = sbr.rel (%p510) target = $region80
        $region79: #{model_forward.1} parent=51 // pred_region
          %s513 = sld [smem:[#allocation5]]
          %s514 = scalar_lea.vmem [#allocation6], %s513
          %v515 = vld [vmem:[%s514] sm:$0x1]
          %516 = vst [vmem:[#allocation2] sm:$0x1] %v515
          %s517 = sld [smem:[#allocation5 + $0x1]]
          %s518 = scalar_lea.vmem [#allocation6], %s517
          %v519 = vld [vmem:[%s518] sm:$0x1]
          %520 = vst [vmem:[#allocation2 + $0x1] sm:$0x1] %v519
          %s521 = sld [smem:[#allocation5 + $0x2]]
          %s522 = scalar_lea.vmem [#allocation6], %s521
          %v523 = vld [vmem:[%s522] sm:$0x1]
          %524 = vst [vmem:[#allocation2 + $0x2] sm:$0x1] %v523
          %s525 = sld [smem:[#allocation5 + $0x3]]
          %s526 = scalar_lea.vmem [#allocation6], %s525
          %v527 = vld [vmem:[%s526] sm:$0x1]
          %528 = vst [vmem:[#allocation2 + $0x3] sm:$0x1] %v527
          %s529 = sld [smem:[#allocation5 + $0x4]]
          %s530 = scalar_lea.vmem [#allocation6], %s529
          %v531 = vld [vmem:[%s530] sm:$0x1]
          %532 = vst [vmem:[#allocation2 + $0x4] sm:$0x1] %v531
          %s533 = sld [smem:[#allocation5 + $0x5]]
          %s534 = scalar_lea.vmem [#allocation6], %s533
          %v535 = vld [vmem:[%s534] sm:$0x1]
          %536 = vst [vmem:[#allocation2 + $0x5] sm:$0x1] %v535
          %s537 = sld [smem:[#allocation5 + $0x6]]
          %s538 = scalar_lea.vmem [#allocation6], %s537
          %v539 = vld [vmem:[%s538] sm:$0x1]
          %540 = vst [vmem:[#allocation2 + $0x6] sm:$0x1] %v539
          %s541 = sld [smem:[#allocation5 + $0x7]]
          %s542 = scalar_lea.vmem [#allocation6], %s541
          %v543 = vld [vmem:[%s542] sm:$0x1]
          %544 = vst [vmem:[#allocation2 + $0x7] sm:$0x1] %v543
          %s545 = sld [smem:[#allocation5 + $0x80]]
          %s546 = scalar_lea.vmem [#allocation6], %s545
          %v547 = vld [vmem:[%s546] sm:$0x1]
          %s548 = scalar_lea.vmem [#allocation2], 8
          %549 = vst [vmem:[%s548] sm:$0x1] %v547
          %s550 = sld [smem:[#allocation5 + $0x81]]
          %s551 = scalar_lea.vmem [#allocation6], %s550
          %v552 = vld [vmem:[%s551] sm:$0x1]
          %553 = vst [vmem:[%s548 + $0x1] sm:$0x1] %v552
          %s554 = sld [smem:[#allocation5 + $0x82]]
          %s555 = scalar_lea.vmem [#allocation6], %s554
          %v556 = vld [vmem:[%s555] sm:$0x1]
          %557 = vst [vmem:[%s548 + $0x2] sm:$0x1] %v556
          %s558 = sld [smem:[#allocation5 + $0x83]]
          %s559 = scalar_lea.vmem [#allocation6], %s558
          %v560 = vld [vmem:[%s559] sm:$0x1]
          %561 = vst [vmem:[%s548 + $0x3] sm:$0x1] %v560
          %s562 = sld [smem:[#allocation5 + $0x84]]
          %s563 = scalar_lea.vmem [#allocation6], %s562
          %v564 = vld [vmem:[%s563] sm:$0x1]
          %565 = vst [vmem:[%s548 + $0x4] sm:$0x1] %v564
          %s566 = sld [smem:[#allocation5 + $0x85]]
          %s567 = scalar_lea.vmem [#allocation6], %s566
          %v568 = vld [vmem:[%s567] sm:$0x1]
          %569 = vst [vmem:[%s548 + $0x5] sm:$0x1] %v568
          %s570 = sld [smem:[#allocation5 + $0x86]]
          %s571 = scalar_lea.vmem [#allocation6], %s570
          %v572 = vld [vmem:[%s571] sm:$0x1]
          %573 = vst [vmem:[%s548 + $0x6] sm:$0x1] %v572
          %s574 = sld [smem:[#allocation5 + $0x87]]
          %s575 = scalar_lea.vmem [#allocation6], %s574
          %v576 = vld [vmem:[%s575] sm:$0x1]
          %577 = vst [vmem:[%s548 + $0x7] sm:$0x1] %v576
          %s578 = sld [smem:[#allocation5 + $0x100]]
          %s579 = scalar_lea.vmem [#allocation6], %s578
          %v580 = vld [vmem:[%s579] sm:$0x1]
          %s581 = scalar_lea.vmem [#allocation2], 16
          %582 = vst [vmem:[%s581] sm:$0x1] %v580
          %s583 = sld [smem:[#allocation5 + $0x101]]
          %s584 = scalar_lea.vmem [#allocation6], %s583
          %v585 = vld [vmem:[%s584] sm:$0x1]
          %586 = vst [vmem:[%s581 + $0x1] sm:$0x1] %v585
          %s587 = sld [smem:[#allocation5 + $0x102]]
          %s588 = scalar_lea.vmem [#allocation6], %s587
          %v589 = vld [vmem:[%s588] sm:$0x1]
          %590 = vst [vmem:[%s581 + $0x2] sm:$0x1] %v589
          %s591 = sld [smem:[#allocation5 + $0x103]]
          %s592 = scalar_lea.vmem [#allocation6], %s591
          %v593 = vld [vmem:[%s592] sm:$0x1]
          %594 = vst [vmem:[%s581 + $0x3] sm:$0x1] %v593
          %s595 = sld [smem:[#allocation5 + $0x104]]
          %s596 = scalar_lea.vmem [#allocation6], %s595
          %v597 = vld [vmem:[%s596] sm:$0x1]
          %598 = vst [vmem:[%s581 + $0x4] sm:$0x1] %v597
          %s599 = sld [smem:[#allocation5 + $0x105]]
          %s600 = scalar_lea.vmem [#allocation6], %s599
          %v601 = vld [vmem:[%s600] sm:$0x1]
          %602 = vst [vmem:[%s581 + $0x5] sm:$0x1] %v601
          %s603 = sld [smem:[#allocation5 + $0x106]]
          %s604 = scalar_lea.vmem [#allocation6], %s603
          %v605 = vld [vmem:[%s604] sm:$0x1]
          %606 = vst [vmem:[%s581 + $0x6] sm:$0x1] %v605
          %s607 = sld [smem:[#allocation5 + $0x107]]
          %s608 = scalar_lea.vmem [#allocation6], %s607
          %v609 = vld [vmem:[%s608] sm:$0x1]
          %610 = vst [vmem:[%s581 + $0x7] sm:$0x1] %v609
          %s611 = sld [smem:[#allocation5 + $0x180]]
          %s612 = scalar_lea.vmem [#allocation6], %s611
          %v613 = vld [vmem:[%s612] sm:$0x1]
          %s614 = scalar_lea.vmem [#allocation2], 24
          %615 = vst [vmem:[%s614] sm:$0x1] %v613
          %s616 = sld [smem:[#allocation5 + $0x181]]
          %s617 = scalar_lea.vmem [#allocation6], %s616
          %v618 = vld [vmem:[%s617] sm:$0x1]
          %619 = vst [vmem:[%s614 + $0x1] sm:$0x1] %v618
          %s620 = sld [smem:[#allocation5 + $0x182]]
          %s621 = scalar_lea.vmem [#allocation6], %s620
          %v622 = vld [vmem:[%s621] sm:$0x1]
          %623 = vst [vmem:[%s614 + $0x2] sm:$0x1] %v622
          %s624 = sld [smem:[#allocation5 + $0x183]]
          %s625 = scalar_lea.vmem [#allocation6], %s624
          %v626 = vld [vmem:[%s625] sm:$0x1]
          %627 = vst [vmem:[%s614 + $0x3] sm:$0x1] %v626
          %s628 = sld [smem:[#allocation5 + $0x184]]
          %s629 = scalar_lea.vmem [#allocation6], %s628
          %v630 = vld [vmem:[%s629] sm:$0x1]
          %631 = vst [vmem:[%s614 + $0x4] sm:$0x1] %v630
          %s632 = sld [smem:[#allocation5 + $0x185]]
          %s633 = scalar_lea.vmem [#allocation6], %s632
          %v634 = vld [vmem:[%s633] sm:$0x1]
          %635 = vst [vmem:[%s614 + $0x5] sm:$0x1] %v634
          %s636 = sld [smem:[#allocation5 + $0x186]]
          %s637 = scalar_lea.vmem [#allocation6], %s636
          %v638 = vld [vmem:[%s637] sm:$0x1]
          %639 = vst [vmem:[%s614 + $0x6] sm:$0x1] %v638
          %s640 = sld [smem:[#allocation5 + $0x187]]
          %s641 = scalar_lea.vmem [#allocation6], %s640
          %v642 = vld [vmem:[%s641] sm:$0x1]
          %643 = vst [vmem:[%s614 + $0x7] sm:$0x1] %v642
          %s644 = sld [smem:[#allocation5 + $0x200]]
          %s645 = scalar_lea.vmem [#allocation6], %s644
          %v646 = vld [vmem:[%s645] sm:$0x1]
          %s647 = scalar_lea.vmem [#allocation2], 32
          %648 = vst [vmem:[%s647] sm:$0x1] %v646
          %s649 = sld [smem:[#allocation5 + $0x201]]
          %s650 = scalar_lea.vmem [#allocation6], %s649
          %v651 = vld [vmem:[%s650] sm:$0x1]
          %652 = vst [vmem:[%s647 + $0x1] sm:$0x1] %v651
          %s653 = sld [smem:[#allocation5 + $0x202]]
          %s654 = scalar_lea.vmem [#allocation6], %s653
          %v655 = vld [vmem:[%s654] sm:$0x1]
          %656 = vst [vmem:[%s647 + $0x2] sm:$0x1] %v655
          %s657 = sld [smem:[#allocation5 + $0x203]]
          %s658 = scalar_lea.vmem [#allocation6], %s657
          %v659 = vld [vmem:[%s658] sm:$0x1]
          %660 = vst [vmem:[%s647 + $0x3] sm:$0x1] %v659
          %s661 = sld [smem:[#allocation5 + $0x204]]
          %s662 = scalar_lea.vmem [#allocation6], %s661
          %v663 = vld [vmem:[%s662] sm:$0x1]
          %664 = vst [vmem:[%s647 + $0x4] sm:$0x1] %v663
          %s665 = sld [smem:[#allocation5 + $0x205]]
          %s666 = scalar_lea.vmem [#allocation6], %s665
          %v667 = vld [vmem:[%s666] sm:$0x1]
          %668 = vst [vmem:[%s647 + $0x5] sm:$0x1] %v667
          %s669 = sld [smem:[#allocation5 + $0x206]]
          %s670 = scalar_lea.vmem [#allocation6], %s669
          %v671 = vld [vmem:[%s670] sm:$0x1]
          %672 = vst [vmem:[%s647 + $0x6] sm:$0x1] %v671
          %s673 = sld [smem:[#allocation5 + $0x207]]
          %s674 = scalar_lea.vmem [#allocation6], %s673
          %v675 = vld [vmem:[%s674] sm:$0x1]
          %676 = vst [vmem:[%s647 + $0x7] sm:$0x1] %v675
          %s677 = sld [smem:[#allocation5 + $0x280]]
          %s678 = scalar_lea.vmem [#allocation6], %s677
          %v679 = vld [vmem:[%s678] sm:$0x1]
          %s680 = scalar_lea.vmem [#allocation2], 40
          %681 = vst [vmem:[%s680] sm:$0x1] %v679
          %s682 = sld [smem:[#allocation5 + $0x281]]
          %s683 = scalar_lea.vmem [#allocation6], %s682
          %v684 = vld [vmem:[%s683] sm:$0x1]
          %685 = vst [vmem:[%s680 + $0x1] sm:$0x1] %v684
          %s686 = sld [smem:[#allocation5 + $0x282]]
          %s687 = scalar_lea.vmem [#allocation6], %s686
          %v688 = vld [vmem:[%s687] sm:$0x1]
          %689 = vst [vmem:[%s680 + $0x2] sm:$0x1] %v688
          %s690 = sld [smem:[#allocation5 + $0x283]]
          %s691 = scalar_lea.vmem [#allocation6], %s690
          %v692 = vld [vmem:[%s691] sm:$0x1]
          %693 = vst [vmem:[%s680 + $0x3] sm:$0x1] %v692
          %s694 = sld [smem:[#allocation5 + $0x284]]
          %s695 = scalar_lea.vmem [#allocation6], %s694
          %v696 = vld [vmem:[%s695] sm:$0x1]
          %697 = vst [vmem:[%s680 + $0x4] sm:$0x1] %v696
          %s698 = sld [smem:[#allocation5 + $0x285]]
          %s699 = scalar_lea.vmem [#allocation6], %s698
          %v700 = vld [vmem:[%s699] sm:$0x1]
          %701 = vst [vmem:[%s680 + $0x5] sm:$0x1] %v700
          %s702 = sld [smem:[#allocation5 + $0x286]]
          %s703 = scalar_lea.vmem [#allocation6], %s702
          %v704 = vld [vmem:[%s703] sm:$0x1]
          %705 = vst [vmem:[%s680 + $0x6] sm:$0x1] %v704
          %s706 = sld [smem:[#allocation5 + $0x287]]
          %s707 = scalar_lea.vmem [#allocation6], %s706
          %v708 = vld [vmem:[%s707] sm:$0x1]
          %709 = vst [vmem:[%s680 + $0x7] sm:$0x1] %v708
        $region80: #{model_forward.1} parent=51 // pred_fallthru
          _
        %v710 = vld [vmem:[%s421] sm:$0xff]
        %v711 = vld [vmem:[%s421 + $0x8] sm:$0xff]
        %v712 = vld [vmem:[%s421 + $0x10] sm:$0xff]
        %v713 = vld [vmem:[%s421 + $0x18] sm:$0xff]
        %v714 = vld [vmem:[%s421 + $0x20] sm:$0xff]
        %v715 = vld [vmem:[%s421 + $0x28] sm:$0xff]
        %v716 = vld [vmem:[%s421 + $0x30] sm:$0xff]
        %v717 = vld [vmem:[%s421 + $0x38] sm:$0xff]
        %v718 = vld [vmem:[%s421 + $0x40] sm:$0xff]
        %v719 = vld [vmem:[%s421 + $0x48] sm:$0xff]
        %v720 = vld [vmem:[%s421 + $0x50] sm:$0xff]
        %v721 = vld [vmem:[%s421 + $0x58] sm:$0xff]
        %v722 = vld [vmem:[%s421 + $0x60] sm:$0xff]
        %v723 = vld [vmem:[%s421 + $0x68] sm:$0xff]
        %v724 = vld [vmem:[%s421 + $0x70] sm:$0xff]
        %v725 = vld [vmem:[%s421 + $0x78] sm:$0xff]
        %v726 = vld [vmem:[%s421 + $0x80] sm:$0xff]
        %v727 = vld [vmem:[%s421 + $0x88] sm:$0xff]
        %v728 = vld [vmem:[%s421 + $0x90] sm:$0xff]
        %v729 = vld [vmem:[%s421 + $0x98] sm:$0xff]
        %v730 = vld [vmem:[%s421 + $0xa0] sm:$0xff]
        %v731 = vld [vmem:[%s421 + $0xa8] sm:$0xff]
        %v732 = vld [vmem:[%s421 + $0xb0] sm:$0xff]
        %v733 = vld [vmem:[%s421 + $0xb8] sm:$0xff]
        %v734 = vld [vmem:[%s421 + $0xc0] sm:$0xff]
        %v735 = vld [vmem:[%s421 + $0xc8] sm:$0xff]
        %v736 = vld [vmem:[%s421 + $0xd0] sm:$0xff]
        %v737 = vld [vmem:[%s421 + $0xd8] sm:$0xff]
        %v738 = vld [vmem:[%s421 + $0xe0] sm:$0xff]
        %v739 = vld [vmem:[%s421 + $0xe8] sm:$0xff]
        %v740 = vld [vmem:[%s421 + $0xf0] sm:$0xff]
        %v741 = vld [vmem:[%s421 + $0xf8] sm:$0xff]
        %v742 = vld [vmem:[%s421 + $0x100] sm:$0xff]
        %v743 = vld [vmem:[%s421 + $0x108] sm:$0xff]
        %v744 = vld [vmem:[%s421 + $0x110] sm:$0xff]
        %v745 = vld [vmem:[%s421 + $0x118] sm:$0xff]
        %v746 = vld [vmem:[%s421 + $0x120] sm:$0xff]
        %v747 = vld [vmem:[%s421 + $0x128] sm:$0xff]
        %v748 = vld [vmem:[%s421 + $0x130] sm:$0xff]
        %v749 = vld [vmem:[%s421 + $0x138] sm:$0xff]
        %v750 = vld [vmem:[%s421 + $0x140] sm:$0xff]
        %v751 = vld [vmem:[%s421 + $0x148] sm:$0xff]
        %v752 = vld [vmem:[%s421 + $0x150] sm:$0xff]
        %v753 = vld [vmem:[%s421 + $0x158] sm:$0xff]
        %v754 = vld [vmem:[%s421 + $0x160] sm:$0xff]
        %v755 = vld [vmem:[%s421 + $0x168] sm:$0xff]
        %v756 = vld [vmem:[%s421 + $0x170] sm:$0xff]
        %v757 = vld [vmem:[%s421 + $0x178] sm:$0xff]
        %v758 = vld [vmem:[%s430] sm:$0xff]
        %v759 = vld [vmem:[%s430 + $0x8] sm:$0xff]
        %v760 = vld [vmem:[%s430 + $0x10] sm:$0xff]
        %v761 = vld [vmem:[%s430 + $0x18] sm:$0xff]
        %v762 = vld [vmem:[%s430 + $0x20] sm:$0xff]
        %v763 = vld [vmem:[%s430 + $0x28] sm:$0xff]
        %v764 = vld [vmem:[%s430 + $0x30] sm:$0xff]
        %v765 = vld [vmem:[%s430 + $0x38] sm:$0xff]
        %v766 = vld [vmem:[%s430 + $0x40] sm:$0xff]
        %v767 = vld [vmem:[%s430 + $0x48] sm:$0xff]
        %v768 = vld [vmem:[%s430 + $0x50] sm:$0xff]
        %v769 = vld [vmem:[%s430 + $0x58] sm:$0xff]
        %v770 = vld [vmem:[%s430 + $0x60] sm:$0xff]
        %v771 = vld [vmem:[%s430 + $0x68] sm:$0xff]
        %v772 = vld [vmem:[%s430 + $0x70] sm:$0xff]
        %v773 = vld [vmem:[%s430 + $0x78] sm:$0xff]
        %v774 = vld [vmem:[%s430 + $0x80] sm:$0xff]
        %v775 = vld [vmem:[%s430 + $0x88] sm:$0xff]
        %v776 = vld [vmem:[%s430 + $0x90] sm:$0xff]
        %v777 = vld [vmem:[%s430 + $0x98] sm:$0xff]
        %v778 = vld [vmem:[%s430 + $0xa0] sm:$0xff]
        %v779 = vld [vmem:[%s430 + $0xa8] sm:$0xff]
        %v780 = vld [vmem:[%s430 + $0xb0] sm:$0xff]
        %v781 = vld [vmem:[%s430 + $0xb8] sm:$0xff]
        %v782 = vld [vmem:[%s430 + $0xc0] sm:$0xff]
        %v783 = vld [vmem:[%s430 + $0xc8] sm:$0xff]
        %v784 = vld [vmem:[%s430 + $0xd0] sm:$0xff]
        %v785 = vld [vmem:[%s430 + $0xd8] sm:$0xff]
        %v786 = vld [vmem:[%s430 + $0xe0] sm:$0xff]
        %v787 = vld [vmem:[%s430 + $0xe8] sm:$0xff]
        %v788 = vld [vmem:[%s430 + $0xf0] sm:$0xff]
        %v789 = vld [vmem:[%s430 + $0xf8] sm:$0xff]
        %v790 = vld [vmem:[%s430 + $0x100] sm:$0xff]
        %v791 = vld [vmem:[%s430 + $0x108] sm:$0xff]
        %v792 = vld [vmem:[%s430 + $0x110] sm:$0xff]
        %v793 = vld [vmem:[%s430 + $0x118] sm:$0xff]
        %v794 = vld [vmem:[%s430 + $0x120] sm:$0xff]
        %v795 = vld [vmem:[%s430 + $0x128] sm:$0xff]
        %v796 = vld [vmem:[%s430 + $0x130] sm:$0xff]
        %v797 = vld [vmem:[%s430 + $0x138] sm:$0xff]
        %v798 = vld [vmem:[%s430 + $0x140] sm:$0xff]
        %v799 = vld [vmem:[%s430 + $0x148] sm:$0xff]
        %v800 = vld [vmem:[%s430 + $0x150] sm:$0xff]
        %v801 = vld [vmem:[%s430 + $0x158] sm:$0xff]
        %v802 = vld [vmem:[%s430 + $0x160] sm:$0xff]
        %v803 = vld [vmem:[%s430 + $0x168] sm:$0xff]
        %v804 = vld [vmem:[%s430 + $0x170] sm:$0xff]
        %v805 = vld [vmem:[%s430 + $0x178] sm:$0xff]
        %v806 = vld [vmem:[%s439] sm:$0x7]
        %v807 = vld [vmem:[%s447] sm:$0x1]
        %v809 = vlaneseq
        %v810 = vshrl.u32 %v809, 7
        %v811 = vsub.s32 0, %v810
        %v812 = vrot.slane %v807, %v811
        %v814 = vld [vmem:[#allocation2] sm:$0xff]
        %v815 = vld [vmem:[#allocation2 + $0x8] sm:$0xff]
        %v816 = vld [vmem:[#allocation2 + $0x10] sm:$0xff]
        %v817 = vld [vmem:[#allocation2 + $0x18] sm:$0xff]
        %v818 = vld [vmem:[#allocation2 + $0x20] sm:$0xff]
        %v819 = vld [vmem:[#allocation2 + $0x28] sm:$0xff]
        %v821 = vlaneseq
        %v822 = vshrl.u32 %v821, 7
        %v823 = vsub.s32 0, %v822
        %v824 = vrot.slane %v806, %v823
        %v825 = vlaneseq
        %v826 = vshrl.u32 %v825, 7
        %v827 = vsub.s32 1, %v826
        %v828 = vrot.slane %v806, %v827
        %v829 = vlaneseq
        %v830 = vshrl.u32 %v829, 7
        %v831 = vsub.s32 2, %v830
        %v832 = vrot.slane %v806, %v831
        %836 = vmatprep.subr.mxu0 %v711
        %837 = vmatpush1.msra.mxu0 %v710
        %838 = vmatprep.subr.mxu0 %v714
        %839 = vmatpush1.msra.mxu0 %v713
        %840 = vmatprep.subr.mxu0 %v717
        %841 = vmatpush1.msra.mxu0 %v716
        %842 = vmatprep.subr.mxu0 %v720
        %843 = vmatpush1.msra.mxu0 %v719
        %844 = vmatprep.subr.mxu0 %v723
        %845 = vmatpush1.msra.mxu0 %v722
        %846 = vmatprep.subr.mxu0 %v726
        %847 = vmatpush1.msra.mxu0 %v725
        %848 = vmatprep.subr.mxu0 %v729
        %849 = vmatpush1.msra.mxu0 %v728
        %850 = vmatprep.subr.mxu0 %v732
        %851 = vmatpush1.msra.mxu0 %v731
        %852 = vmatprep.subr.mxu0 %v735
        %853 = vmatpush1.msra.mxu0 %v734
        %854 = vmatprep.subr.mxu0 %v738
        %855 = vmatpush1.msra.mxu0 %v737
        %856 = vmatprep.subr.mxu0 %v741
        %857 = vmatpush1.msra.mxu0 %v740
        %858 = vmatprep.subr.mxu0 %v744
        %859 = vmatpush1.msra.mxu0 %v743
        %860 = vmatprep.subr.mxu0 %v747
        %861 = vmatpush1.msra.mxu0 %v746
        %862 = vmatprep.subr.mxu0 %v750
        %863 = vmatpush1.msra.mxu0 %v749
        %864 = vmatprep.subr.mxu0 %v753
        %865 = vmatpush1.msra.mxu0 %v752
        %866 = vmatprep.subr.mxu0 %v756
        %867 = vmatpush1.msra.mxu0 %v755
        %868 = vmatprep.subr.mxu0 0.0
        %869 = vmatpush1.msra.mxu0 0.0
        %870 = vmatprep.subr.mxu0 0.0
        %871 = vmatpush1.msra.mxu0 0.0
        %872 = vmatprep.subr.mxu0 0.0
        %873 = vmatpush1.msra.mxu0 0.0
        %874 = vmatprep.subr.mxu0 0.0
        %875 = vmatpush1.msra.mxu0 0.0
        %876 = vmatprep.subr.mxu0 0.0
        %877 = vmatpush1.msra.mxu0 0.0
        %878 = vmatprep.subr.mxu0 0.0
        %879 = vmatpush1.msra.mxu0 0.0
        %880 = vmatprep.subr.mxu0 0.0
        %881 = vmatpush1.msra.mxu0 0.0
        %882 = vmatprep.subr.mxu0 0.0
        %883 = vmatpush1.msra.mxu0 0.0
        %884 = vmatprep.subr.mxu0 0.0
        %885 = vmatpush1.msra.mxu0 0.0
        %886 = vmatprep.subr.mxu0 0.0
        %887 = vmatpush1.msra.mxu0 0.0
        %888 = vmatprep.subr.mxu0 0.0
        %889 = vmatpush1.msra.mxu0 0.0
        %890 = vmatprep.subr.mxu0 0.0
        %891 = vmatpush1.msra.mxu0 0.0
        %892 = vmatprep.subr.mxu0 0.0
        %893 = vmatpush1.msra.mxu0 0.0
        %894 = vmatprep.subr.mxu0 0.0
        %895 = vmatpush1.msra.mxu0 0.0
        %896 = vmatprep.subr.mxu0 0.0
        %897 = vmatpush1.msra.mxu0 0.0
        %898 = vmatprep.subr.mxu0 0.0
        %899 = vmatpush1.msra.mxu0 0.0
        %900 = vmatprep.mubr.f32.mxu0 0.0
        %901 = vmatmul.mubr.f32.gmra.mrb[0].mxu0 %v814
        %v902 = vpop.f32.mrb[0].mxu0
        %v903 = vadd.f32 %v824, %v902
        %v904 = vpop.f32.mrb[0].mxu0
        %v905 = vadd.f32 %v828, %v904
        %906 = vmatprep.mubr.f32.mxu0 0.0
        %907 = vmatmul.mubr.f32.gmra.mrb[0].mxu0 %v815
        %v908 = vpop.f32.mrb[0].mxu0
        %v909 = vadd.f32 %v824, %v908
        %v910 = vpop.f32.mrb[0].mxu0
        %v911 = vadd.f32 %v828, %v910
        %912 = vmatprep.mubr.f32.mxu0 0.0
        %913 = vmatmul.mubr.f32.gmra.mrb[0].mxu0 %v816
        %v914 = vpop.f32.mrb[0].mxu0
        %v915 = vadd.f32 %v824, %v914
        %v916 = vpop.f32.mrb[0].mxu0
        %v917 = vadd.f32 %v828, %v916
        %918 = vmatprep.mubr.f32.mxu0 0.0
        %919 = vmatmul.mubr.f32.gmra.mrb[0].mxu0 %v817
        %v920 = vpop.f32.mrb[0].mxu0
        %v921 = vadd.f32 %v824, %v920
        %v922 = vpop.f32.mrb[0].mxu0
        %v923 = vadd.f32 %v828, %v922
        %924 = vmatprep.mubr.f32.mxu0 0.0
        %925 = vmatmul.mubr.f32.gmra.mrb[0].mxu0 %v818
        %v926 = vpop.f32.mrb[0].mxu0
        %v927 = vadd.f32 %v824, %v926
        %v928 = vpop.f32.mrb[0].mxu0
        %v929 = vadd.f32 %v828, %v928
        %930 = vmatprep.mubr.f32.mxu0 0.0
        %931 = vmatmul.mubr.f32.gmra.mrb[0].mxu0 %v819
        %v932 = vpop.f32.mrb[0].mxu0
        %v933 = vadd.f32 %v824, %v932
        %v934 = vpop.f32.mrb[0].mxu0
        %v935 = vadd.f32 %v828, %v934
        %936 = vdwg.mxu0
        %937 = vmatprep.subr.mxu0 0.0
        %938 = vmatpush1.msra.mxu0 %v712
        %939 = vmatprep.subr.mxu0 0.0
        %940 = vmatpush1.msra.mxu0 %v715
        %941 = vmatprep.subr.mxu0 0.0
        %942 = vmatpush1.msra.mxu0 %v718
        %943 = vmatprep.subr.mxu0 0.0
        %944 = vmatpush1.msra.mxu0 %v721
        %945 = vmatprep.subr.mxu0 0.0
        %946 = vmatpush1.msra.mxu0 %v724
        %947 = vmatprep.subr.mxu0 0.0
        %948 = vmatpush1.msra.mxu0 %v727
        %949 = vmatprep.subr.mxu0 0.0
        %950 = vmatpush1.msra.mxu0 %v730
        %951 = vmatprep.subr.mxu0 0.0
        %952 = vmatpush1.msra.mxu0 %v733
        %953 = vmatprep.subr.mxu0 0.0
        %954 = vmatpush1.msra.mxu0 %v736
        %955 = vmatprep.subr.mxu0 0.0
        %956 = vmatpush1.msra.mxu0 %v739
        %957 = vmatprep.subr.mxu0 0.0
        %958 = vmatpush1.msra.mxu0 %v742
        %959 = vmatprep.subr.mxu0 0.0
        %960 = vmatpush1.msra.mxu0 %v745
        %961 = vmatprep.subr.mxu0 0.0
        %962 = vmatpush1.msra.mxu0 %v748
        %963 = vmatprep.subr.mxu0 0.0
        %964 = vmatpush1.msra.mxu0 %v751
        %965 = vmatprep.subr.mxu0 0.0
        %966 = vmatpush1.msra.mxu0 %v754
        %967 = vmatprep.subr.mxu0 0.0
        %968 = vmatpush1.msra.mxu0 %v757
        %969 = vmatprep.subr.mxu0 0.0
        %970 = vmatpush1.msra.mxu0 0.0
        %971 = vmatprep.subr.mxu0 0.0
        %972 = vmatpush1.msra.mxu0 0.0
        %973 = vmatprep.subr.mxu0 0.0
        %974 = vmatpush1.msra.mxu0 0.0
        %975 = vmatprep.subr.mxu0 0.0
        %976 = vmatpush1.msra.mxu0 0.0
        %977 = vmatprep.subr.mxu0 0.0
        %978 = vmatpush1.msra.mxu0 0.0
        %979 = vmatprep.subr.mxu0 0.0
        %980 = vmatpush1.msra.mxu0 0.0
        %981 = vmatprep.subr.mxu0 0.0
        %982 = vmatpush1.msra.mxu0 0.0
        %983 = vmatprep.subr.mxu0 0.0
        %984 = vmatpush1.msra.mxu0 0.0
        %985 = vmatprep.subr.mxu0 0.0
        %986 = vmatpush1.msra.mxu0 0.0
        %987 = vmatprep.subr.mxu0 0.0
        %988 = vmatpush1.msra.mxu0 0.0
        %989 = vmatprep.subr.mxu0 0.0
        %990 = vmatpush1.msra.mxu0 0.0
        %991 = vmatprep.subr.mxu0 0.0
        %992 = vmatpush1.msra.mxu0 0.0
        %993 = vmatprep.subr.mxu0 0.0
        %994 = vmatpush1.msra.mxu0 0.0
        %995 = vmatprep.subr.mxu0 0.0
        %996 = vmatpush1.msra.mxu0 0.0
        %997 = vmatprep.subr.mxu0 0.0
        %998 = vmatpush1.msra.mxu0 0.0
        %999 = vmatprep.subr.mxu0 0.0
        %1000 = vmatpush1.msra.mxu0 0.0
        %1001 = vmatprep.mubr.f32.mxu0 0.0
        %1002 = vmatmul.mubr.f32.gmra.mrb[0].mxu0 %v814
        %v1003 = vpop.f32.mrb[0].mxu0
        %v1004 = vadd.f32 %v832, %v1003
        %v1005 = vpop.f32.mrb[0].mxu0
        %1006 = vmatprep.mubr.f32.mxu0 0.0
        %1007 = vmatmul.mubr.f32.gmra.mrb[0].mxu0 %v815
        %v1008 = vpop.f32.mrb[0].mxu0
        %v1009 = vadd.f32 %v832, %v1008
        %v1010 = vpop.f32.mrb[0].mxu0
        %1011 = vmatprep.mubr.f32.mxu0 0.0
        %1012 = vmatmul.mubr.f32.gmra.mrb[0].mxu0 %v816
        %v1013 = vpop.f32.mrb[0].mxu0
        %v1014 = vadd.f32 %v832, %v1013
        %v1015 = vpop.f32.mrb[0].mxu0
        %1016 = vmatprep.mubr.f32.mxu0 0.0
        %1017 = vmatmul.mubr.f32.gmra.mrb[0].mxu0 %v817
        %v1018 = vpop.f32.mrb[0].mxu0
        %v1019 = vadd.f32 %v832, %v1018
        %v1020 = vpop.f32.mrb[0].mxu0
        %1021 = vmatprep.mubr.f32.mxu0 0.0
        %1022 = vmatmul.mubr.f32.gmra.mrb[0].mxu0 %v818
        %v1023 = vpop.f32.mrb[0].mxu0
        %v1024 = vadd.f32 %v832, %v1023
        %v1025 = vpop.f32.mrb[0].mxu0
        %1026 = vmatprep.mubr.f32.mxu0 0.0
        %1027 = vmatmul.mubr.f32.gmra.mrb[0].mxu0 %v819
        %v1028 = vpop.f32.mrb[0].mxu0
        %v1029 = vadd.f32 %v832, %v1028
        %v1030 = vpop.f32.mrb[0].mxu0
        %1031 = vdwg.mxu0
        %1032 = vst [vmem:[#allocation3] sm:$0xff] %v903
        %1033 = vst [vmem:[#allocation3 + $0x8] sm:$0xff] %v905
        %1034 = vst [vmem:[#allocation3 + $0x10] sm:$0xff] %v1004
        %1035 = vst [vmem:[#allocation3 + $0x18] sm:$0xff] %v909
        %1036 = vst [vmem:[#allocation3 + $0x20] sm:$0xff] %v911
        %1037 = vst [vmem:[#allocation3 + $0x28] sm:$0xff] %v1009
        %1038 = vst [vmem:[#allocation3 + $0x30] sm:$0xff] %v915
        %1039 = vst [vmem:[#allocation3 + $0x38] sm:$0xff] %v917
        %1040 = vst [vmem:[#allocation3 + $0x40] sm:$0xff] %v1014
        %1041 = vst [vmem:[#allocation3 + $0x48] sm:$0xff] %v921
        %1042 = vst [vmem:[#allocation3 + $0x50] sm:$0xff] %v923
        %1043 = vst [vmem:[#allocation3 + $0x58] sm:$0xff] %v1019
        %1044 = vst [vmem:[#allocation3 + $0x60] sm:$0xff] %v927
        %1045 = vst [vmem:[#allocation3 + $0x68] sm:$0xff] %v929
        %1046 = vst [vmem:[#allocation3 + $0x70] sm:$0xff] %v1024
        %1047 = vst [vmem:[#allocation3 + $0x78] sm:$0xff] %v933
        %1048 = vst [vmem:[#allocation3 + $0x80] sm:$0xff] %v935
        %1049 = vst [vmem:[#allocation3 + $0x88] sm:$0xff] %v1029
        %v1050 = vld [vmem:[%s507] sm:$0xff]
        %v1051 = vld [vmem:[#allocation3] sm:$0xff]
        %v1052 = vld [vmem:[#allocation3 + $0x8] sm:$0xff]
        %v1053 = vld [vmem:[#allocation3 + $0x10] sm:$0xff]
        %1054 = vmatprep.subr.mxu0 %v759
        %1055 = vmatpush1.msra.mxu0 %v758
        %1056 = vmatprep.subr.mxu0 %v762
        %1057 = vmatpush1.msra.mxu0 %v761
        %1058 = vmatprep.subr.mxu0 %v765
        %1059 = vmatpush1.msra.mxu0 %v764
        %1060 = vmatprep.subr.mxu0 %v768
        %1061 = vmatpush1.msra.mxu0 %v767
        %1062 = vmatprep.subr.mxu0 %v771
        %1063 = vmatpush1.msra.mxu0 %v770
        %1064 = vmatprep.subr.mxu0 %v774
        %1065 = vmatpush1.msra.mxu0 %v773
        %1066 = vmatprep.subr.mxu0 %v777
        %1067 = vmatpush1.msra.mxu0 %v776
        %1068 = vmatprep.subr.mxu0 %v780
        %1069 = vmatpush1.msra.mxu0 %v779
        %1070 = vmatprep.subr.mxu0 %v783
        %1071 = vmatpush1.msra.mxu0 %v782
        %1072 = vmatprep.subr.mxu0 %v786
        %1073 = vmatpush1.msra.mxu0 %v785
        %1074 = vmatprep.subr.mxu0 %v789
        %1075 = vmatpush1.msra.mxu0 %v788
        %1076 = vmatprep.subr.mxu0 %v792
        %1077 = vmatpush1.msra.mxu0 %v791
        %1078 = vmatprep.subr.mxu0 %v795
        %1079 = vmatpush1.msra.mxu0 %v794
        %1080 = vmatprep.subr.mxu0 %v798
        %1081 = vmatpush1.msra.mxu0 %v797
        %1082 = vmatprep.subr.mxu0 %v801
        %1083 = vmatpush1.msra.mxu0 %v800
        %1084 = vmatprep.subr.mxu0 %v804
        %1085 = vmatpush1.msra.mxu0 %v803
        %1086 = vmatprep.subr.mxu0 0.0
        %1087 = vmatpush1.msra.mxu0 0.0
        %1088 = vmatprep.subr.mxu0 0.0
        %1089 = vmatpush1.msra.mxu0 0.0
        %1090 = vmatprep.subr.mxu0 0.0
        %1091 = vmatpush1.msra.mxu0 0.0
        %1092 = vmatprep.subr.mxu0 0.0
        %1093 = vmatpush1.msra.mxu0 0.0
        %1094 = vmatprep.subr.mxu0 0.0
        %1095 = vmatpush1.msra.mxu0 0.0
        %1096 = vmatprep.subr.mxu0 0.0
        %1097 = vmatpush1.msra.mxu0 0.0
        %1098 = vmatprep.subr.mxu0 0.0
        %1099 = vmatpush1.msra.mxu0 0.0
        %1100 = vmatprep.subr.mxu0 0.0
        %1101 = vmatpush1.msra.mxu0 0.0
        %1102 = vmatprep.subr.mxu0 0.0
        %1103 = vmatpush1.msra.mxu0 0.0
        %1104 = vmatprep.subr.mxu0 0.0
        %1105 = vmatpush1.msra.mxu0 0.0
        %1106 = vmatprep.subr.mxu0 0.0
        %1107 = vmatpush1.msra.mxu0 0.0
        %1108 = vmatprep.subr.mxu0 0.0
        %1109 = vmatpush1.msra.mxu0 0.0
        %1110 = vmatprep.subr.mxu0 0.0
        %1111 = vmatpush1.msra.mxu0 0.0
        %1112 = vmatprep.subr.mxu0 0.0
        %1113 = vmatpush1.msra.mxu0 0.0
        %1114 = vmatprep.subr.mxu0 0.0
        %1115 = vmatpush1.msra.mxu0 0.0
        %1116 = vmatprep.subr.mxu0 0.0
        %1117 = vmatpush1.msra.mxu0 0.0
        %1118 = vmatprep.mubr.f32.mxu0 0.0
        %1119 = vmatmul.mubr.f32.gmra.mrb[0].mxu0 %v1050
        %v1120 = vpop.f32.mrb[0].mxu0
        %v1121 = vadd.f32 0.0, %v1120
        %v1122 = vpop.f32.mrb[0].mxu0
        %v1123 = vadd.f32 0.0, %v1122
        %1124 = vdwg.mxu0
        %1125 = vmatprep.subr.mxu0 0.0
        %1126 = vmatpush1.msra.mxu0 %v760
        %1127 = vmatprep.subr.mxu0 0.0
        %1128 = vmatpush1.msra.mxu0 %v763
        %1129 = vmatprep.subr.mxu0 0.0
        %1130 = vmatpush1.msra.mxu0 %v766
        %1131 = vmatprep.subr.mxu0 0.0
        %1132 = vmatpush1.msra.mxu0 %v769
        %1133 = vmatprep.subr.mxu0 0.0
        %1134 = vmatpush1.msra.mxu0 %v772
        %1135 = vmatprep.subr.mxu0 0.0
        %1136 = vmatpush1.msra.mxu0 %v775
        %1137 = vmatprep.subr.mxu0 0.0
        %1138 = vmatpush1.msra.mxu0 %v778
        %1139 = vmatprep.subr.mxu0 0.0
        %1140 = vmatpush1.msra.mxu0 %v781
        %1141 = vmatprep.subr.mxu0 0.0
        %1142 = vmatpush1.msra.mxu0 %v784
        %1143 = vmatprep.subr.mxu0 0.0
        %1144 = vmatpush1.msra.mxu0 %v787
        %1145 = vmatprep.subr.mxu0 0.0
        %1146 = vmatpush1.msra.mxu0 %v790
        %1147 = vmatprep.subr.mxu0 0.0
        %1148 = vmatpush1.msra.mxu0 %v793
        %1149 = vmatprep.subr.mxu0 0.0
        %1150 = vmatpush1.msra.mxu0 %v796
        %1151 = vmatprep.subr.mxu0 0.0
        %1152 = vmatpush1.msra.mxu0 %v799
        %1153 = vmatprep.subr.mxu0 0.0
        %1154 = vmatpush1.msra.mxu0 %v802
        %1155 = vmatprep.subr.mxu0 0.0
        %1156 = vmatpush1.msra.mxu0 %v805
        %1157 = vmatprep.subr.mxu0 0.0
        %1158 = vmatpush1.msra.mxu0 0.0
        %1159 = vmatprep.subr.mxu0 0.0
        %1160 = vmatpush1.msra.mxu0 0.0
        %1161 = vmatprep.subr.mxu0 0.0
        %1162 = vmatpush1.msra.mxu0 0.0
        %1163 = vmatprep.subr.mxu0 0.0
        %1164 = vmatpush1.msra.mxu0 0.0
        %1165 = vmatprep.subr.mxu0 0.0
        %1166 = vmatpush1.msra.mxu0 0.0
        %1167 = vmatprep.subr.mxu0 0.0
        %1168 = vmatpush1.msra.mxu0 0.0
        %1169 = vmatprep.subr.mxu0 0.0
        %1170 = vmatpush1.msra.mxu0 0.0
        %1171 = vmatprep.subr.mxu0 0.0
        %1172 = vmatpush1.msra.mxu0 0.0
        %1173 = vmatprep.subr.mxu0 0.0
        %1174 = vmatpush1.msra.mxu0 0.0
        %1175 = vmatprep.subr.mxu0 0.0
        %1176 = vmatpush1.msra.mxu0 0.0
        %1177 = vmatprep.subr.mxu0 0.0
        %1178 = vmatpush1.msra.mxu0 0.0
        %1179 = vmatprep.subr.mxu0 0.0
        %1180 = vmatpush1.msra.mxu0 0.0
        %1181 = vmatprep.subr.mxu0 0.0
        %1182 = vmatpush1.msra.mxu0 0.0
        %1183 = vmatprep.subr.mxu0 0.0
        %1184 = vmatpush1.msra.mxu0 0.0
        %1185 = vmatprep.subr.mxu0 0.0
        %1186 = vmatpush1.msra.mxu0 0.0
        %1187 = vmatprep.subr.mxu0 0.0
        %1188 = vmatpush1.msra.mxu0 0.0
        %1189 = vmatprep.mubr.f32.mxu0 0.0
        %1190 = vmatmul.mubr.f32.gmra.mrb[0].mxu0 %v1050
        %v1191 = vpop.f32.mrb[0].mxu0
        %v1192 = vadd.f32 0.0, %v1191
        %v1193 = vpop.f32.mrb[0].mxu0
        %1194 = vdwg.mxu0
        %v1195 = vadd.f32 %v1051, %v1121
        %v1196 = vadd.f32 %v1052, %v1123
        %v1197 = vxor.u32 %v1195, 2147483648
        %v1198 = vxor.u32 %v1196, 2147483648
        %v1199 = vmul.f32 %v1197, 1.442695
        %v1200 = vpow.pop %v1199
        %v1201 = vmul.f32 %v1198, 1.442695
        %v1202 = vpow.pop %v1201
        %v1203 = vadd.f32 %v1200, 1.0
        %v1204 = vadd.f32 %v1202, 1.0
        %v1205 = vrcp.pop %v1203
        %v1206 = vmul.f32 1.0, %v1205
        %v1207 = vrcp.pop %v1204
        %v1208 = vmul.f32 1.0, %v1207
        %v1209 = vadd.f32 %v1192, %v812
        %v1210 = vmul.f32 %v1206, %v1209
        %v1211 = vadd.f32 %v1053, %v1210
        %v1212 = vtanh.pop %v1211
        %v1213 = vsub.f32 1.0, %v1208
        %v1214 = vmul.f32 %v1213, %v1212
        %v1215 = vmul.f32 %v1208, %v1050
        %v1216 = vadd.f32 %v1214, %v1215
        %1217 = vst [vmem:[#allocation2] sm:$0xff] %v1216
        // Predicated region
        $region81: #{model_forward.1} parent=51 // pred_check
          %p1218 = pneg %p508
        $region82: #{model_forward.1} parent=51 // pred_check_branch
          %1220 = sbr.rel (%p1218) target = $region84
        $region83: #{model_forward.1} parent=51 // pred_region
          %v1221 = vld [vmem:[#allocation15] sm:$0xff]
          %v1222 = vld [vmem:[#allocation15 + $0x8] sm:$0xff]
          %v1223 = vld [vmem:[#allocation15 + $0x10] sm:$0xff]
          %v1224 = vld [vmem:[#allocation15 + $0x18] sm:$0xff]
          %v1225 = vld [vmem:[#allocation15 + $0x20] sm:$0xff]
          %v1226 = vld [vmem:[#allocation15 + $0x28] sm:$0xff]
          %v1227 = vld [vmem:[#allocation15 + $0x30] sm:$0xff]
          %v1228 = vld [vmem:[#allocation15 + $0x38] sm:$0xff]
          %v1229 = vld [vmem:[#allocation15 + $0x40] sm:$0xff]
          %v1230 = vld [vmem:[#allocation15 + $0x48] sm:$0xff]
          %v1231 = vld [vmem:[#allocation15 + $0x50] sm:$0xff]
          %v1232 = vld [vmem:[#allocation15 + $0x58] sm:$0xff]
          %v1233 = vld [vmem:[#allocation15 + $0x60] sm:$0xff]
          %v1234 = vld [vmem:[#allocation15 + $0x68] sm:$0xff]
          %v1235 = vld [vmem:[#allocation15 + $0x70] sm:$0xff]
          %v1236 = vld [vmem:[#allocation15 + $0x78] sm:$0xff]
          %v1237 = vld [vmem:[%s8] sm:$0x1]
          %v1239 = vlaneseq
          %v1240 = vshrl.u32 %v1239, 7
          %v1241 = vsub.s32 0, %v1240
          %v1242 = vrot.slane %v1237, %v1241
          %1244 = vmatprep.subr.mxu0 0.0
          %1245 = vmatpush1.msra.mxu0 %v1221
          %1246 = vmatprep.subr.mxu0 0.0
          %1247 = vmatpush1.msra.mxu0 %v1222
          %1248 = vmatprep.subr.mxu0 0.0
          %1249 = vmatpush1.msra.mxu0 %v1223
          %1250 = vmatprep.subr.mxu0 0.0
          %1251 = vmatpush1.msra.mxu0 %v1224
          %1252 = vmatprep.subr.mxu0 0.0
          %1253 = vmatpush1.msra.mxu0 %v1225
          %1254 = vmatprep.subr.mxu0 0.0
          %1255 = vmatpush1.msra.mxu0 %v1226
          %1256 = vmatprep.subr.mxu0 0.0
          %1257 = vmatpush1.msra.mxu0 %v1227
          %1258 = vmatprep.subr.mxu0 0.0
          %1259 = vmatpush1.msra.mxu0 %v1228
          %1260 = vmatprep.subr.mxu0 0.0
          %1261 = vmatpush1.msra.mxu0 %v1229
          %1262 = vmatprep.subr.mxu0 0.0
          %1263 = vmatpush1.msra.mxu0 %v1230
          %1264 = vmatprep.subr.mxu0 0.0
          %1265 = vmatpush1.msra.mxu0 %v1231
          %1266 = vmatprep.subr.mxu0 0.0
          %1267 = vmatpush1.msra.mxu0 %v1232
          %1268 = vmatprep.subr.mxu0 0.0
          %1269 = vmatpush1.msra.mxu0 %v1233
          %1270 = vmatprep.subr.mxu0 0.0
          %1271 = vmatpush1.msra.mxu0 %v1234
          %1272 = vmatprep.subr.mxu0 0.0
          %1273 = vmatpush1.msra.mxu0 %v1235
          %1274 = vmatprep.subr.mxu0 0.0
          %1275 = vmatpush1.msra.mxu0 %v1236
          %1276 = vmatprep.subr.mxu0 0.0
          %1277 = vmatpush1.msra.mxu0 0.0
          %1278 = vmatprep.subr.mxu0 0.0
          %1279 = vmatpush1.msra.mxu0 0.0
          %1280 = vmatprep.subr.mxu0 0.0
          %1281 = vmatpush1.msra.mxu0 0.0
          %1282 = vmatprep.subr.mxu0 0.0
          %1283 = vmatpush1.msra.mxu0 0.0
          %1284 = vmatprep.subr.mxu0 0.0
          %1285 = vmatpush1.msra.mxu0 0.0
          %1286 = vmatprep.subr.mxu0 0.0
          %1287 = vmatpush1.msra.mxu0 0.0
          %1288 = vmatprep.subr.mxu0 0.0
          %1289 = vmatpush1.msra.mxu0 0.0
          %1290 = vmatprep.subr.mxu0 0.0
          %1291 = vmatpush1.msra.mxu0 0.0
          %1292 = vmatprep.subr.mxu0 0.0
          %1293 = vmatpush1.msra.mxu0 0.0
          %1294 = vmatprep.subr.mxu0 0.0
          %1295 = vmatpush1.msra.mxu0 0.0
          %1296 = vmatprep.subr.mxu0 0.0
          %1297 = vmatpush1.msra.mxu0 0.0
          %1298 = vmatprep.subr.mxu0 0.0
          %1299 = vmatpush1.msra.mxu0 0.0
          %1300 = vmatprep.subr.mxu0 0.0
          %1301 = vmatpush1.msra.mxu0 0.0
          %1302 = vmatprep.subr.mxu0 0.0
          %1303 = vmatpush1.msra.mxu0 0.0
          %1304 = vmatprep.subr.mxu0 0.0
          %1305 = vmatpush1.msra.mxu0 0.0
          %1306 = vmatprep.subr.mxu0 0.0
          %1307 = vmatpush1.msra.mxu0 0.0
          %1308 = vmatprep.mubr.f32.mxu0 0.0
          %1309 = vmatmul.mubr.f32.gmra.mrb[0].mxu0 %v1216
          %v1310 = vpop.f32.mrb[0].mxu0
          %v1311 = vadd.f32 %v1242, %v1310
          %v1312 = vpop.f32.mrb[0].mxu0
          %1313 = vdwg.mxu0
          %1314 = vst [vmem:[#allocation17] sm:$0xff] %v1311
        $region84: #{model_forward.1} parent=51 // pred_fallthru
          _
        %s1315 = scalar_lea.vmem [#allocation3], 24
        %v1316 = vld [vmem:[%s1315] sm:$0xff]
        %v1317 = vld [vmem:[%s1315 + $0x8] sm:$0xff]
        %v1318 = vld [vmem:[%s1315 + $0x10] sm:$0xff]
        %1319 = vmatprep.subr.mxu0 %v759
        %1320 = vmatpush1.msra.mxu0 %v758
        %1321 = vmatprep.subr.mxu0 %v762
        %1322 = vmatpush1.msra.mxu0 %v761
        %1323 = vmatprep.subr.mxu0 %v765
        %1324 = vmatpush1.msra.mxu0 %v764
        %1325 = vmatprep.subr.mxu0 %v768
        %1326 = vmatpush1.msra.mxu0 %v767
        %1327 = vmatprep.subr.mxu0 %v771
        %1328 = vmatpush1.msra.mxu0 %v770
        %1329 = vmatprep.subr.mxu0 %v774
        %1330 = vmatpush1.msra.mxu0 %v773
        %1331 = vmatprep.subr.mxu0 %v777
        %1332 = vmatpush1.msra.mxu0 %v776
        %1333 = vmatprep.subr.mxu0 %v780
        %1334 = vmatpush1.msra.mxu0 %v779
        %1335 = vmatprep.subr.mxu0 %v783
        %1336 = vmatpush1.msra.mxu0 %v782
        %1337 = vmatprep.subr.mxu0 %v786
        %1338 = vmatpush1.msra.mxu0 %v785
        %1339 = vmatprep.subr.mxu0 %v789
        %1340 = vmatpush1.msra.mxu0 %v788
        %1341 = vmatprep.subr.mxu0 %v792
        %1342 = vmatpush1.msra.mxu0 %v791
        %1343 = vmatprep.subr.mxu0 %v795
        %1344 = vmatpush1.msra.mxu0 %v794
        %1345 = vmatprep.subr.mxu0 %v798
        %1346 = vmatpush1.msra.mxu0 %v797
        %1347 = vmatprep.subr.mxu0 %v801
        %1348 = vmatpush1.msra.mxu0 %v800
        %1349 = vmatprep.subr.mxu0 %v804
        %1350 = vmatpush1.msra.mxu0 %v803
        %1351 = vmatprep.subr.mxu0 0.0
        %1352 = vmatpush1.msra.mxu0 0.0
        %1353 = vmatprep.subr.mxu0 0.0
        %1354 = vmatpush1.msra.mxu0 0.0
        %1355 = vmatprep.subr.mxu0 0.0
        %1356 = vmatpush1.msra.mxu0 0.0
        %1357 = vmatprep.subr.mxu0 0.0
        %1358 = vmatpush1.msra.mxu0 0.0
        %1359 = vmatprep.subr.mxu0 0.0
        %1360 = vmatpush1.msra.mxu0 0.0
        %1361 = vmatprep.subr.mxu0 0.0
        %1362 = vmatpush1.msra.mxu0 0.0
        %1363 = vmatprep.subr.mxu0 0.0
        %1364 = vmatpush1.msra.mxu0 0.0
        %1365 = vmatprep.subr.mxu0 0.0
        %1366 = vmatpush1.msra.mxu0 0.0
        %1367 = vmatprep.subr.mxu0 0.0
        %1368 = vmatpush1.msra.mxu0 0.0
        %1369 = vmatprep.subr.mxu0 0.0
        %1370 = vmatpush1.msra.mxu0 0.0
        %1371 = vmatprep.subr.mxu0 0.0
        %1372 = vmatpush1.msra.mxu0 0.0
        %1373 = vmatprep.subr.mxu0 0.0
        %1374 = vmatpush1.msra.mxu0 0.0
        %1375 = vmatprep.subr.mxu0 0.0
        %1376 = vmatpush1.msra.mxu0 0.0
        %1377 = vmatprep.subr.mxu0 0.0
        %1378 = vmatpush1.msra.mxu0 0.0
        %1379 = vmatprep.subr.mxu0 0.0
        %1380 = vmatpush1.msra.mxu0 0.0
        %1381 = vmatprep.subr.mxu0 0.0
        %1382 = vmatpush1.msra.mxu0 0.0
        %1383 = vmatprep.mubr.f32.mxu0 0.0
        %1384 = vmatmul.mubr.f32.gmra.mrb[0].mxu0 %v1216
        %v1385 = vpop.f32.mrb[0].mxu0
        %v1386 = vadd.f32 0.0, %v1385
        %v1387 = vpop.f32.mrb[0].mxu0
        %v1388 = vadd.f32 0.0, %v1387
        %1389 = vdwg.mxu0
        %1390 = vmatprep.subr.mxu0 0.0
        %1391 = vmatpush1.msra.mxu0 %v760
        %1392 = vmatprep.subr.mxu0 0.0
        %1393 = vmatpush1.msra.mxu0 %v763
        %1394 = vmatprep.subr.mxu0 0.0
        %1395 = vmatpush1.msra.mxu0 %v766
        %1396 = vmatprep.subr.mxu0 0.0
        %1397 = vmatpush1.msra.mxu0 %v769
        %1398 = vmatprep.subr.mxu0 0.0
        %1399 = vmatpush1.msra.mxu0 %v772
        %1400 = vmatprep.subr.mxu0 0.0
        %1401 = vmatpush1.msra.mxu0 %v775
        %1402 = vmatprep.subr.mxu0 0.0
        %1403 = vmatpush1.msra.mxu0 %v778
        %1404 = vmatprep.subr.mxu0 0.0
        %1405 = vmatpush1.msra.mxu0 %v781
        %1406 = vmatprep.subr.mxu0 0.0
        %1407 = vmatpush1.msra.mxu0 %v784
        %1408 = vmatprep.subr.mxu0 0.0
        %1409 = vmatpush1.msra.mxu0 %v787
        %1410 = vmatprep.subr.mxu0 0.0
        %1411 = vmatpush1.msra.mxu0 %v790
        %1412 = vmatprep.subr.mxu0 0.0
        %1413 = vmatpush1.msra.mxu0 %v793
        %1414 = vmatprep.subr.mxu0 0.0
        %1415 = vmatpush1.msra.mxu0 %v796
        %1416 = vmatprep.subr.mxu0 0.0
        %1417 = vmatpush1.msra.mxu0 %v799
        %1418 = vmatprep.subr.mxu0 0.0
        %1419 = vmatpush1.msra.mxu0 %v802
        %1420 = vmatprep.subr.mxu0 0.0
        %1421 = vmatpush1.msra.mxu0 %v805
        %1422 = vmatprep.subr.mxu0 0.0
        %1423 = vmatpush1.msra.mxu0 0.0
        %1424 = vmatprep.subr.mxu0 0.0
        %1425 = vmatpush1.msra.mxu0 0.0
        %1426 = vmatprep.subr.mxu0 0.0
        %1427 = vmatpush1.msra.mxu0 0.0
        %1428 = vmatprep.subr.mxu0 0.0
        %1429 = vmatpush1.msra.mxu0 0.0
        %1430 = vmatprep.subr.mxu0 0.0
        %1431 = vmatpush1.msra.mxu0 0.0
        %1432 = vmatprep.subr.mxu0 0.0
        %1433 = vmatpush1.msra.mxu0 0.0
        %1434 = vmatprep.subr.mxu0 0.0
        %1435 = vmatpush1.msra.mxu0 0.0
        %1436 = vmatprep.subr.mxu0 0.0
        %1437 = vmatpush1.msra.mxu0 0.0
        %1438 = vmatprep.subr.mxu0 0.0
        %1439 = vmatpush1.msra.mxu0 0.0
        %1440 = vmatprep.subr.mxu0 0.0
        %1441 = vmatpush1.msra.mxu0 0.0
        %1442 = vmatprep.subr.mxu0 0.0
        %1443 = vmatpush1.msra.mxu0 0.0
        %1444 = vmatprep.subr.mxu0 0.0
        %1445 = vmatpush1.msra.mxu0 0.0
        %1446 = vmatprep.subr.mxu0 0.0
        %1447 = vmatpush1.msra.mxu0 0.0
        %1448 = vmatprep.subr.mxu0 0.0
        %1449 = vmatpush1.msra.mxu0 0.0
        %1450 = vmatprep.subr.mxu0 0.0
        %1451 = vmatpush1.msra.mxu0 0.0
        %1452 = vmatprep.subr.mxu0 0.0
        %1453 = vmatpush1.msra.mxu0 0.0
        %1454 = vmatprep.mubr.f32.mxu0 0.0
        %1455 = vmatmul.mubr.f32.gmra.mrb[0].mxu0 %v1216
        %v1456 = vpop.f32.mrb[0].mxu0
        %v1457 = vadd.f32 0.0, %v1456
        %v1458 = vpop.f32.mrb[0].mxu0
        %1459 = vdwg.mxu0
        %v1460 = vadd.f32 %v1316, %v1386
        %v1461 = vadd.f32 %v1317, %v1388
        %v1462 = vxor.u32 %v1460, 2147483648
        %v1463 = vxor.u32 %v1461, 2147483648
        %v1464 = vmul.f32 %v1462, 1.442695
        %v1465 = vpow.pop %v1464
        %v1466 = vmul.f32 %v1463, 1.442695
        %v1467 = vpow.pop %v1466
        %v1468 = vadd.f32 %v1465, 1.0
        %v1469 = vadd.f32 %v1467, 1.0
        %v1470 = vrcp.pop %v1468
        %v1471 = vmul.f32 1.0, %v1470
        %v1472 = vrcp.pop %v1469
        %v1473 = vmul.f32 1.0, %v1472
        %v1474 = vadd.f32 %v1457, %v812
        %v1475 = vmul.f32 %v1471, %v1474
        %v1476 = vadd.f32 %v1318, %v1475
        %v1477 = vtanh.pop %v1476
        %v1478 = vsub.f32 1.0, %v1473
        %v1479 = vmul.f32 %v1478, %v1477
        %v1480 = vmul.f32 %v1473, %v1216
        %v1481 = vadd.f32 %v1479, %v1480
        %s1482 = scalar_lea.vmem [#allocation2], 8
        %1483 = vst [vmem:[%s1482] sm:$0xff] %v1481
        // Predicated region
        $region85: #{model_forward.1} parent=51 // pred_check
          %p1484 = pneg %p508
        $region86: #{model_forward.1} parent=51 // pred_check_branch
          %1486 = sbr.rel (%p1484) target = $region88
        $region87: #{model_forward.1} parent=51 // pred_region
          %v1487 = vld [vmem:[#allocation15] sm:$0xff]
          %v1488 = vld [vmem:[#allocation15 + $0x8] sm:$0xff]
          %v1489 = vld [vmem:[#allocation15 + $0x10] sm:$0xff]
          %v1490 = vld [vmem:[#allocation15 + $0x18] sm:$0xff]
          %v1491 = vld [vmem:[#allocation15 + $0x20] sm:$0xff]
          %v1492 = vld [vmem:[#allocation15 + $0x28] sm:$0xff]
          %v1493 = vld [vmem:[#allocation15 + $0x30] sm:$0xff]
          %v1494 = vld [vmem:[#allocation15 + $0x38] sm:$0xff]
          %v1495 = vld [vmem:[#allocation15 + $0x40] sm:$0xff]
          %v1496 = vld [vmem:[#allocation15 + $0x48] sm:$0xff]
          %v1497 = vld [vmem:[#allocation15 + $0x50] sm:$0xff]
          %v1498 = vld [vmem:[#allocation15 + $0x58] sm:$0xff]
          %v1499 = vld [vmem:[#allocation15 + $0x60] sm:$0xff]
          %v1500 = vld [vmem:[#allocation15 + $0x68] sm:$0xff]
          %v1501 = vld [vmem:[#allocation15 + $0x70] sm:$0xff]
          %v1502 = vld [vmem:[#allocation15 + $0x78] sm:$0xff]
          %v1503 = vld [vmem:[%s8] sm:$0x1]
          %v1505 = vlaneseq
          %v1506 = vshrl.u32 %v1505, 7
          %v1507 = vsub.s32 0, %v1506
          %v1508 = vrot.slane %v1503, %v1507
          %1510 = vmatprep.subr.mxu0 0.0
          %1511 = vmatpush1.msra.mxu0 %v1487
          %1512 = vmatprep.subr.mxu0 0.0
          %1513 = vmatpush1.msra.mxu0 %v1488
          %1514 = vmatprep.subr.mxu0 0.0
          %1515 = vmatpush1.msra.mxu0 %v1489
          %1516 = vmatprep.subr.mxu0 0.0
          %1517 = vmatpush1.msra.mxu0 %v1490
          %1518 = vmatprep.subr.mxu0 0.0
          %1519 = vmatpush1.msra.mxu0 %v1491
          %1520 = vmatprep.subr.mxu0 0.0
          %1521 = vmatpush1.msra.mxu0 %v1492
          %1522 = vmatprep.subr.mxu0 0.0
          %1523 = vmatpush1.msra.mxu0 %v1493
          %1524 = vmatprep.subr.mxu0 0.0
          %1525 = vmatpush1.msra.mxu0 %v1494
          %1526 = vmatprep.subr.mxu0 0.0
          %1527 = vmatpush1.msra.mxu0 %v1495
          %1528 = vmatprep.subr.mxu0 0.0
          %1529 = vmatpush1.msra.mxu0 %v1496
          %1530 = vmatprep.subr.mxu0 0.0
          %1531 = vmatpush1.msra.mxu0 %v1497
          %1532 = vmatprep.subr.mxu0 0.0
          %1533 = vmatpush1.msra.mxu0 %v1498
          %1534 = vmatprep.subr.mxu0 0.0
          %1535 = vmatpush1.msra.mxu0 %v1499
          %1536 = vmatprep.subr.mxu0 0.0
          %1537 = vmatpush1.msra.mxu0 %v1500
          %1538 = vmatprep.subr.mxu0 0.0
          %1539 = vmatpush1.msra.mxu0 %v1501
          %1540 = vmatprep.subr.mxu0 0.0
          %1541 = vmatpush1.msra.mxu0 %v1502
          %1542 = vmatprep.subr.mxu0 0.0
          %1543 = vmatpush1.msra.mxu0 0.0
          %1544 = vmatprep.subr.mxu0 0.0
          %1545 = vmatpush1.msra.mxu0 0.0
          %1546 = vmatprep.subr.mxu0 0.0
          %1547 = vmatpush1.msra.mxu0 0.0
          %1548 = vmatprep.subr.mxu0 0.0
          %1549 = vmatpush1.msra.mxu0 0.0
          %1550 = vmatprep.subr.mxu0 0.0
          %1551 = vmatpush1.msra.mxu0 0.0
          %1552 = vmatprep.subr.mxu0 0.0
          %1553 = vmatpush1.msra.mxu0 0.0
          %1554 = vmatprep.subr.mxu0 0.0
          %1555 = vmatpush1.msra.mxu0 0.0
          %1556 = vmatprep.subr.mxu0 0.0
          %1557 = vmatpush1.msra.mxu0 0.0
          %1558 = vmatprep.subr.mxu0 0.0
          %1559 = vmatpush1.msra.mxu0 0.0
          %1560 = vmatprep.subr.mxu0 0.0
          %1561 = vmatpush1.msra.mxu0 0.0
          %1562 = vmatprep.subr.mxu0 0.0
          %1563 = vmatpush1.msra.mxu0 0.0
          %1564 = vmatprep.subr.mxu0 0.0
          %1565 = vmatpush1.msra.mxu0 0.0
          %1566 = vmatprep.subr.mxu0 0.0
          %1567 = vmatpush1.msra.mxu0 0.0
          %1568 = vmatprep.subr.mxu0 0.0
          %1569 = vmatpush1.msra.mxu0 0.0
          %1570 = vmatprep.subr.mxu0 0.0
          %1571 = vmatpush1.msra.mxu0 0.0
          %1572 = vmatprep.subr.mxu0 0.0
          %1573 = vmatpush1.msra.mxu0 0.0
          %1574 = vmatprep.mubr.f32.mxu0 0.0
          %1575 = vmatmul.mubr.f32.gmra.mrb[0].mxu0 %v1481
          %v1576 = vpop.f32.mrb[0].mxu0
          %v1577 = vadd.f32 %v1508, %v1576
          %v1578 = vpop.f32.mrb[0].mxu0
          %1579 = vdwg.mxu0
          %s1580 = scalar_lea.vmem [#allocation17], 8
          %1581 = vst [vmem:[%s1580] sm:$0xff] %v1577
        $region88: #{model_forward.1} parent=51 // pred_fallthru
          _
        %s1582 = scalar_lea.vmem [#allocation3], 48
        %v1583 = vld [vmem:[%s1582] sm:$0xff]
        %v1584 = vld [vmem:[%s1582 + $0x8] sm:$0xff]
        %v1585 = vld [vmem:[%s1582 + $0x10] sm:$0xff]
        %1586 = vmatprep.subr.mxu0 %v759
        %1587 = vmatpush1.msra.mxu0 %v758
        %1588 = vmatprep.subr.mxu0 %v762
        %1589 = vmatpush1.msra.mxu0 %v761
        %1590 = vmatprep.subr.mxu0 %v765
        %1591 = vmatpush1.msra.mxu0 %v764
        %1592 = vmatprep.subr.mxu0 %v768
        %1593 = vmatpush1.msra.mxu0 %v767
        %1594 = vmatprep.subr.mxu0 %v771
        %1595 = vmatpush1.msra.mxu0 %v770
        %1596 = vmatprep.subr.mxu0 %v774
        %1597 = vmatpush1.msra.mxu0 %v773
        %1598 = vmatprep.subr.mxu0 %v777
        %1599 = vmatpush1.msra.mxu0 %v776
        %1600 = vmatprep.subr.mxu0 %v780
        %1601 = vmatpush1.msra.mxu0 %v779
        %1602 = vmatprep.subr.mxu0 %v783
        %1603 = vmatpush1.msra.mxu0 %v782
        %1604 = vmatprep.subr.mxu0 %v786
        %1605 = vmatpush1.msra.mxu0 %v785
        %1606 = vmatprep.subr.mxu0 %v789
        %1607 = vmatpush1.msra.mxu0 %v788
        %1608 = vmatprep.subr.mxu0 %v792
        %1609 = vmatpush1.msra.mxu0 %v791
        %1610 = vmatprep.subr.mxu0 %v795
        %1611 = vmatpush1.msra.mxu0 %v794
        %1612 = vmatprep.subr.mxu0 %v798
        %1613 = vmatpush1.msra.mxu0 %v797
        %1614 = vmatprep.subr.mxu0 %v801
        %1615 = vmatpush1.msra.mxu0 %v800
        %1616 = vmatprep.subr.mxu0 %v804
        %1617 = vmatpush1.msra.mxu0 %v803
        %1618 = vmatprep.subr.mxu0 0.0
        %1619 = vmatpush1.msra.mxu0 0.0
        %1620 = vmatprep.subr.mxu0 0.0
        %1621 = vmatpush1.msra.mxu0 0.0
        %1622 = vmatprep.subr.mxu0 0.0
        %1623 = vmatpush1.msra.mxu0 0.0
        %1624 = vmatprep.subr.mxu0 0.0
        %1625 = vmatpush1.msra.mxu0 0.0
        %1626 = vmatprep.subr.mxu0 0.0
        %1627 = vmatpush1.msra.mxu0 0.0
        %1628 = vmatprep.subr.mxu0 0.0
        %1629 = vmatpush1.msra.mxu0 0.0
        %1630 = vmatprep.subr.mxu0 0.0
        %1631 = vmatpush1.msra.mxu0 0.0
        %1632 = vmatprep.subr.mxu0 0.0
        %1633 = vmatpush1.msra.mxu0 0.0
        %1634 = vmatprep.subr.mxu0 0.0
        %1635 = vmatpush1.msra.mxu0 0.0
        %1636 = vmatprep.subr.mxu0 0.0
        %1637 = vmatpush1.msra.mxu0 0.0
        %1638 = vmatprep.subr.mxu0 0.0
        %1639 = vmatpush1.msra.mxu0 0.0
        %1640 = vmatprep.subr.mxu0 0.0
        %1641 = vmatpush1.msra.mxu0 0.0
        %1642 = vmatprep.subr.mxu0 0.0
        %1643 = vmatpush1.msra.mxu0 0.0
        %1644 = vmatprep.subr.mxu0 0.0
        %1645 = vmatpush1.msra.mxu0 0.0
        %1646 = vmatprep.subr.mxu0 0.0
        %1647 = vmatpush1.msra.mxu0 0.0
        %1648 = vmatprep.subr.mxu0 0.0
        %1649 = vmatpush1.msra.mxu0 0.0
        %1650 = vmatprep.mubr.f32.mxu0 0.0
        %1651 = vmatmul.mubr.f32.gmra.mrb[0].mxu0 %v1481
        %v1652 = vpop.f32.mrb[0].mxu0
        %v1653 = vadd.f32 0.0, %v1652
        %v1654 = vpop.f32.mrb[0].mxu0
        %v1655 = vadd.f32 0.0, %v1654
        %1656 = vdwg.mxu0
        %1657 = vmatprep.subr.mxu0 0.0
        %1658 = vmatpush1.msra.mxu0 %v760
        %1659 = vmatprep.subr.mxu0 0.0
        %1660 = vmatpush1.msra.mxu0 %v763
        %1661 = vmatprep.subr.mxu0 0.0
        %1662 = vmatpush1.msra.mxu0 %v766
        %1663 = vmatprep.subr.mxu0 0.0
        %1664 = vmatpush1.msra.mxu0 %v769
        %1665 = vmatprep.subr.mxu0 0.0
        %1666 = vmatpush1.msra.mxu0 %v772
        %1667 = vmatprep.subr.mxu0 0.0
        %1668 = vmatpush1.msra.mxu0 %v775
        %1669 = vmatprep.subr.mxu0 0.0
        %1670 = vmatpush1.msra.mxu0 %v778
        %1671 = vmatprep.subr.mxu0 0.0
        %1672 = vmatpush1.msra.mxu0 %v781
        %1673 = vmatprep.subr.mxu0 0.0
        %1674 = vmatpush1.msra.mxu0 %v784
        %1675 = vmatprep.subr.mxu0 0.0
        %1676 = vmatpush1.msra.mxu0 %v787
        %1677 = vmatprep.subr.mxu0 0.0
        %1678 = vmatpush1.msra.mxu0 %v790
        %1679 = vmatprep.subr.mxu0 0.0
        %1680 = vmatpush1.msra.mxu0 %v793
        %1681 = vmatprep.subr.mxu0 0.0
        %1682 = vmatpush1.msra.mxu0 %v796
        %1683 = vmatprep.subr.mxu0 0.0
        %1684 = vmatpush1.msra.mxu0 %v799
        %1685 = vmatprep.subr.mxu0 0.0
        %1686 = vmatpush1.msra.mxu0 %v802
        %1687 = vmatprep.subr.mxu0 0.0
        %1688 = vmatpush1.msra.mxu0 %v805
        %1689 = vmatprep.subr.mxu0 0.0
        %1690 = vmatpush1.msra.mxu0 0.0
        %1691 = vmatprep.subr.mxu0 0.0
        %1692 = vmatpush1.msra.mxu0 0.0
        %1693 = vmatprep.subr.mxu0 0.0
        %1694 = vmatpush1.msra.mxu0 0.0
        %1695 = vmatprep.subr.mxu0 0.0
        %1696 = vmatpush1.msra.mxu0 0.0
        %1697 = vmatprep.subr.mxu0 0.0
        %1698 = vmatpush1.msra.mxu0 0.0
        %1699 = vmatprep.subr.mxu0 0.0
        %1700 = vmatpush1.msra.mxu0 0.0
        %1701 = vmatprep.subr.mxu0 0.0
        %1702 = vmatpush1.msra.mxu0 0.0
        %1703 = vmatprep.subr.mxu0 0.0
        %1704 = vmatpush1.msra.mxu0 0.0
        %1705 = vmatprep.subr.mxu0 0.0
        %1706 = vmatpush1.msra.mxu0 0.0
        %1707 = vmatprep.subr.mxu0 0.0
        %1708 = vmatpush1.msra.mxu0 0.0
        %1709 = vmatprep.subr.mxu0 0.0
        %1710 = vmatpush1.msra.mxu0 0.0
        %1711 = vmatprep.subr.mxu0 0.0
        %1712 = vmatpush1.msra.mxu0 0.0
        %1713 = vmatprep.subr.mxu0 0.0
        %1714 = vmatpush1.msra.mxu0 0.0
        %1715 = vmatprep.subr.mxu0 0.0
        %1716 = vmatpush1.msra.mxu0 0.0
        %1717 = vmatprep.subr.mxu0 0.0
        %1718 = vmatpush1.msra.mxu0 0.0
        %1719 = vmatprep.subr.mxu0 0.0
        %1720 = vmatpush1.msra.mxu0 0.0
        %1721 = vmatprep.mubr.f32.mxu0 0.0
        %1722 = vmatmul.mubr.f32.gmra.mrb[0].mxu0 %v1481
        %v1723 = vpop.f32.mrb[0].mxu0
        %v1724 = vadd.f32 0.0, %v1723
        %v1725 = vpop.f32.mrb[0].mxu0
        %1726 = vdwg.mxu0
        %v1727 = vadd.f32 %v1583, %v1653
        %v1728 = vadd.f32 %v1584, %v1655
        %v1729 = vxor.u32 %v1727, 2147483648
        %v1730 = vxor.u32 %v1728, 2147483648
        %v1731 = vmul.f32 %v1729, 1.442695
        %v1732 = vpow.pop %v1731
        %v1733 = vmul.f32 %v1730, 1.442695
        %v1734 = vpow.pop %v1733
        %v1735 = vadd.f32 %v1732, 1.0
        %v1736 = vadd.f32 %v1734, 1.0
        %v1737 = vrcp.pop %v1735
        %v1738 = vmul.f32 1.0, %v1737
        %v1739 = vrcp.pop %v1736
        %v1740 = vmul.f32 1.0, %v1739
        %v1741 = vadd.f32 %v1724, %v812
        %v1742 = vmul.f32 %v1738, %v1741
        %v1743 = vadd.f32 %v1585, %v1742
        %v1744 = vtanh.pop %v1743
        %v1745 = vsub.f32 1.0, %v1740
        %v1746 = vmul.f32 %v1745, %v1744
        %v1747 = vmul.f32 %v1740, %v1481
        %v1748 = vadd.f32 %v1746, %v1747
        %s1749 = scalar_lea.vmem [#allocation2], 16
        %1750 = vst [vmem:[%s1749] sm:$0xff] %v1748
        // Predicated region
        $region89: #{model_forward.1} parent=51 // pred_check
          %p1751 = pneg %p508
        $region90: #{model_forward.1} parent=51 // pred_check_branch
          %1753 = sbr.rel (%p1751) target = $region92
        $region91: #{model_forward.1} parent=51 // pred_region
          %v1754 = vld [vmem:[#allocation15] sm:$0xff]
          %v1755 = vld [vmem:[#allocation15 + $0x8] sm:$0xff]
          %v1756 = vld [vmem:[#allocation15 + $0x10] sm:$0xff]
          %v1757 = vld [vmem:[#allocation15 + $0x18] sm:$0xff]
          %v1758 = vld [vmem:[#allocation15 + $0x20] sm:$0xff]
          %v1759 = vld [vmem:[#allocation15 + $0x28] sm:$0xff]
          %v1760 = vld [vmem:[#allocation15 + $0x30] sm:$0xff]
          %v1761 = vld [vmem:[#allocation15 + $0x38] sm:$0xff]
          %v1762 = vld [vmem:[#allocation15 + $0x40] sm:$0xff]
          %v1763 = vld [vmem:[#allocation15 + $0x48] sm:$0xff]
          %v1764 = vld [vmem:[#allocation15 + $0x50] sm:$0xff]
          %v1765 = vld [vmem:[#allocation15 + $0x58] sm:$0xff]
          %v1766 = vld [vmem:[#allocation15 + $0x60] sm:$0xff]
          %v1767 = vld [vmem:[#allocation15 + $0x68] sm:$0xff]
          %v1768 = vld [vmem:[#allocation15 + $0x70] sm:$0xff]
          %v1769 = vld [vmem:[#allocation15 + $0x78] sm:$0xff]
          %v1770 = vld [vmem:[%s8] sm:$0x1]
          %v1772 = vlaneseq
          %v1773 = vshrl.u32 %v1772, 7
          %v1774 = vsub.s32 0, %v1773
          %v1775 = vrot.slane %v1770, %v1774
          %1777 = vmatprep.subr.mxu0 0.0
          %1778 = vmatpush1.msra.mxu0 %v1754
          %1779 = vmatprep.subr.mxu0 0.0
          %1780 = vmatpush1.msra.mxu0 %v1755
          %1781 = vmatprep.subr.mxu0 0.0
          %1782 = vmatpush1.msra.mxu0 %v1756
          %1783 = vmatprep.subr.mxu0 0.0
          %1784 = vmatpush1.msra.mxu0 %v1757
          %1785 = vmatprep.subr.mxu0 0.0
          %1786 = vmatpush1.msra.mxu0 %v1758
          %1787 = vmatprep.subr.mxu0 0.0
          %1788 = vmatpush1.msra.mxu0 %v1759
          %1789 = vmatprep.subr.mxu0 0.0
          %1790 = vmatpush1.msra.mxu0 %v1760
          %1791 = vmatprep.subr.mxu0 0.0
          %1792 = vmatpush1.msra.mxu0 %v1761
          %1793 = vmatprep.subr.mxu0 0.0
          %1794 = vmatpush1.msra.mxu0 %v1762
          %1795 = vmatprep.subr.mxu0 0.0
          %1796 = vmatpush1.msra.mxu0 %v1763
          %1797 = vmatprep.subr.mxu0 0.0
          %1798 = vmatpush1.msra.mxu0 %v1764
          %1799 = vmatprep.subr.mxu0 0.0
          %1800 = vmatpush1.msra.mxu0 %v1765
          %1801 = vmatprep.subr.mxu0 0.0
          %1802 = vmatpush1.msra.mxu0 %v1766
          %1803 = vmatprep.subr.mxu0 0.0
          %1804 = vmatpush1.msra.mxu0 %v1767
          %1805 = vmatprep.subr.mxu0 0.0
          %1806 = vmatpush1.msra.mxu0 %v1768
          %1807 = vmatprep.subr.mxu0 0.0
          %1808 = vmatpush1.msra.mxu0 %v1769
          %1809 = vmatprep.subr.mxu0 0.0
          %1810 = vmatpush1.msra.mxu0 0.0
          %1811 = vmatprep.subr.mxu0 0.0
          %1812 = vmatpush1.msra.mxu0 0.0
          %1813 = vmatprep.subr.mxu0 0.0
          %1814 = vmatpush1.msra.mxu0 0.0
          %1815 = vmatprep.subr.mxu0 0.0
          %1816 = vmatpush1.msra.mxu0 0.0
          %1817 = vmatprep.subr.mxu0 0.0
          %1818 = vmatpush1.msra.mxu0 0.0
          %1819 = vmatprep.subr.mxu0 0.0
          %1820 = vmatpush1.msra.mxu0 0.0
          %1821 = vmatprep.subr.mxu0 0.0
          %1822 = vmatpush1.msra.mxu0 0.0
          %1823 = vmatprep.subr.mxu0 0.0
          %1824 = vmatpush1.msra.mxu0 0.0
          %1825 = vmatprep.subr.mxu0 0.0
          %1826 = vmatpush1.msra.mxu0 0.0
          %1827 = vmatprep.subr.mxu0 0.0
          %1828 = vmatpush1.msra.mxu0 0.0
          %1829 = vmatprep.subr.mxu0 0.0
          %1830 = vmatpush1.msra.mxu0 0.0
          %1831 = vmatprep.subr.mxu0 0.0
          %1832 = vmatpush1.msra.mxu0 0.0
          %1833 = vmatprep.subr.mxu0 0.0
          %1834 = vmatpush1.msra.mxu0 0.0
          %1835 = vmatprep.subr.mxu0 0.0
          %1836 = vmatpush1.msra.mxu0 0.0
          %1837 = vmatprep.subr.mxu0 0.0
          %1838 = vmatpush1.msra.mxu0 0.0
          %1839 = vmatprep.subr.mxu0 0.0
          %1840 = vmatpush1.msra.mxu0 0.0
          %1841 = vmatprep.mubr.f32.mxu0 0.0
          %1842 = vmatmul.mubr.f32.gmra.mrb[0].mxu0 %v1748
          %v1843 = vpop.f32.mrb[0].mxu0
          %v1844 = vadd.f32 %v1775, %v1843
          %v1845 = vpop.f32.mrb[0].mxu0
          %1846 = vdwg.mxu0
          %s1847 = scalar_lea.vmem [#allocation17], 16
          %1848 = vst [vmem:[%s1847] sm:$0xff] %v1844
        $region92: #{model_forward.1} parent=51 // pred_fallthru
          _
        %s1849 = scalar_lea.vmem [#allocation3], 72
        %v1850 = vld [vmem:[%s1849] sm:$0xff]
        %v1851 = vld [vmem:[%s1849 + $0x8] sm:$0xff]
        %v1852 = vld [vmem:[%s1849 + $0x10] sm:$0xff]
        %1853 = vmatprep.subr.mxu0 %v759
        %1854 = vmatpush1.msra.mxu0 %v758
        %1855 = vmatprep.subr.mxu0 %v762
        %1856 = vmatpush1.msra.mxu0 %v761
        %1857 = vmatprep.subr.mxu0 %v765
        %1858 = vmatpush1.msra.mxu0 %v764
        %1859 = vmatprep.subr.mxu0 %v768
        %1860 = vmatpush1.msra.mxu0 %v767
        %1861 = vmatprep.subr.mxu0 %v771
        %1862 = vmatpush1.msra.mxu0 %v770
        %1863 = vmatprep.subr.mxu0 %v774
        %1864 = vmatpush1.msra.mxu0 %v773
        %1865 = vmatprep.subr.mxu0 %v777
        %1866 = vmatpush1.msra.mxu0 %v776
        %1867 = vmatprep.subr.mxu0 %v780
        %1868 = vmatpush1.msra.mxu0 %v779
        %1869 = vmatprep.subr.mxu0 %v783
        %1870 = vmatpush1.msra.mxu0 %v782
        %1871 = vmatprep.subr.mxu0 %v786
        %1872 = vmatpush1.msra.mxu0 %v785
        %1873 = vmatprep.subr.mxu0 %v789
        %1874 = vmatpush1.msra.mxu0 %v788
        %1875 = vmatprep.subr.mxu0 %v792
        %1876 = vmatpush1.msra.mxu0 %v791
        %1877 = vmatprep.subr.mxu0 %v795
        %1878 = vmatpush1.msra.mxu0 %v794
        %1879 = vmatprep.subr.mxu0 %v798
        %1880 = vmatpush1.msra.mxu0 %v797
        %1881 = vmatprep.subr.mxu0 %v801
        %1882 = vmatpush1.msra.mxu0 %v800
        %1883 = vmatprep.subr.mxu0 %v804
        %1884 = vmatpush1.msra.mxu0 %v803
        %1885 = vmatprep.subr.mxu0 0.0
        %1886 = vmatpush1.msra.mxu0 0.0
        %1887 = vmatprep.subr.mxu0 0.0
        %1888 = vmatpush1.msra.mxu0 0.0
        %1889 = vmatprep.subr.mxu0 0.0
        %1890 = vmatpush1.msra.mxu0 0.0
        %1891 = vmatprep.subr.mxu0 0.0
        %1892 = vmatpush1.msra.mxu0 0.0
        %1893 = vmatprep.subr.mxu0 0.0
        %1894 = vmatpush1.msra.mxu0 0.0
        %1895 = vmatprep.subr.mxu0 0.0
        %1896 = vmatpush1.msra.mxu0 0.0
        %1897 = vmatprep.subr.mxu0 0.0
        %1898 = vmatpush1.msra.mxu0 0.0
        %1899 = vmatprep.subr.mxu0 0.0
        %1900 = vmatpush1.msra.mxu0 0.0
        %1901 = vmatprep.subr.mxu0 0.0
        %1902 = vmatpush1.msra.mxu0 0.0
        %1903 = vmatprep.subr.mxu0 0.0
        %1904 = vmatpush1.msra.mxu0 0.0
        %1905 = vmatprep.subr.mxu0 0.0
        %1906 = vmatpush1.msra.mxu0 0.0
        %1907 = vmatprep.subr.mxu0 0.0
        %1908 = vmatpush1.msra.mxu0 0.0
        %1909 = vmatprep.subr.mxu0 0.0
        %1910 = vmatpush1.msra.mxu0 0.0
        %1911 = vmatprep.subr.mxu0 0.0
        %1912 = vmatpush1.msra.mxu0 0.0
        %1913 = vmatprep.subr.mxu0 0.0
        %1914 = vmatpush1.msra.mxu0 0.0
        %1915 = vmatprep.subr.mxu0 0.0
        %1916 = vmatpush1.msra.mxu0 0.0
        %1917 = vmatprep.mubr.f32.mxu0 0.0
        %1918 = vmatmul.mubr.f32.gmra.mrb[0].mxu0 %v1748
        %v1919 = vpop.f32.mrb[0].mxu0
        %v1920 = vadd.f32 0.0, %v1919
        %v1921 = vpop.f32.mrb[0].mxu0
        %v1922 = vadd.f32 0.0, %v1921
        %1923 = vdwg.mxu0
        %1924 = vmatprep.subr.mxu0 0.0
        %1925 = vmatpush1.msra.mxu0 %v760
        %1926 = vmatprep.subr.mxu0 0.0
        %1927 = vmatpush1.msra.mxu0 %v763
        %1928 = vmatprep.subr.mxu0 0.0
        %1929 = vmatpush1.msra.mxu0 %v766
        %1930 = vmatprep.subr.mxu0 0.0
        %1931 = vmatpush1.msra.mxu0 %v769
        %1932 = vmatprep.subr.mxu0 0.0
        %1933 = vmatpush1.msra.mxu0 %v772
        %1934 = vmatprep.subr.mxu0 0.0
        %1935 = vmatpush1.msra.mxu0 %v775
        %1936 = vmatprep.subr.mxu0 0.0
        %1937 = vmatpush1.msra.mxu0 %v778
        %1938 = vmatprep.subr.mxu0 0.0
        %1939 = vmatpush1.msra.mxu0 %v781
        %1940 = vmatprep.subr.mxu0 0.0
        %1941 = vmatpush1.msra.mxu0 %v784
        %1942 = vmatprep.subr.mxu0 0.0
        %1943 = vmatpush1.msra.mxu0 %v787
        %1944 = vmatprep.subr.mxu0 0.0
        %1945 = vmatpush1.msra.mxu0 %v790
        %1946 = vmatprep.subr.mxu0 0.0
        %1947 = vmatpush1.msra.mxu0 %v793
        %1948 = vmatprep.subr.mxu0 0.0
        %1949 = vmatpush1.msra.mxu0 %v796
        %1950 = vmatprep.subr.mxu0 0.0
        %1951 = vmatpush1.msra.mxu0 %v799
        %1952 = vmatprep.subr.mxu0 0.0
        %1953 = vmatpush1.msra.mxu0 %v802
        %1954 = vmatprep.subr.mxu0 0.0
        %1955 = vmatpush1.msra.mxu0 %v805
        %1956 = vmatprep.subr.mxu0 0.0
        %1957 = vmatpush1.msra.mxu0 0.0
        %1958 = vmatprep.subr.mxu0 0.0
        %1959 = vmatpush1.msra.mxu0 0.0
        %1960 = vmatprep.subr.mxu0 0.0
        %1961 = vmatpush1.msra.mxu0 0.0
        %1962 = vmatprep.subr.mxu0 0.0
        %1963 = vmatpush1.msra.mxu0 0.0
        %1964 = vmatprep.subr.mxu0 0.0
        %1965 = vmatpush1.msra.mxu0 0.0
        %1966 = vmatprep.subr.mxu0 0.0
        %1967 = vmatpush1.msra.mxu0 0.0
        %1968 = vmatprep.subr.mxu0 0.0
        %1969 = vmatpush1.msra.mxu0 0.0
        %1970 = vmatprep.subr.mxu0 0.0
        %1971 = vmatpush1.msra.mxu0 0.0
        %1972 = vmatprep.subr.mxu0 0.0
        %1973 = vmatpush1.msra.mxu0 0.0
        %1974 = vmatprep.subr.mxu0 0.0
        %1975 = vmatpush1.msra.mxu0 0.0
        %1976 = vmatprep.subr.mxu0 0.0
        %1977 = vmatpush1.msra.mxu0 0.0
        %1978 = vmatprep.subr.mxu0 0.0
        %1979 = vmatpush1.msra.mxu0 0.0
        %1980 = vmatprep.subr.mxu0 0.0
        %1981 = vmatpush1.msra.mxu0 0.0
        %1982 = vmatprep.subr.mxu0 0.0
        %1983 = vmatpush1.msra.mxu0 0.0
        %1984 = vmatprep.subr.mxu0 0.0
        %1985 = vmatpush1.msra.mxu0 0.0
        %1986 = vmatprep.subr.mxu0 0.0
        %1987 = vmatpush1.msra.mxu0 0.0
        %1988 = vmatprep.mubr.f32.mxu0 0.0
        %1989 = vmatmul.mubr.f32.gmra.mrb[0].mxu0 %v1748
        %v1990 = vpop.f32.mrb[0].mxu0
        %v1991 = vadd.f32 0.0, %v1990
        %v1992 = vpop.f32.mrb[0].mxu0
        %1993 = vdwg.mxu0
        %v1994 = vadd.f32 %v1850, %v1920
        %v1995 = vadd.f32 %v1851, %v1922
        %v1996 = vxor.u32 %v1994, 2147483648
        %v1997 = vxor.u32 %v1995, 2147483648
        %v1998 = vmul.f32 %v1996, 1.442695
        %v1999 = vpow.pop %v1998
        %v2000 = vmul.f32 %v1997, 1.442695
        %v2001 = vpow.pop %v2000
        %v2002 = vadd.f32 %v1999, 1.0
        %v2003 = vadd.f32 %v2001, 1.0
        %v2004 = vrcp.pop %v2002
        %v2005 = vmul.f32 1.0, %v2004
        %v2006 = vrcp.pop %v2003
        %v2007 = vmul.f32 1.0, %v2006
        %v2008 = vadd.f32 %v1991, %v812
        %v2009 = vmul.f32 %v2005, %v2008
        %v2010 = vadd.f32 %v1852, %v2009
        %v2011 = vtanh.pop %v2010
        %v2012 = vsub.f32 1.0, %v2007
        %v2013 = vmul.f32 %v2012, %v2011
        %v2014 = vmul.f32 %v2007, %v1748
        %v2015 = vadd.f32 %v2013, %v2014
        %s2016 = scalar_lea.vmem [#allocation2], 24
        %2017 = vst [vmem:[%s2016] sm:$0xff] %v2015
        // Predicated region
        $region93: #{model_forward.1} parent=51 // pred_check
          %p2018 = pneg %p508
        $region94: #{model_forward.1} parent=51 // pred_check_branch
          %2020 = sbr.rel (%p2018) target = $region96
        $region95: #{model_forward.1} parent=51 // pred_region
          %v2021 = vld [vmem:[#allocation15] sm:$0xff]
          %v2022 = vld [vmem:[#allocation15 + $0x8] sm:$0xff]
          %v2023 = vld [vmem:[#allocation15 + $0x10] sm:$0xff]
          %v2024 = vld [vmem:[#allocation15 + $0x18] sm:$0xff]
          %v2025 = vld [vmem:[#allocation15 + $0x20] sm:$0xff]
          %v2026 = vld [vmem:[#allocation15 + $0x28] sm:$0xff]
          %v2027 = vld [vmem:[#allocation15 + $0x30] sm:$0xff]
          %v2028 = vld [vmem:[#allocation15 + $0x38] sm:$0xff]
          %v2029 = vld [vmem:[#allocation15 + $0x40] sm:$0xff]
          %v2030 = vld [vmem:[#allocation15 + $0x48] sm:$0xff]
          %v2031 = vld [vmem:[#allocation15 + $0x50] sm:$0xff]
          %v2032 = vld [vmem:[#allocation15 + $0x58] sm:$0xff]
          %v2033 = vld [vmem:[#allocation15 + $0x60] sm:$0xff]
          %v2034 = vld [vmem:[#allocation15 + $0x68] sm:$0xff]
          %v2035 = vld [vmem:[#allocation15 + $0x70] sm:$0xff]
          %v2036 = vld [vmem:[#allocation15 + $0x78] sm:$0xff]
          %v2037 = vld [vmem:[%s8] sm:$0x1]
          %v2039 = vlaneseq
          %v2040 = vshrl.u32 %v2039, 7
          %v2041 = vsub.s32 0, %v2040
          %v2042 = vrot.slane %v2037, %v2041
          %2044 = vmatprep.subr.mxu0 0.0
          %2045 = vmatpush1.msra.mxu0 %v2021
          %2046 = vmatprep.subr.mxu0 0.0
          %2047 = vmatpush1.msra.mxu0 %v2022
          %2048 = vmatprep.subr.mxu0 0.0
          %2049 = vmatpush1.msra.mxu0 %v2023
          %2050 = vmatprep.subr.mxu0 0.0
          %2051 = vmatpush1.msra.mxu0 %v2024
          %2052 = vmatprep.subr.mxu0 0.0
          %2053 = vmatpush1.msra.mxu0 %v2025
          %2054 = vmatprep.subr.mxu0 0.0
          %2055 = vmatpush1.msra.mxu0 %v2026
          %2056 = vmatprep.subr.mxu0 0.0
          %2057 = vmatpush1.msra.mxu0 %v2027
          %2058 = vmatprep.subr.mxu0 0.0
          %2059 = vmatpush1.msra.mxu0 %v2028
          %2060 = vmatprep.subr.mxu0 0.0
          %2061 = vmatpush1.msra.mxu0 %v2029
          %2062 = vmatprep.subr.mxu0 0.0
          %2063 = vmatpush1.msra.mxu0 %v2030
          %2064 = vmatprep.subr.mxu0 0.0
          %2065 = vmatpush1.msra.mxu0 %v2031
          %2066 = vmatprep.subr.mxu0 0.0
          %2067 = vmatpush1.msra.mxu0 %v2032
          %2068 = vmatprep.subr.mxu0 0.0
          %2069 = vmatpush1.msra.mxu0 %v2033
          %2070 = vmatprep.subr.mxu0 0.0
          %2071 = vmatpush1.msra.mxu0 %v2034
          %2072 = vmatprep.subr.mxu0 0.0
          %2073 = vmatpush1.msra.mxu0 %v2035
          %2074 = vmatprep.subr.mxu0 0.0
          %2075 = vmatpush1.msra.mxu0 %v2036
          %2076 = vmatprep.subr.mxu0 0.0
          %2077 = vmatpush1.msra.mxu0 0.0
          %2078 = vmatprep.subr.mxu0 0.0
          %2079 = vmatpush1.msra.mxu0 0.0
          %2080 = vmatprep.subr.mxu0 0.0
          %2081 = vmatpush1.msra.mxu0 0.0
          %2082 = vmatprep.subr.mxu0 0.0
          %2083 = vmatpush1.msra.mxu0 0.0
          %2084 = vmatprep.subr.mxu0 0.0
          %2085 = vmatpush1.msra.mxu0 0.0
          %2086 = vmatprep.subr.mxu0 0.0
          %2087 = vmatpush1.msra.mxu0 0.0
          %2088 = vmatprep.subr.mxu0 0.0
          %2089 = vmatpush1.msra.mxu0 0.0
          %2090 = vmatprep.subr.mxu0 0.0
          %2091 = vmatpush1.msra.mxu0 0.0
          %2092 = vmatprep.subr.mxu0 0.0
          %2093 = vmatpush1.msra.mxu0 0.0
          %2094 = vmatprep.subr.mxu0 0.0
          %2095 = vmatpush1.msra.mxu0 0.0
          %2096 = vmatprep.subr.mxu0 0.0
          %2097 = vmatpush1.msra.mxu0 0.0
          %2098 = vmatprep.subr.mxu0 0.0
          %2099 = vmatpush1.msra.mxu0 0.0
          %2100 = vmatprep.subr.mxu0 0.0
          %2101 = vmatpush1.msra.mxu0 0.0
          %2102 = vmatprep.subr.mxu0 0.0
          %2103 = vmatpush1.msra.mxu0 0.0
          %2104 = vmatprep.subr.mxu0 0.0
          %2105 = vmatpush1.msra.mxu0 0.0
          %2106 = vmatprep.subr.mxu0 0.0
          %2107 = vmatpush1.msra.mxu0 0.0
          %2108 = vmatprep.mubr.f32.mxu0 0.0
          %2109 = vmatmul.mubr.f32.gmra.mrb[0].mxu0 %v2015
          %v2110 = vpop.f32.mrb[0].mxu0
          %v2111 = vadd.f32 %v2042, %v2110
          %v2112 = vpop.f32.mrb[0].mxu0
          %2113 = vdwg.mxu0
          %s2114 = scalar_lea.vmem [#allocation17], 24
          %2115 = vst [vmem:[%s2114] sm:$0xff] %v2111
        $region96: #{model_forward.1} parent=51 // pred_fallthru
          _
        %s2116 = scalar_lea.vmem [#allocation3], 96
        %v2117 = vld [vmem:[%s2116] sm:$0xff]
        %v2118 = vld [vmem:[%s2116 + $0x8] sm:$0xff]
        %v2119 = vld [vmem:[%s2116 + $0x10] sm:$0xff]
        %2120 = vmatprep.subr.mxu0 %v759
        %2121 = vmatpush1.msra.mxu0 %v758
        %2122 = vmatprep.subr.mxu0 %v762
        %2123 = vmatpush1.msra.mxu0 %v761
        %2124 = vmatprep.subr.mxu0 %v765
        %2125 = vmatpush1.msra.mxu0 %v764
        %2126 = vmatprep.subr.mxu0 %v768
        %2127 = vmatpush1.msra.mxu0 %v767
        %2128 = vmatprep.subr.mxu0 %v771
        %2129 = vmatpush1.msra.mxu0 %v770
        %2130 = vmatprep.subr.mxu0 %v774
        %2131 = vmatpush1.msra.mxu0 %v773
        %2132 = vmatprep.subr.mxu0 %v777
        %2133 = vmatpush1.msra.mxu0 %v776
        %2134 = vmatprep.subr.mxu0 %v780
        %2135 = vmatpush1.msra.mxu0 %v779
        %2136 = vmatprep.subr.mxu0 %v783
        %2137 = vmatpush1.msra.mxu0 %v782
        %2138 = vmatprep.subr.mxu0 %v786
        %2139 = vmatpush1.msra.mxu0 %v785
        %2140 = vmatprep.subr.mxu0 %v789
        %2141 = vmatpush1.msra.mxu0 %v788
        %2142 = vmatprep.subr.mxu0 %v792
        %2143 = vmatpush1.msra.mxu0 %v791
        %2144 = vmatprep.subr.mxu0 %v795
        %2145 = vmatpush1.msra.mxu0 %v794
        %2146 = vmatprep.subr.mxu0 %v798
        %2147 = vmatpush1.msra.mxu0 %v797
        %2148 = vmatprep.subr.mxu0 %v801
        %2149 = vmatpush1.msra.mxu0 %v800
        %2150 = vmatprep.subr.mxu0 %v804
        %2151 = vmatpush1.msra.mxu0 %v803
        %2152 = vmatprep.subr.mxu0 0.0
        %2153 = vmatpush1.msra.mxu0 0.0
        %2154 = vmatprep.subr.mxu0 0.0
        %2155 = vmatpush1.msra.mxu0 0.0
        %2156 = vmatprep.subr.mxu0 0.0
        %2157 = vmatpush1.msra.mxu0 0.0
        %2158 = vmatprep.subr.mxu0 0.0
        %2159 = vmatpush1.msra.mxu0 0.0
        %2160 = vmatprep.subr.mxu0 0.0
        %2161 = vmatpush1.msra.mxu0 0.0
        %2162 = vmatprep.subr.mxu0 0.0
        %2163 = vmatpush1.msra.mxu0 0.0
        %2164 = vmatprep.subr.mxu0 0.0
        %2165 = vmatpush1.msra.mxu0 0.0
        %2166 = vmatprep.subr.mxu0 0.0
        %2167 = vmatpush1.msra.mxu0 0.0
        %2168 = vmatprep.subr.mxu0 0.0
        %2169 = vmatpush1.msra.mxu0 0.0
        %2170 = vmatprep.subr.mxu0 0.0
        %2171 = vmatpush1.msra.mxu0 0.0
        %2172 = vmatprep.subr.mxu0 0.0
        %2173 = vmatpush1.msra.mxu0 0.0
        %2174 = vmatprep.subr.mxu0 0.0
        %2175 = vmatpush1.msra.mxu0 0.0
        %2176 = vmatprep.subr.mxu0 0.0
        %2177 = vmatpush1.msra.mxu0 0.0
        %2178 = vmatprep.subr.mxu0 0.0
        %2179 = vmatpush1.msra.mxu0 0.0
        %2180 = vmatprep.subr.mxu0 0.0
        %2181 = vmatpush1.msra.mxu0 0.0
        %2182 = vmatprep.subr.mxu0 0.0
        %2183 = vmatpush1.msra.mxu0 0.0
        %2184 = vmatprep.mubr.f32.mxu0 0.0
        %2185 = vmatmul.mubr.f32.gmra.mrb[0].mxu0 %v2015
        %v2186 = vpop.f32.mrb[0].mxu0
        %v2187 = vadd.f32 0.0, %v2186
        %v2188 = vpop.f32.mrb[0].mxu0
        %v2189 = vadd.f32 0.0, %v2188
        %2190 = vdwg.mxu0
        %2191 = vmatprep.subr.mxu0 0.0
        %2192 = vmatpush1.msra.mxu0 %v760
        %2193 = vmatprep.subr.mxu0 0.0
        %2194 = vmatpush1.msra.mxu0 %v763
        %2195 = vmatprep.subr.mxu0 0.0
        %2196 = vmatpush1.msra.mxu0 %v766
        %2197 = vmatprep.subr.mxu0 0.0
        %2198 = vmatpush1.msra.mxu0 %v769
        %2199 = vmatprep.subr.mxu0 0.0
        %2200 = vmatpush1.msra.mxu0 %v772
        %2201 = vmatprep.subr.mxu0 0.0
        %2202 = vmatpush1.msra.mxu0 %v775
        %2203 = vmatprep.subr.mxu0 0.0
        %2204 = vmatpush1.msra.mxu0 %v778
        %2205 = vmatprep.subr.mxu0 0.0
        %2206 = vmatpush1.msra.mxu0 %v781
        %2207 = vmatprep.subr.mxu0 0.0
        %2208 = vmatpush1.msra.mxu0 %v784
        %2209 = vmatprep.subr.mxu0 0.0
        %2210 = vmatpush1.msra.mxu0 %v787
        %2211 = vmatprep.subr.mxu0 0.0
        %2212 = vmatpush1.msra.mxu0 %v790
        %2213 = vmatprep.subr.mxu0 0.0
        %2214 = vmatpush1.msra.mxu0 %v793
        %2215 = vmatprep.subr.mxu0 0.0
        %2216 = vmatpush1.msra.mxu0 %v796
        %2217 = vmatprep.subr.mxu0 0.0
        %2218 = vmatpush1.msra.mxu0 %v799
        %2219 = vmatprep.subr.mxu0 0.0
        %2220 = vmatpush1.msra.mxu0 %v802
        %2221 = vmatprep.subr.mxu0 0.0
        %2222 = vmatpush1.msra.mxu0 %v805
        %2223 = vmatprep.subr.mxu0 0.0
        %2224 = vmatpush1.msra.mxu0 0.0
        %2225 = vmatprep.subr.mxu0 0.0
        %2226 = vmatpush1.msra.mxu0 0.0
        %2227 = vmatprep.subr.mxu0 0.0
        %2228 = vmatpush1.msra.mxu0 0.0
        %2229 = vmatprep.subr.mxu0 0.0
        %2230 = vmatpush1.msra.mxu0 0.0
        %2231 = vmatprep.subr.mxu0 0.0
        %2232 = vmatpush1.msra.mxu0 0.0
        %2233 = vmatprep.subr.mxu0 0.0
        %2234 = vmatpush1.msra.mxu0 0.0
        %2235 = vmatprep.subr.mxu0 0.0
        %2236 = vmatpush1.msra.mxu0 0.0
        %2237 = vmatprep.subr.mxu0 0.0
        %2238 = vmatpush1.msra.mxu0 0.0
        %2239 = vmatprep.subr.mxu0 0.0
        %2240 = vmatpush1.msra.mxu0 0.0
        %2241 = vmatprep.subr.mxu0 0.0
        %2242 = vmatpush1.msra.mxu0 0.0
        %2243 = vmatprep.subr.mxu0 0.0
        %2244 = vmatpush1.msra.mxu0 0.0
        %2245 = vmatprep.subr.mxu0 0.0
        %2246 = vmatpush1.msra.mxu0 0.0
        %2247 = vmatprep.subr.mxu0 0.0
        %2248 = vmatpush1.msra.mxu0 0.0
        %2249 = vmatprep.subr.mxu0 0.0
        %2250 = vmatpush1.msra.mxu0 0.0
        %2251 = vmatprep.subr.mxu0 0.0
        %2252 = vmatpush1.msra.mxu0 0.0
        %2253 = vmatprep.subr.mxu0 0.0
        %2254 = vmatpush1.msra.mxu0 0.0
        %2255 = vmatprep.mubr.f32.mxu0 0.0
        %2256 = vmatmul.mubr.f32.gmra.mrb[0].mxu0 %v2015
        %v2257 = vpop.f32.mrb[0].mxu0
        %v2258 = vadd.f32 0.0, %v2257
        %v2259 = vpop.f32.mrb[0].mxu0
        %2260 = vdwg.mxu0
        %v2261 = vadd.f32 %v2117, %v2187
        %v2262 = vadd.f32 %v2118, %v2189
        %v2263 = vxor.u32 %v2261, 2147483648
        %v2264 = vxor.u32 %v2262, 2147483648
        %v2265 = vmul.f32 %v2263, 1.442695
        %v2266 = vpow.pop %v2265
        %v2267 = vmul.f32 %v2264, 1.442695
        %v2268 = vpow.pop %v2267
        %v2269 = vadd.f32 %v2266, 1.0
        %v2270 = vadd.f32 %v2268, 1.0
        %v2271 = vrcp.pop %v2269
        %v2272 = vmul.f32 1.0, %v2271
        %v2273 = vrcp.pop %v2270
        %v2274 = vmul.f32 1.0, %v2273
        %v2275 = vadd.f32 %v2258, %v812
        %v2276 = vmul.f32 %v2272, %v2275
        %v2277 = vadd.f32 %v2119, %v2276
        %v2278 = vtanh.pop %v2277
        %v2279 = vsub.f32 1.0, %v2274
        %v2280 = vmul.f32 %v2279, %v2278
        %v2281 = vmul.f32 %v2274, %v2015
        %v2282 = vadd.f32 %v2280, %v2281
        %s2283 = scalar_lea.vmem [#allocation2], 32
        %2284 = vst [vmem:[%s2283] sm:$0xff] %v2282
        // Predicated region
        $region97: #{model_forward.1} parent=51 // pred_check
          %p2285 = pneg %p508
        $region98: #{model_forward.1} parent=51 // pred_check_branch
          %2287 = sbr.rel (%p2285) target = $region100
        $region99: #{model_forward.1} parent=51 // pred_region
          %v2288 = vld [vmem:[#allocation15] sm:$0xff]
          %v2289 = vld [vmem:[#allocation15 + $0x8] sm:$0xff]
          %v2290 = vld [vmem:[#allocation15 + $0x10] sm:$0xff]
          %v2291 = vld [vmem:[#allocation15 + $0x18] sm:$0xff]
          %v2292 = vld [vmem:[#allocation15 + $0x20] sm:$0xff]
          %v2293 = vld [vmem:[#allocation15 + $0x28] sm:$0xff]
          %v2294 = vld [vmem:[#allocation15 + $0x30] sm:$0xff]
          %v2295 = vld [vmem:[#allocation15 + $0x38] sm:$0xff]
          %v2296 = vld [vmem:[#allocation15 + $0x40] sm:$0xff]
          %v2297 = vld [vmem:[#allocation15 + $0x48] sm:$0xff]
          %v2298 = vld [vmem:[#allocation15 + $0x50] sm:$0xff]
          %v2299 = vld [vmem:[#allocation15 + $0x58] sm:$0xff]
          %v2300 = vld [vmem:[#allocation15 + $0x60] sm:$0xff]
          %v2301 = vld [vmem:[#allocation15 + $0x68] sm:$0xff]
          %v2302 = vld [vmem:[#allocation15 + $0x70] sm:$0xff]
          %v2303 = vld [vmem:[#allocation15 + $0x78] sm:$0xff]
          %v2304 = vld [vmem:[%s8] sm:$0x1]
          %v2306 = vlaneseq
          %v2307 = vshrl.u32 %v2306, 7
          %v2308 = vsub.s32 0, %v2307
          %v2309 = vrot.slane %v2304, %v2308
          %2311 = vmatprep.subr.mxu0 0.0
          %2312 = vmatpush1.msra.mxu0 %v2288
          %2313 = vmatprep.subr.mxu0 0.0
          %2314 = vmatpush1.msra.mxu0 %v2289
          %2315 = vmatprep.subr.mxu0 0.0
          %2316 = vmatpush1.msra.mxu0 %v2290
          %2317 = vmatprep.subr.mxu0 0.0
          %2318 = vmatpush1.msra.mxu0 %v2291
          %2319 = vmatprep.subr.mxu0 0.0
          %2320 = vmatpush1.msra.mxu0 %v2292
          %2321 = vmatprep.subr.mxu0 0.0
          %2322 = vmatpush1.msra.mxu0 %v2293
          %2323 = vmatprep.subr.mxu0 0.0
          %2324 = vmatpush1.msra.mxu0 %v2294
          %2325 = vmatprep.subr.mxu0 0.0
          %2326 = vmatpush1.msra.mxu0 %v2295
          %2327 = vmatprep.subr.mxu0 0.0
          %2328 = vmatpush1.msra.mxu0 %v2296
          %2329 = vmatprep.subr.mxu0 0.0
          %2330 = vmatpush1.msra.mxu0 %v2297
          %2331 = vmatprep.subr.mxu0 0.0
          %2332 = vmatpush1.msra.mxu0 %v2298
          %2333 = vmatprep.subr.mxu0 0.0
          %2334 = vmatpush1.msra.mxu0 %v2299
          %2335 = vmatprep.subr.mxu0 0.0
          %2336 = vmatpush1.msra.mxu0 %v2300
          %2337 = vmatprep.subr.mxu0 0.0
          %2338 = vmatpush1.msra.mxu0 %v2301
          %2339 = vmatprep.subr.mxu0 0.0
          %2340 = vmatpush1.msra.mxu0 %v2302
          %2341 = vmatprep.subr.mxu0 0.0
          %2342 = vmatpush1.msra.mxu0 %v2303
          %2343 = vmatprep.subr.mxu0 0.0
          %2344 = vmatpush1.msra.mxu0 0.0
          %2345 = vmatprep.subr.mxu0 0.0
          %2346 = vmatpush1.msra.mxu0 0.0
          %2347 = vmatprep.subr.mxu0 0.0
          %2348 = vmatpush1.msra.mxu0 0.0
          %2349 = vmatprep.subr.mxu0 0.0
          %2350 = vmatpush1.msra.mxu0 0.0
          %2351 = vmatprep.subr.mxu0 0.0
          %2352 = vmatpush1.msra.mxu0 0.0
          %2353 = vmatprep.subr.mxu0 0.0
          %2354 = vmatpush1.msra.mxu0 0.0
          %2355 = vmatprep.subr.mxu0 0.0
          %2356 = vmatpush1.msra.mxu0 0.0
          %2357 = vmatprep.subr.mxu0 0.0
          %2358 = vmatpush1.msra.mxu0 0.0
          %2359 = vmatprep.subr.mxu0 0.0
          %2360 = vmatpush1.msra.mxu0 0.0
          %2361 = vmatprep.subr.mxu0 0.0
          %2362 = vmatpush1.msra.mxu0 0.0
          %2363 = vmatprep.subr.mxu0 0.0
          %2364 = vmatpush1.msra.mxu0 0.0
          %2365 = vmatprep.subr.mxu0 0.0
          %2366 = vmatpush1.msra.mxu0 0.0
          %2367 = vmatprep.subr.mxu0 0.0
          %2368 = vmatpush1.msra.mxu0 0.0
          %2369 = vmatprep.subr.mxu0 0.0
          %2370 = vmatpush1.msra.mxu0 0.0
          %2371 = vmatprep.subr.mxu0 0.0
          %2372 = vmatpush1.msra.mxu0 0.0
          %2373 = vmatprep.subr.mxu0 0.0
          %2374 = vmatpush1.msra.mxu0 0.0
          %2375 = vmatprep.mubr.f32.mxu0 0.0
          %2376 = vmatmul.mubr.f32.gmra.mrb[0].mxu0 %v2282
          %v2377 = vpop.f32.mrb[0].mxu0
          %v2378 = vadd.f32 %v2309, %v2377
          %v2379 = vpop.f32.mrb[0].mxu0
          %2380 = vdwg.mxu0
          %s2381 = scalar_lea.vmem [#allocation17], 32
          %2382 = vst [vmem:[%s2381] sm:$0xff] %v2378
        $region100: #{model_forward.1} parent=51 // pred_fallthru
          _
        %s2383 = scalar_lea.vmem [#allocation3], 120
        %v2384 = vld [vmem:[%s2383] sm:$0xff]
        %v2385 = vld [vmem:[%s2383 + $0x8] sm:$0xff]
        %v2386 = vld [vmem:[%s2383 + $0x10] sm:$0xff]
        %2387 = vmatprep.subr.mxu0 %v759
        %2388 = vmatpush1.msra.mxu0 %v758
        %2389 = vmatprep.subr.mxu0 %v762
        %2390 = vmatpush1.msra.mxu0 %v761
        %2391 = vmatprep.subr.mxu0 %v765
        %2392 = vmatpush1.msra.mxu0 %v764
        %2393 = vmatprep.subr.mxu0 %v768
        %2394 = vmatpush1.msra.mxu0 %v767
        %2395 = vmatprep.subr.mxu0 %v771
        %2396 = vmatpush1.msra.mxu0 %v770
        %2397 = vmatprep.subr.mxu0 %v774
        %2398 = vmatpush1.msra.mxu0 %v773
        %2399 = vmatprep.subr.mxu0 %v777
        %2400 = vmatpush1.msra.mxu0 %v776
        %2401 = vmatprep.subr.mxu0 %v780
        %2402 = vmatpush1.msra.mxu0 %v779
        %2403 = vmatprep.subr.mxu0 %v783
        %2404 = vmatpush1.msra.mxu0 %v782
        %2405 = vmatprep.subr.mxu0 %v786
        %2406 = vmatpush1.msra.mxu0 %v785
        %2407 = vmatprep.subr.mxu0 %v789
        %2408 = vmatpush1.msra.mxu0 %v788
        %2409 = vmatprep.subr.mxu0 %v792
        %2410 = vmatpush1.msra.mxu0 %v791
        %2411 = vmatprep.subr.mxu0 %v795
        %2412 = vmatpush1.msra.mxu0 %v794
        %2413 = vmatprep.subr.mxu0 %v798
        %2414 = vmatpush1.msra.mxu0 %v797
        %2415 = vmatprep.subr.mxu0 %v801
        %2416 = vmatpush1.msra.mxu0 %v800
        %2417 = vmatprep.subr.mxu0 %v804
        %2418 = vmatpush1.msra.mxu0 %v803
        %2419 = vmatprep.subr.mxu0 0.0
        %2420 = vmatpush1.msra.mxu0 0.0
        %2421 = vmatprep.subr.mxu0 0.0
        %2422 = vmatpush1.msra.mxu0 0.0
        %2423 = vmatprep.subr.mxu0 0.0
        %2424 = vmatpush1.msra.mxu0 0.0
        %2425 = vmatprep.subr.mxu0 0.0
        %2426 = vmatpush1.msra.mxu0 0.0
        %2427 = vmatprep.subr.mxu0 0.0
        %2428 = vmatpush1.msra.mxu0 0.0
        %2429 = vmatprep.subr.mxu0 0.0
        %2430 = vmatpush1.msra.mxu0 0.0
        %2431 = vmatprep.subr.mxu0 0.0
        %2432 = vmatpush1.msra.mxu0 0.0
        %2433 = vmatprep.subr.mxu0 0.0
        %2434 = vmatpush1.msra.mxu0 0.0
        %2435 = vmatprep.subr.mxu0 0.0
        %2436 = vmatpush1.msra.mxu0 0.0
        %2437 = vmatprep.subr.mxu0 0.0
        %2438 = vmatpush1.msra.mxu0 0.0
        %2439 = vmatprep.subr.mxu0 0.0
        %2440 = vmatpush1.msra.mxu0 0.0
        %2441 = vmatprep.subr.mxu0 0.0
        %2442 = vmatpush1.msra.mxu0 0.0
        %2443 = vmatprep.subr.mxu0 0.0
        %2444 = vmatpush1.msra.mxu0 0.0
        %2445 = vmatprep.subr.mxu0 0.0
        %2446 = vmatpush1.msra.mxu0 0.0
        %2447 = vmatprep.subr.mxu0 0.0
        %2448 = vmatpush1.msra.mxu0 0.0
        %2449 = vmatprep.subr.mxu0 0.0
        %2450 = vmatpush1.msra.mxu0 0.0
        %2451 = vmatprep.mubr.f32.mxu0 0.0
        %2452 = vmatmul.mubr.f32.gmra.mrb[0].mxu0 %v2282
        %v2453 = vpop.f32.mrb[0].mxu0
        %v2454 = vadd.f32 0.0, %v2453
        %v2455 = vpop.f32.mrb[0].mxu0
        %v2456 = vadd.f32 0.0, %v2455
        %2457 = vdwg.mxu0
        %2458 = vmatprep.subr.mxu0 0.0
        %2459 = vmatpush1.msra.mxu0 %v760
        %2460 = vmatprep.subr.mxu0 0.0
        %2461 = vmatpush1.msra.mxu0 %v763
        %2462 = vmatprep.subr.mxu0 0.0
        %2463 = vmatpush1.msra.mxu0 %v766
        %2464 = vmatprep.subr.mxu0 0.0
        %2465 = vmatpush1.msra.mxu0 %v769
        %2466 = vmatprep.subr.mxu0 0.0
        %2467 = vmatpush1.msra.mxu0 %v772
        %2468 = vmatprep.subr.mxu0 0.0
        %2469 = vmatpush1.msra.mxu0 %v775
        %2470 = vmatprep.subr.mxu0 0.0
        %2471 = vmatpush1.msra.mxu0 %v778
        %2472 = vmatprep.subr.mxu0 0.0
        %2473 = vmatpush1.msra.mxu0 %v781
        %2474 = vmatprep.subr.mxu0 0.0
        %2475 = vmatpush1.msra.mxu0 %v784
        %2476 = vmatprep.subr.mxu0 0.0
        %2477 = vmatpush1.msra.mxu0 %v787
        %2478 = vmatprep.subr.mxu0 0.0
        %2479 = vmatpush1.msra.mxu0 %v790
        %2480 = vmatprep.subr.mxu0 0.0
        %2481 = vmatpush1.msra.mxu0 %v793
        %2482 = vmatprep.subr.mxu0 0.0
        %2483 = vmatpush1.msra.mxu0 %v796
        %2484 = vmatprep.subr.mxu0 0.0
        %2485 = vmatpush1.msra.mxu0 %v799
        %2486 = vmatprep.subr.mxu0 0.0
        %2487 = vmatpush1.msra.mxu0 %v802
        %2488 = vmatprep.subr.mxu0 0.0
        %2489 = vmatpush1.msra.mxu0 %v805
        %2490 = vmatprep.subr.mxu0 0.0
        %2491 = vmatpush1.msra.mxu0 0.0
        %2492 = vmatprep.subr.mxu0 0.0
        %2493 = vmatpush1.msra.mxu0 0.0
        %2494 = vmatprep.subr.mxu0 0.0
        %2495 = vmatpush1.msra.mxu0 0.0
        %2496 = vmatprep.subr.mxu0 0.0
        %2497 = vmatpush1.msra.mxu0 0.0
        %2498 = vmatprep.subr.mxu0 0.0
        %2499 = vmatpush1.msra.mxu0 0.0
        %2500 = vmatprep.subr.mxu0 0.0
        %2501 = vmatpush1.msra.mxu0 0.0
        %2502 = vmatprep.subr.mxu0 0.0
        %2503 = vmatpush1.msra.mxu0 0.0
        %2504 = vmatprep.subr.mxu0 0.0
        %2505 = vmatpush1.msra.mxu0 0.0
        %2506 = vmatprep.subr.mxu0 0.0
        %2507 = vmatpush1.msra.mxu0 0.0
        %2508 = vmatprep.subr.mxu0 0.0
        %2509 = vmatpush1.msra.mxu0 0.0
        %2510 = vmatprep.subr.mxu0 0.0
        %2511 = vmatpush1.msra.mxu0 0.0
        %2512 = vmatprep.subr.mxu0 0.0
        %2513 = vmatpush1.msra.mxu0 0.0
        %2514 = vmatprep.subr.mxu0 0.0
        %2515 = vmatpush1.msra.mxu0 0.0
        %2516 = vmatprep.subr.mxu0 0.0
        %2517 = vmatpush1.msra.mxu0 0.0
        %2518 = vmatprep.subr.mxu0 0.0
        %2519 = vmatpush1.msra.mxu0 0.0
        %2520 = vmatprep.subr.mxu0 0.0
        %2521 = vmatpush1.msra.mxu0 0.0
        %2522 = vmatprep.mubr.f32.mxu0 0.0
        %2523 = vmatmul.mubr.f32.gmra.mrb[0].mxu0 %v2282
        %v2524 = vpop.f32.mrb[0].mxu0
        %v2525 = vadd.f32 0.0, %v2524
        %v2526 = vpop.f32.mrb[0].mxu0
        %2527 = vdwg.mxu0
        %v2528 = vadd.f32 %v2384, %v2454
        %v2529 = vadd.f32 %v2385, %v2456
        %v2530 = vxor.u32 %v2528, 2147483648
        %v2531 = vxor.u32 %v2529, 2147483648
        %v2532 = vmul.f32 %v2530, 1.442695
        %v2533 = vpow.pop %v2532
        %v2534 = vmul.f32 %v2531, 1.442695
        %v2535 = vpow.pop %v2534
        %v2536 = vadd.f32 %v2533, 1.0
        %v2537 = vadd.f32 %v2535, 1.0
        %v2538 = vrcp.pop %v2536
        %v2539 = vmul.f32 1.0, %v2538
        %v2540 = vrcp.pop %v2537
        %v2541 = vmul.f32 1.0, %v2540
        %v2542 = vadd.f32 %v2525, %v812
        %v2543 = vmul.f32 %v2539, %v2542
        %v2544 = vadd.f32 %v2386, %v2543
        %v2545 = vtanh.pop %v2544
        %v2546 = vsub.f32 1.0, %v2541
        %v2547 = vmul.f32 %v2546, %v2545
        %v2548 = vmul.f32 %v2541, %v2282
        %v2549 = vadd.f32 %v2547, %v2548
        %s2550 = scalar_lea.vmem [#allocation2], 40
        %2551 = vst [vmem:[%s2550] sm:$0xff] %v2549
        // Predicated region
        $region101: #{model_forward.1} parent=51 // pred_check
          %p2552 = pneg %p508
        $region102: #{model_forward.1} parent=51 // pred_check_branch
          %2554 = sbr.rel (%p2552) target = $region104
        $region103: #{model_forward.1} parent=51 // pred_region
          %v2555 = vld [vmem:[#allocation15] sm:$0xff]
          %v2556 = vld [vmem:[#allocation15 + $0x8] sm:$0xff]
          %v2557 = vld [vmem:[#allocation15 + $0x10] sm:$0xff]
          %v2558 = vld [vmem:[#allocation15 + $0x18] sm:$0xff]
          %v2559 = vld [vmem:[#allocation15 + $0x20] sm:$0xff]
          %v2560 = vld [vmem:[#allocation15 + $0x28] sm:$0xff]
          %v2561 = vld [vmem:[#allocation15 + $0x30] sm:$0xff]
          %v2562 = vld [vmem:[#allocation15 + $0x38] sm:$0xff]
          %v2563 = vld [vmem:[#allocation15 + $0x40] sm:$0xff]
          %v2564 = vld [vmem:[#allocation15 + $0x48] sm:$0xff]
          %v2565 = vld [vmem:[#allocation15 + $0x50] sm:$0xff]
          %v2566 = vld [vmem:[#allocation15 + $0x58] sm:$0xff]
          %v2567 = vld [vmem:[#allocation15 + $0x60] sm:$0xff]
          %v2568 = vld [vmem:[#allocation15 + $0x68] sm:$0xff]
          %v2569 = vld [vmem:[#allocation15 + $0x70] sm:$0xff]
          %v2570 = vld [vmem:[#allocation15 + $0x78] sm:$0xff]
          %v2571 = vld [vmem:[%s8] sm:$0x1]
          %v2573 = vlaneseq
          %v2574 = vshrl.u32 %v2573, 7
          %v2575 = vsub.s32 0, %v2574
          %v2576 = vrot.slane %v2571, %v2575
          %2578 = vmatprep.subr.mxu0 0.0
          %2579 = vmatpush1.msra.mxu0 %v2555
          %2580 = vmatprep.subr.mxu0 0.0
          %2581 = vmatpush1.msra.mxu0 %v2556
          %2582 = vmatprep.subr.mxu0 0.0
          %2583 = vmatpush1.msra.mxu0 %v2557
          %2584 = vmatprep.subr.mxu0 0.0
          %2585 = vmatpush1.msra.mxu0 %v2558
          %2586 = vmatprep.subr.mxu0 0.0
          %2587 = vmatpush1.msra.mxu0 %v2559
          %2588 = vmatprep.subr.mxu0 0.0
          %2589 = vmatpush1.msra.mxu0 %v2560
          %2590 = vmatprep.subr.mxu0 0.0
          %2591 = vmatpush1.msra.mxu0 %v2561
          %2592 = vmatprep.subr.mxu0 0.0
          %2593 = vmatpush1.msra.mxu0 %v2562
          %2594 = vmatprep.subr.mxu0 0.0
          %2595 = vmatpush1.msra.mxu0 %v2563
          %2596 = vmatprep.subr.mxu0 0.0
          %2597 = vmatpush1.msra.mxu0 %v2564
          %2598 = vmatprep.subr.mxu0 0.0
          %2599 = vmatpush1.msra.mxu0 %v2565
          %2600 = vmatprep.subr.mxu0 0.0
          %2601 = vmatpush1.msra.mxu0 %v2566
          %2602 = vmatprep.subr.mxu0 0.0
          %2603 = vmatpush1.msra.mxu0 %v2567
          %2604 = vmatprep.subr.mxu0 0.0
          %2605 = vmatpush1.msra.mxu0 %v2568
          %2606 = vmatprep.subr.mxu0 0.0
          %2607 = vmatpush1.msra.mxu0 %v2569
          %2608 = vmatprep.subr.mxu0 0.0
          %2609 = vmatpush1.msra.mxu0 %v2570
          %2610 = vmatprep.subr.mxu0 0.0
          %2611 = vmatpush1.msra.mxu0 0.0
          %2612 = vmatprep.subr.mxu0 0.0
          %2613 = vmatpush1.msra.mxu0 0.0
          %2614 = vmatprep.subr.mxu0 0.0
          %2615 = vmatpush1.msra.mxu0 0.0
          %2616 = vmatprep.subr.mxu0 0.0
          %2617 = vmatpush1.msra.mxu0 0.0
          %2618 = vmatprep.subr.mxu0 0.0
          %2619 = vmatpush1.msra.mxu0 0.0
          %2620 = vmatprep.subr.mxu0 0.0
          %2621 = vmatpush1.msra.mxu0 0.0
          %2622 = vmatprep.subr.mxu0 0.0
          %2623 = vmatpush1.msra.mxu0 0.0
          %2624 = vmatprep.subr.mxu0 0.0
          %2625 = vmatpush1.msra.mxu0 0.0
          %2626 = vmatprep.subr.mxu0 0.0
          %2627 = vmatpush1.msra.mxu0 0.0
          %2628 = vmatprep.subr.mxu0 0.0
          %2629 = vmatpush1.msra.mxu0 0.0
          %2630 = vmatprep.subr.mxu0 0.0
          %2631 = vmatpush1.msra.mxu0 0.0
          %2632 = vmatprep.subr.mxu0 0.0
          %2633 = vmatpush1.msra.mxu0 0.0
          %2634 = vmatprep.subr.mxu0 0.0
          %2635 = vmatpush1.msra.mxu0 0.0
          %2636 = vmatprep.subr.mxu0 0.0
          %2637 = vmatpush1.msra.mxu0 0.0
          %2638 = vmatprep.subr.mxu0 0.0
          %2639 = vmatpush1.msra.mxu0 0.0
          %2640 = vmatprep.subr.mxu0 0.0
          %2641 = vmatpush1.msra.mxu0 0.0
          %2642 = vmatprep.mubr.f32.mxu0 0.0
          %2643 = vmatmul.mubr.f32.gmra.mrb[0].mxu0 %v2549
          %v2644 = vpop.f32.mrb[0].mxu0
          %v2645 = vadd.f32 %v2576, %v2644
          %v2646 = vpop.f32.mrb[0].mxu0
          %2647 = vdwg.mxu0
          %s2648 = scalar_lea.vmem [#allocation17], 40
          %2649 = vst [vmem:[%s2648] sm:$0xff] %v2645
        $region104: #{model_forward.1} parent=51 // pred_fallthru
          _
        %2650 = vst [vmem:[%s503] sm:$0xff] %v2549
        %s2651 = sand.u32 %s260, 1
        %s2652 = scalar_lea.sflag [#allocation19], %s2651
        %s2653 = sand.u32 %s260, 1
        %s2654 = smul.addr %s2653, 8
        %s2655 = scalar_lea.vmem [#allocation18], %s2654
        // Predicated region
        $region105: #{model_forward.1} parent=51 // pred_check
          %p2656 = pneg %p244
        $region106: #{model_forward.1} parent=51 // pred_check_branch
          %2658 = sbr.rel (%p2656) target = $region108
        $region107: #{model_forward.1} parent=51 // pred_region
          %s2660 = ssub.s32 768, 768
          %2661 = vsyncadd [#allocation8], %s2660
          %s2662 = sshll.u32 [#allocation17], 4
          %s2663 = int_to_ptr.vmem [resolvable:$true] %s2662
          %2668 = dma.vmem_to_hbm [thread:$0]  %s2663, 768, %s9, [#allocation8], 128, 128, 8
        $region108: #{model_forward.1} parent=51 // pred_fallthru
          _
        // Predicated region
        $region109: #{model_forward.1} parent=51 // pred_check
          %p2669 = pneg %p270
        $region110: #{model_forward.1} parent=51 // pred_check_branch
          %2671 = sbr.rel (%p2669) target = $region112
        $region111: #{model_forward.1} parent=51 // pred_region
          %s2673 = ssub.s32 128, 128
          %2674 = vsyncadd %s2652, %s2673
          %s2675 = smul.addr %s38, 128
          %s2676 = scalar_lea.hbm %s10, %s2675
          %s2678 = sshll.u32 %s2655, 4
          %s2679 = int_to_ptr.vmem [resolvable:$true] %s2678
          %2681 = dma.vmem_to_hbm [thread:$0]  %s2679, 128, %s2676, %s2652
        $region112: #{model_forward.1} parent=51 // pred_fallthru
          _
        // Predicated region
        $region113: #{model_forward.1} parent=51 // pred_check
          %p2682 = pneg %p244
        $region114: #{model_forward.1} parent=51 // pred_check_branch
          %2684 = sbr.rel (%p2682) target = $region116
        $region115: #{model_forward.1} parent=51 // pred_region
          %2685 = dma.done [#allocation8], 768
        $region116: #{model_forward.1} parent=51 // pred_fallthru
          _
      $region52: #{model_forward.1} parent=5 // pred_fallthru
        _
      %p2686 = scmp.le.s32.totalorder 2, %s33
      // Predicated region
      $region117: #{model_forward.1} parent=5 // pred_check
        %p2687 = pneg %p2686
      $region118: #{model_forward.1} parent=5 // pred_check_branch
        %2689 = sbr.rel (%p2687) target = $region120
      $region119: #{model_forward.1} parent=5 // pred_region
        %s2690 = ssub.s32 %s33, 2
        // Predicated region
        $region121: #{model_forward.1} parent=119 // pred_check
          %p2691 = pneg %p276
        $region122: #{model_forward.1} parent=119 // pred_check_branch
          %2693 = sbr.rel (%p2691) target = $region124
        $region123: #{model_forward.1} parent=119 // pred_region
          %s2694 = sand.u32 %s261, 1
          %s2695 = scalar_lea.sflag [#allocation19], %s2694
          %s2696 = sand.u32 %s261, 1
          %s2697 = smul.addr %s2696, 8
          %s2698 = scalar_lea.vmem [#allocation18], %s2697
          %2699 = dma.done %s2695, 128
        $region124: #{model_forward.1} parent=119 // pred_fallthru
          _
      $region120: #{model_forward.1} parent=5 // pred_fallthru
        _
    $region6: #{model_forward.1} parent=1 // loop_footer
      %s37 = sadd.s32 1, %s33
    $region7: #{model_forward.1} parent=1 // loop_footer_branch
      %32 = sbr.rel target = $region3
    $region8: #{model_forward.1} parent=1 // loop_exit
      _
    %2700 = vsyncpa [#allocation7], 1
    %s2701 = scalar_lea.sflag [#allocation7], 1
    %2702 = vsyncpa %s2701, 1
    %2703 = vsyncpa [#allocation10], 1
    %s2704 = scalar_lea.sflag [#allocation10], 1
    %2705 = vsyncpa %s2704, 1
    %2706 = vsyncpa [#allocation13], 1
    %s2707 = scalar_lea.sflag [#allocation13], 1
    %2708 = vsyncpa %s2707, 1
    %2709 = vsyncpa [#allocation16], 1
    %2710 = vsyncpa [#allocation8], 1
    %s2711 = scalar_lea.sflag [#allocation8], 1
    %2712 = vsyncpa %s2711, 1
    %2713 = vsyncpa [#allocation19], 1
    %s2714 = scalar_lea.sflag [#allocation19], 1
    %2715 = vsyncpa %s2714, 1

</llo_original>
